<compile_context>
chip_gen: v6e
topology: v6e:2x2x1
jax: 0.10.0
libtpu: 0.0.40
codegen_flags: <defaults>
</compile_context>

<pallas_src>
import math

import jax
import jax.numpy as jnp
from jax.experimental import pallas as pl
from jax.experimental.pallas import tpu as pltpu

PI = math.pi          # torch.acos(0).item() * 2
HIDDEN = 64           # LSTM hidden size
OUT_LANES = 128       # lane-dense packed output slab width (>= 5 used channels)

VMEM = pltpu.MemorySpace.VMEM


# ---------------------------------------------------------------------------
# Fused forward kernel (single invocation, everything VMEM-resident)
# ---------------------------------------------------------------------------
def fused_forward_kernel(
    img_ref, act_ref,
    we_ref, be_ref,                                   # dense encoder (conv folded)
    w1_ref, b1_ref, w2_ref, b2_ref,                   # image MLP
    w3_ref, b3_ref, w4_ref, b4_ref,
    w5_ref, b5_ref, w6_ref, b6_ref,                   # action MLP
    wih_ref, bihh_ref, whh_ref,                       # LSTM
    w79_ref, b79_ref, wh_ref, bh_ref,                 # fused heads
    out_ref,                                          # (B, T, 128) packed slab
):
    f32 = jnp.float32
    H = HIDDEN

    # ---- encoder (dense patchify-conv) + image MLP (linear1..4) -> (h0, c0) ----
    x = jnp.maximum(jnp.dot(img_ref[...], we_ref[...], preferred_element_type=f32)
                    + be_ref[...], 0.0)
    x = jnp.maximum(jnp.dot(x, w1_ref[...], preferred_element_type=f32) + b1_ref[...], 0.0)
    x = jnp.maximum(jnp.dot(x, w2_ref[...], preferred_element_type=f32) + b2_ref[...], 0.0)
    x = jnp.maximum(jnp.dot(x, w3_ref[...], preferred_element_type=f32) + b3_ref[...], 0.0)
    x = jnp.dot(x, w4_ref[...], preferred_element_type=f32) + b4_ref[...]
    h = x[:, :H]           # torch.chunk(x, 2, dim=1) -> (h_0, c_0)
    c = x[:, H:2 * H]

    # Hoist weight loads once (reused every unrolled step).
    w5 = w5_ref[...]
    b5 = b5_ref[...]
    w6 = w6_ref[...]
    b6 = b6_ref[...]
    wih = wih_ref[...]
    bihh = bihh_ref[...]
    whh = whh_ref[...]
    w79 = w79_ref[...]
    b79 = b79_ref[...]
    wh = wh_ref[...]
    bh = bh_ref[...]

    T = act_ref.shape[1]
    # Statically unrolled time loop (T is small): gives the scheduler full
    # visibility and avoids any per-step grid / DMA overhead.
    for t in range(T):
        a_t = act_ref[:, t, :]                                   # (B, 2)

        # linear5 (K=2): two broadcast multiply-adds on the VPU (no MXU pass).
        y = a_t[:, 0:1] * w5[0:1, :] + a_t[:, 1:2] * w5[1:2, :] + b5
        y = jnp.maximum(y, 0.0)
        # linear6 + relu
        y = jnp.maximum(jnp.dot(y, w6, preferred_element_type=f32) + b6, 0.0)

        # LSTM step (PyTorch gate order i, f, g, o; b_ih + b_hh pre-summed).
        gates = (jnp.dot(y, wih, preferred_element_type=f32) + bihh
                 + jnp.dot(h, whh, preferred_element_type=f32))
        i_g = jax.nn.sigmoid(gates[:, 0 * H:1 * H])
        f_g = jax.nn.sigmoid(gates[:, 1 * H:2 * H])
        g_g = jnp.tanh(gates[:, 2 * H:3 * H])
        o_g = jax.nn.sigmoid(gates[:, 3 * H:4 * H])
        c = f_g * c + i_g * g_g
        h = o_g * jnp.tanh(c)

        # Heads: hcat = [relu(linear7(h)) | relu(linear9(h))] in one matmul,
        # then one (64 -> 128) matmul produces the packed lane-dense row:
        #   col 0: z_col (collision pre-activation), cols 1..3: position,
        #   col 4: z_col again (raw, for e_bumpy — shared linear7/8, no sigmoid),
        #   cols 5..127: zero padding.
        hcat = jnp.maximum(jnp.dot(h, w79, preferred_element_type=f32) + b79, 0.0)
        pre = jnp.dot(hcat, wh, preferred_element_type=f32) + bh   # (B, 128)
        col = jax.lax.broadcasted_iota(jnp.int32, pre.shape, 1)
        res = jnp.where(col == 0, jax.nn.sigmoid(pre), pre)        # e_col = sigmoid(z)
        res = jnp.where(col == 3, jnp.tanh(pre) * PI, res)         # yaw = tanh(.) * pi
        out_ref[:, t, :] = res


# ---------------------------------------------------------------------------
# Parameter initialization (deterministic, PyTorch-like uniform fan-in init)
# ---------------------------------------------------------------------------
def _linear_init(key, fan_in, fan_out):
    k1, k2 = jax.random.split(key)
    bound = 1.0 / math.sqrt(fan_in)
    w = jax.random.uniform(k1, (fan_in, fan_out), jnp.float32, -bound, bound)
    b = jax.random.uniform(k2, (1, fan_out), jnp.float32, -bound, bound)
    return w, b


def init_params(key, in_channels=3, image_hw=16, patch=4, enc_out_ch=8):
    hp = image_hw // patch
    enc_feat = enc_out_ch * hp * hp          # check_encoder_out_put_size()
    keys = jax.random.split(key, 16)
    p = {}
    p["conv_w"], p["conv_b"] = _linear_init(keys[0], in_channels * patch * patch, enc_out_ch)
    p["l1"] = _linear_init(keys[1], enc_feat, 256)
    p["l2"] = _linear_init(keys[2], 256, 256)
    p["l3"] = _linear_init(keys[3], 256, 128)
    p["l4"] = _linear_init(keys[4], 128, 128)
    p["l5"] = _linear_init(keys[5], 2, 16)
    p["l6"] = _linear_init(keys[6], 16, 16)
    p["l7"] = _linear_init(keys[7], 64, 32)
    p["l8"] = _linear_init(keys[8], 32, 1)
    p["l9"] = _linear_init(keys[9], 64, 32)
    p["l10"] = _linear_init(keys[10], 32, 3)
    # LSTM(input=16, hidden=64): weights stored transposed for x @ W form,
    # gate order (i, f, g, o) along the 4*64 axis (PyTorch convention).
    bound = 1.0 / math.sqrt(HIDDEN)
    p["w_ih"] = jax.random.uniform(keys[11], (16, 4 * HIDDEN), jnp.float32, -bound, bound)
    p["w_hh"] = jax.random.uniform(keys[12], (HIDDEN, 4 * HIDDEN), jnp.float32, -bound, bound)
    b_ih = jax.random.uniform(keys[13], (1, 4 * HIDDEN), jnp.float32, -bound, bound)
    b_hh = jax.random.uniform(keys[14], (1, 4 * HIDDEN), jnp.float32, -bound, bound)
    p["b_ihh"] = b_ih + b_hh
    return p


def prepare_params(params, in_channels=3, image_hw=16, patch=4, enc_out_ch=8):
    """One-time fold of torch-structured params into kernel-ready tensors."""
    hp = wp = image_hw // patch
    enc_feat = enc_out_ch * hp * wp

    # Fold the 4x4-stride patchify conv + NCHW flatten into one dense matrix:
    #   img_flat(NCHW) @ w_enc == torch.flatten(conv(image), 1)
    conv_w4 = params["conv_w"].reshape(in_channels, patch, patch, enc_out_ch)
    eye_h = jnp.eye(hp, dtype=jnp.float32)
    eye_w = jnp.eye(wp, dtype=jnp.float32)
    w_enc = jnp.einsum("cyxo,ik,jl->ciyjxokl", conv_w4, eye_h, eye_w)
    w_enc = w_enc.reshape(in_channels * image_hw * image_hw, enc_feat)
    b_enc = jnp.repeat(params["conv_b"], hp * wp, axis=1)          # (1, enc_feat)

    # Fuse the head linears: hcat = relu([l7 | l9]); one (64 -> 128) matmul
    # builds the packed output pre-activation slab.
    w7, b7 = params["l7"]
    w8, b8 = params["l8"]
    w9, b9 = params["l9"]
    w10, b10 = params["l10"]
    w79 = jnp.concatenate([w7, w9], axis=1)                        # (64, 64)
    b79 = jnp.concatenate([b7, b9], axis=1)                        # (1, 64)
    w_heads = jnp.zeros((64, OUT_LANES), jnp.float32)
    w_heads = w_heads.at[0:32, 0].set(w8[:, 0])                    # z_col
    w_heads = w_heads.at[0:32, 4].set(w8[:, 0])                    # raw z (e_bumpy)
    w_heads = w_heads.at[32:64, 1:4].set(w10)                      # position
    b_heads = jnp.zeros((1, OUT_LANES), jnp.float32)
    b_heads = b_heads.at[0, 0].set(b8[0, 0])
    b_heads = b_heads.at[0, 4].set(b8[0, 0])
    b_heads = b_heads.at[0, 1:4].set(b10[0, :])

    kp = {
        "w_enc": w_enc, "b_enc": b_enc,
        "w1": params["l1"][0], "b1": params["l1"][1],
        "w2": params["l2"][0], "b2": params["l2"][1],
        "w3": params["l3"][0], "b3": params["l3"][1],
        "w4": params["l4"][0], "b4": params["l4"][1],
        "w5": params["l5"][0], "b5": params["l5"][1],
        "w6": params["l6"][0], "b6": params["l6"][1],
        "w_ih": params["w_ih"], "b_ihh": params["b_ihh"], "w_hh": params["w_hh"],
        "w79": w79, "b79": b79, "w_heads": w_heads, "b_heads": b_heads,
    }
    return kp


# ---------------------------------------------------------------------------
# Forward pass: a single fused pallas_call
# ---------------------------------------------------------------------------
@jax.jit
def forward(kparams, image, action):
    B = image.shape[0]
    T = action.shape[1]
    img_flat = image.reshape(B, -1)          # NCHW flatten (free reshape)

    inputs = (
        img_flat, action,
        kparams["w_enc"], kparams["b_enc"],
        kparams["w1"], kparams["b1"], kparams["w2"], kparams["b2"],
        kparams["w3"], kparams["b3"], kparams["w4"], kparams["b4"],
        kparams["w5"], kparams["b5"], kparams["w6"], kparams["b6"],
        kparams["w_ih"], kparams["b_ihh"], kparams["w_hh"],
        kparams["w79"], kparams["b79"], kparams["w_heads"], kparams["b_heads"],
    )
    out = pl.pallas_call(
        fused_forward_kernel,
        out_shape=jax.ShapeDtypeStruct((B, T, OUT_LANES), jnp.float32),
        in_specs=[pl.BlockSpec(memory_space=VMEM)] * len(inputs),
        out_specs=pl.BlockSpec(memory_space=VMEM),
    )(*inputs)

    # Slice the lane-dense slab into the module's three outputs.
    e_col = out[:, :, 0:1]
    position = out[:, :, 1:4]
    e_bumpy = out[:, :, 4:5]
    return e_col, position, e_bumpy


# ---------------------------------------------------------------------------
if __name__ == "__main__":
    key = jax.random.PRNGKey(0)
    k_img, k_act = jax.random.split(key, 2)

    B, C, HW, T = 2, 3, 16, 8
    image = jax.random.normal(k_img, (B, C, HW, HW), jnp.float32)
    action = jax.random.normal(k_act, (B, T, 2), jnp.float32)

    params = init_params(jax.random.PRNGKey(42), in_channels=C, image_hw=HW)
    kparams = prepare_params(params, in_channels=C, image_hw=HW)
    kparams = jax.tree_util.tree_map(jax.block_until_ready, kparams)

    e_col, position, e_bumpy = forward(kparams, image, action)
    jax.block_until_ready((e_col, position, e_bumpy))

    assert e_col.shape == (B, T, 1)
    assert position.shape == (B, T, 3)
    assert e_bumpy.shape == (B, T, 1)
    assert bool(jnp.all(jnp.isfinite(e_col)))
    assert bool(jnp.all(jnp.isfinite(position)))
    assert bool(jnp.all(jnp.isfinite(e_bumpy)))
    assert bool(jnp.all((e_col >= 0.0) & (e_col <= 1.0)))          # sigmoid range
    assert bool(jnp.all(jnp.abs(position[:, :, -1]) <= PI + 1e-5))  # yaw in [-pi, pi]
    print("KERNEL_OK")
</pallas_src>

<mosaic_0001>
module attributes {stable_mosaic.version = 11 : i64} {
  func.func @fused_forward_kernel(%arg0: memref<2x768xf32, #tpu.memory_space<vmem>>, %arg1: memref<2x8x2xf32, #tpu.memory_space<vmem>>, %arg2: memref<768x128xf32, #tpu.memory_space<vmem>>, %arg3: memref<1x128xf32, #tpu.memory_space<vmem>>, %arg4: memref<128x256xf32, #tpu.memory_space<vmem>>, %arg5: memref<1x256xf32, #tpu.memory_space<vmem>>, %arg6: memref<256x256xf32, #tpu.memory_space<vmem>>, %arg7: memref<1x256xf32, #tpu.memory_space<vmem>>, %arg8: memref<256x128xf32, #tpu.memory_space<vmem>>, %arg9: memref<1x128xf32, #tpu.memory_space<vmem>>, %arg10: memref<128x128xf32, #tpu.memory_space<vmem>>, %arg11: memref<1x128xf32, #tpu.memory_space<vmem>>, %arg12: memref<2x16xf32, #tpu.memory_space<vmem>>, %arg13: memref<1x16xf32, #tpu.memory_space<vmem>>, %arg14: memref<16x16xf32, #tpu.memory_space<vmem>>, %arg15: memref<1x16xf32, #tpu.memory_space<vmem>>, %arg16: memref<16x256xf32, #tpu.memory_space<vmem>>, %arg17: memref<1x256xf32, #tpu.memory_space<vmem>>, %arg18: memref<64x256xf32, #tpu.memory_space<vmem>>, %arg19: memref<64x64xf32, #tpu.memory_space<vmem>>, %arg20: memref<1x64xf32, #tpu.memory_space<vmem>>, %arg21: memref<64x128xf32, #tpu.memory_space<vmem>>, %arg22: memref<1x128xf32, #tpu.memory_space<vmem>>, %arg23: memref<2x8x128xf32, #tpu.memory_space<vmem>>) attributes {dimension_semantics = [], scalar_prefetch = 0 : i64, scratch_operands = 0 : i64, tpu.core_type = #tpu.core_type<tc>} {
    %c0 = arith.constant 0 : index
    %c0_0 = arith.constant 0 : index
    %0 = vector.load %arg0[%c0, %c0_0] : memref<2x768xf32, #tpu.memory_space<vmem>>, vector<2x768xf32>
    %c0_1 = arith.constant 0 : index
    %c0_2 = arith.constant 0 : index
    %1 = vector.load %arg2[%c0_1, %c0_2] : memref<768x128xf32, #tpu.memory_space<vmem>>, vector<768x128xf32>
    %cst = arith.constant dense<0.000000e+00> : vector<2x128xf32>
    %2 = tpu.matmul %0, %1, %cst {dimension_numbers = #tpu.dot_dimension_numbers<[1], [0], [0], [1], [0, 0, 1, 1], [], []>} : vector<2x768xf32>, vector<768x128xf32>, vector<2x128xf32> -> vector<2x128xf32>
    %c0_3 = arith.constant 0 : index
    %c0_4 = arith.constant 0 : index
    %3 = vector.load %arg3[%c0_3, %c0_4] : memref<1x128xf32, #tpu.memory_space<vmem>>, vector<1x128xf32>
    %4 = vector.broadcast %3 : vector<1x128xf32> to vector<2x128xf32>
    %5 = arith.addf %2, %4 : vector<2x128xf32>
    %cst_5 = arith.constant 0.000000e+00 : f32
    %6 = vector.broadcast %cst_5 : f32 to vector<2x128xf32>
    %7 = arith.maximumf %5, %6 : vector<2x128xf32>
    %c0_6 = arith.constant 0 : index
    %c0_7 = arith.constant 0 : index
    %8 = vector.load %arg4[%c0_6, %c0_7] : memref<128x256xf32, #tpu.memory_space<vmem>>, vector<128x256xf32>
    %cst_8 = arith.constant dense<0.000000e+00> : vector<2x256xf32>
    %9 = tpu.matmul %7, %8, %cst_8 {dimension_numbers = #tpu.dot_dimension_numbers<[1], [0], [0], [1], [0, 0, 1, 1], [], []>} : vector<2x128xf32>, vector<128x256xf32>, vector<2x256xf32> -> vector<2x256xf32>
    %c0_9 = arith.constant 0 : index
    %c0_10 = arith.constant 0 : index
    %10 = vector.load %arg5[%c0_9, %c0_10] : memref<1x256xf32, #tpu.memory_space<vmem>>, vector<1x256xf32>
    %11 = vector.broadcast %10 : vector<1x256xf32> to vector<2x256xf32>
    %12 = arith.addf %9, %11 : vector<2x256xf32>
    %cst_11 = arith.constant 0.000000e+00 : f32
    %13 = vector.broadcast %cst_11 : f32 to vector<2x256xf32>
    %14 = arith.maximumf %12, %13 : vector<2x256xf32>
    %c0_12 = arith.constant 0 : index
    %c0_13 = arith.constant 0 : index
    %15 = vector.load %arg6[%c0_12, %c0_13] : memref<256x256xf32, #tpu.memory_space<vmem>>, vector<256x256xf32>
    %cst_14 = arith.constant dense<0.000000e+00> : vector<2x256xf32>
    %16 = tpu.matmul %14, %15, %cst_14 {dimension_numbers = #tpu.dot_dimension_numbers<[1], [0], [0], [1], [0, 0, 1, 1], [], []>} : vector<2x256xf32>, vector<256x256xf32>, vector<2x256xf32> -> vector<2x256xf32>
    %c0_15 = arith.constant 0 : index
    %c0_16 = arith.constant 0 : index
    %17 = vector.load %arg7[%c0_15, %c0_16] : memref<1x256xf32, #tpu.memory_space<vmem>>, vector<1x256xf32>
    %18 = vector.broadcast %17 : vector<1x256xf32> to vector<2x256xf32>
    %19 = arith.addf %16, %18 : vector<2x256xf32>
    %cst_17 = arith.constant 0.000000e+00 : f32
    %20 = vector.broadcast %cst_17 : f32 to vector<2x256xf32>
    %21 = arith.maximumf %19, %20 : vector<2x256xf32>
    %c0_18 = arith.constant 0 : index
    %c0_19 = arith.constant 0 : index
    %22 = vector.load %arg8[%c0_18, %c0_19] : memref<256x128xf32, #tpu.memory_space<vmem>>, vector<256x128xf32>
    %cst_20 = arith.constant dense<0.000000e+00> : vector<2x128xf32>
    %23 = tpu.matmul %21, %22, %cst_20 {dimension_numbers = #tpu.dot_dimension_numbers<[1], [0], [0], [1], [0, 0, 1, 1], [], []>} : vector<2x256xf32>, vector<256x128xf32>, vector<2x128xf32> -> vector<2x128xf32>
    %c0_21 = arith.constant 0 : index
    %c0_22 = arith.constant 0 : index
    %24 = vector.load %arg9[%c0_21, %c0_22] : memref<1x128xf32, #tpu.memory_space<vmem>>, vector<1x128xf32>
    %25 = vector.broadcast %24 : vector<1x128xf32> to vector<2x128xf32>
    %26 = arith.addf %23, %25 : vector<2x128xf32>
    %cst_23 = arith.constant 0.000000e+00 : f32
    %27 = vector.broadcast %cst_23 : f32 to vector<2x128xf32>
    %28 = arith.maximumf %26, %27 : vector<2x128xf32>
    %c0_24 = arith.constant 0 : index
    %c0_25 = arith.constant 0 : index
    %29 = vector.load %arg10[%c0_24, %c0_25] : memref<128x128xf32, #tpu.memory_space<vmem>>, vector<128x128xf32>
    %cst_26 = arith.constant dense<0.000000e+00> : vector<2x128xf32>
    %30 = tpu.matmul %28, %29, %cst_26 {dimension_numbers = #tpu.dot_dimension_numbers<[1], [0], [0], [1], [0, 0, 1, 1], [], []>} : vector<2x128xf32>, vector<128x128xf32>, vector<2x128xf32> -> vector<2x128xf32>
    %c0_27 = arith.constant 0 : index
    %c0_28 = arith.constant 0 : index
    %31 = vector.load %arg11[%c0_27, %c0_28] : memref<1x128xf32, #tpu.memory_space<vmem>>, vector<1x128xf32>
    %32 = vector.broadcast %31 : vector<1x128xf32> to vector<2x128xf32>
    %33 = arith.addf %30, %32 : vector<2x128xf32>
    %34 = vector.extract_strided_slice %33 {offsets = [0, 0], sizes = [2, 64], strides = [1, 1]} : vector<2x128xf32> to vector<2x64xf32>
    %35 = vector.extract_strided_slice %33 {offsets = [0, 64], sizes = [2, 64], strides = [1, 1]} : vector<2x128xf32> to vector<2x64xf32>
    %c0_29 = arith.constant 0 : index
    %c0_30 = arith.constant 0 : index
    %36 = vector.load %arg12[%c0_29, %c0_30] : memref<2x16xf32, #tpu.memory_space<vmem>>, vector<2x16xf32>
    %c0_31 = arith.constant 0 : index
    %c0_32 = arith.constant 0 : index
    %37 = vector.load %arg13[%c0_31, %c0_32] : memref<1x16xf32, #tpu.memory_space<vmem>>, vector<1x16xf32>
    %c0_33 = arith.constant 0 : index
    %c0_34 = arith.constant 0 : index
    %38 = vector.load %arg14[%c0_33, %c0_34] : memref<16x16xf32, #tpu.memory_space<vmem>>, vector<16x16xf32>
    %c0_35 = arith.constant 0 : index
    %c0_36 = arith.constant 0 : index
    %39 = vector.load %arg15[%c0_35, %c0_36] : memref<1x16xf32, #tpu.memory_space<vmem>>, vector<1x16xf32>
    %c0_37 = arith.constant 0 : index
    %c0_38 = arith.constant 0 : index
    %40 = vector.load %arg16[%c0_37, %c0_38] : memref<16x256xf32, #tpu.memory_space<vmem>>, vector<16x256xf32>
    %c0_39 = arith.constant 0 : index
    %c0_40 = arith.constant 0 : index
    %41 = vector.load %arg17[%c0_39, %c0_40] : memref<1x256xf32, #tpu.memory_space<vmem>>, vector<1x256xf32>
    %c0_41 = arith.constant 0 : index
    %c0_42 = arith.constant 0 : index
    %42 = vector.load %arg18[%c0_41, %c0_42] : memref<64x256xf32, #tpu.memory_space<vmem>>, vector<64x256xf32>
    %c0_43 = arith.constant 0 : index
    %c0_44 = arith.constant 0 : index
    %43 = vector.load %arg19[%c0_43, %c0_44] : memref<64x64xf32, #tpu.memory_space<vmem>>, vector<64x64xf32>
    %c0_45 = arith.constant 0 : index
    %c0_46 = arith.constant 0 : index
    %44 = vector.load %arg20[%c0_45, %c0_46] : memref<1x64xf32, #tpu.memory_space<vmem>>, vector<1x64xf32>
    %c0_47 = arith.constant 0 : index
    %c0_48 = arith.constant 0 : index
    %45 = vector.load %arg21[%c0_47, %c0_48] : memref<64x128xf32, #tpu.memory_space<vmem>>, vector<64x128xf32>
    %c0_49 = arith.constant 0 : index
    %c0_50 = arith.constant 0 : index
    %46 = vector.load %arg22[%c0_49, %c0_50] : memref<1x128xf32, #tpu.memory_space<vmem>>, vector<1x128xf32>
    %c0_51 = arith.constant 0 : index
    %c0_52 = arith.constant 0 : index
    %c0_53 = arith.constant 0 : index
    %47 = vector.load %arg1[%c0_51, %c0_52, %c0_53] : memref<2x8x2xf32, #tpu.memory_space<vmem>>, vector<2x1x2xf32>
    %48 = vector.shape_cast %47 : vector<2x1x2xf32> to vector<2x2xf32>
    %49 = vector.extract_strided_slice %48 {offsets = [0, 0], sizes = [2, 1], strides = [1, 1]} : vector<2x2xf32> to vector<2x1xf32>
    %50 = vector.extract_strided_slice %36 {offsets = [0, 0], sizes = [1, 16], strides = [1, 1]} : vector<2x16xf32> to vector<1x16xf32>
    %51 = vector.broadcast %49 : vector<2x1xf32> to vector<2x16xf32>
    %52 = vector.broadcast %50 : vector<1x16xf32> to vector<2x16xf32>
    %53 = arith.mulf %51, %52 : vector<2x16xf32>
    %54 = vector.extract_strided_slice %48 {offsets = [0, 1], sizes = [2, 1], strides = [1, 1]} : vector<2x2xf32> to vector<2x1xf32>
    %55 = vector.extract_strided_slice %36 {offsets = [1, 0], sizes = [1, 16], strides = [1, 1]} : vector<2x16xf32> to vector<1x16xf32>
    %56 = vector.broadcast %54 : vector<2x1xf32> to vector<2x16xf32>
    %57 = vector.broadcast %55 : vector<1x16xf32> to vector<2x16xf32>
    %58 = arith.mulf %56, %57 : vector<2x16xf32>
    %59 = arith.addf %53, %58 : vector<2x16xf32>
    %60 = vector.broadcast %37 : vector<1x16xf32> to vector<2x16xf32>
    %61 = arith.addf %59, %60 : vector<2x16xf32>
    %cst_54 = arith.constant 0.000000e+00 : f32
    %62 = vector.broadcast %cst_54 : f32 to vector<2x16xf32>
    %63 = arith.maximumf %61, %62 : vector<2x16xf32>
    %cst_55 = arith.constant dense<0.000000e+00> : vector<2x16xf32>
    %64 = tpu.matmul %63, %38, %cst_55 {dimension_numbers = #tpu.dot_dimension_numbers<[1], [0], [0], [1], [0, 0, 1, 1], [], []>} : vector<2x16xf32>, vector<16x16xf32>, vector<2x16xf32> -> vector<2x16xf32>
    %65 = vector.broadcast %39 : vector<1x16xf32> to vector<2x16xf32>
    %66 = arith.addf %64, %65 : vector<2x16xf32>
    %cst_56 = arith.constant 0.000000e+00 : f32
    %67 = vector.broadcast %cst_56 : f32 to vector<2x16xf32>
    %68 = arith.maximumf %66, %67 : vector<2x16xf32>
    %cst_57 = arith.constant dense<0.000000e+00> : vector<2x256xf32>
    %69 = tpu.matmul %68, %40, %cst_57 {dimension_numbers = #tpu.dot_dimension_numbers<[1], [0], [0], [1], [0, 0, 1, 1], [], []>} : vector<2x16xf32>, vector<16x256xf32>, vector<2x256xf32> -> vector<2x256xf32>
    %70 = vector.broadcast %41 : vector<1x256xf32> to vector<2x256xf32>
    %71 = arith.addf %69, %70 : vector<2x256xf32>
    %cst_58 = arith.constant dense<0.000000e+00> : vector<2x256xf32>
    %72 = tpu.matmul %34, %42, %cst_58 {dimension_numbers = #tpu.dot_dimension_numbers<[1], [0], [0], [1], [0, 0, 1, 1], [], []>} : vector<2x64xf32>, vector<64x256xf32>, vector<2x256xf32> -> vector<2x256xf32>
    %73 = arith.addf %71, %72 : vector<2x256xf32>
    %74 = vector.extract_strided_slice %73 {offsets = [0, 0], sizes = [2, 64], strides = [1, 1]} : vector<2x256xf32> to vector<2x64xf32>
    %75 = arith.negf %74 : vector<2x64xf32>
    %76 = math.exp %75 : vector<2x64xf32>
    %cst_59 = arith.constant 1.000000e+00 : f32
    %77 = vector.broadcast %cst_59 : f32 to vector<2x64xf32>
    %78 = arith.addf %77, %76 : vector<2x64xf32>
    %79 = arith.divf %77, %78 : vector<2x64xf32>
    %80 = vector.extract_strided_slice %73 {offsets = [0, 64], sizes = [2, 64], strides = [1, 1]} : vector<2x256xf32> to vector<2x64xf32>
    %81 = arith.negf %80 : vector<2x64xf32>
    %82 = math.exp %81 : vector<2x64xf32>
    %cst_60 = arith.constant 1.000000e+00 : f32
    %83 = vector.broadcast %cst_60 : f32 to vector<2x64xf32>
    %84 = arith.addf %83, %82 : vector<2x64xf32>
    %85 = arith.divf %83, %84 : vector<2x64xf32>
    %86 = vector.extract_strided_slice %73 {offsets = [0, 128], sizes = [2, 64], strides = [1, 1]} : vector<2x256xf32> to vector<2x64xf32>
    %87 = math.tanh %86 : vector<2x64xf32>
    %88 = vector.extract_strided_slice %73 {offsets = [0, 192], sizes = [2, 64], strides = [1, 1]} : vector<2x256xf32> to vector<2x64xf32>
    %89 = arith.negf %88 : vector<2x64xf32>
    %90 = math.exp %89 : vector<2x64xf32>
    %cst_61 = arith.constant 1.000000e+00 : f32
    %91 = vector.broadcast %cst_61 : f32 to vector<2x64xf32>
    %92 = arith.addf %91, %90 : vector<2x64xf32>
    %93 = arith.divf %91, %92 : vector<2x64xf32>
    %94 = arith.mulf %85, %35 : vector<2x64xf32>
    %95 = arith.mulf %79, %87 : vector<2x64xf32>
    %96 = arith.addf %94, %95 : vector<2x64xf32>
    %97 = math.tanh %96 : vector<2x64xf32>
    %98 = arith.mulf %93, %97 : vector<2x64xf32>
    %cst_62 = arith.constant dense<0.000000e+00> : vector<2x64xf32>
    %99 = tpu.matmul %98, %43, %cst_62 {dimension_numbers = #tpu.dot_dimension_numbers<[1], [0], [0], [1], [0, 0, 1, 1], [], []>} : vector<2x64xf32>, vector<64x64xf32>, vector<2x64xf32> -> vector<2x64xf32>
    %100 = vector.broadcast %44 : vector<1x64xf32> to vector<2x64xf32>
    %101 = arith.addf %99, %100 : vector<2x64xf32>
    %cst_63 = arith.constant 0.000000e+00 : f32
    %102 = vector.broadcast %cst_63 : f32 to vector<2x64xf32>
    %103 = arith.maximumf %101, %102 : vector<2x64xf32>
    %cst_64 = arith.constant dense<0.000000e+00> : vector<2x128xf32>
    %104 = tpu.matmul %103, %45, %cst_64 {dimension_numbers = #tpu.dot_dimension_numbers<[1], [0], [0], [1], [0, 0, 1, 1], [], []>} : vector<2x64xf32>, vector<64x128xf32>, vector<2x128xf32> -> vector<2x128xf32>
    %105 = vector.broadcast %46 : vector<1x128xf32> to vector<2x128xf32>
    %106 = arith.addf %104, %105 : vector<2x128xf32>
    %107 = tpu.iota {dimensions = array<i32: 1>} : vector<2x128xi32>
    %c0_i32 = arith.constant 0 : i32
    %108 = vector.broadcast %c0_i32 : i32 to vector<2x128xi32>
    %109 = arith.cmpi eq, %107, %108 : vector<2x128xi32>
    %110 = arith.negf %106 : vector<2x128xf32>
    %111 = math.exp %110 : vector<2x128xf32>
    %cst_65 = arith.constant 1.000000e+00 : f32
    %112 = vector.broadcast %cst_65 : f32 to vector<2x128xf32>
    %113 = arith.addf %112, %111 : vector<2x128xf32>
    %114 = arith.divf %112, %113 : vector<2x128xf32>
    %115 = arith.select %109, %114, %106 : vector<2x128xi1>, vector<2x128xf32>
    %c3_i32 = arith.constant 3 : i32
    %116 = vector.broadcast %c3_i32 : i32 to vector<2x128xi32>
    %117 = arith.cmpi eq, %107, %116 : vector<2x128xi32>
    %118 = math.tanh %106 : vector<2x128xf32>
    %cst_66 = arith.constant 3.14159274 : f32
    %119 = vector.broadcast %cst_66 : f32 to vector<2x128xf32>
    %120 = arith.mulf %118, %119 : vector<2x128xf32>
    %121 = arith.select %117, %120, %115 : vector<2x128xi1>, vector<2x128xf32>
    %c0_67 = arith.constant 0 : index
    %c0_68 = arith.constant 0 : index
    %c0_69 = arith.constant 0 : index
    %122 = vector.load %arg23[%c0_67, %c0_68, %c0_69] : memref<2x8x128xf32, #tpu.memory_space<vmem>>, vector<2x1x128xf32>
    %123 = vector.shape_cast %122 : vector<2x1x128xf32> to vector<2x128xf32>
    %124 = vector.shape_cast %121 : vector<2x128xf32> to vector<2x1x128xf32>
    tpu.vector_store %arg23[%c0_67, %c0_68, %c0_69], %124 {strides = array<i32>} : memref<2x8x128xf32, #tpu.memory_space<vmem>>, vector<2x1x128xf32>,
    %c0_70 = arith.constant 0 : index
    %c1 = arith.constant 1 : index
    %c0_71 = arith.constant 0 : index
    %125 = vector.load %arg1[%c0_70, %c1, %c0_71] : memref<2x8x2xf32, #tpu.memory_space<vmem>>, vector<2x1x2xf32>
    %126 = vector.shape_cast %125 : vector<2x1x2xf32> to vector<2x2xf32>
    %127 = vector.extract_strided_slice %126 {offsets = [0, 0], sizes = [2, 1], strides = [1, 1]} : vector<2x2xf32> to vector<2x1xf32>
    %128 = vector.extract_strided_slice %36 {offsets = [0, 0], sizes = [1, 16], strides = [1, 1]} : vector<2x16xf32> to vector<1x16xf32>
    %129 = vector.broadcast %127 : vector<2x1xf32> to vector<2x16xf32>
    %130 = vector.broadcast %128 : vector<1x16xf32> to vector<2x16xf32>
    %131 = arith.mulf %129, %130 : vector<2x16xf32>
    %132 = vector.extract_strided_slice %126 {offsets = [0, 1], sizes = [2, 1], strides = [1, 1]} : vector<2x2xf32> to vector<2x1xf32>
    %133 = vector.extract_strided_slice %36 {offsets = [1, 0], sizes = [1, 16], strides = [1, 1]} : vector<2x16xf32> to vector<1x16xf32>
    %134 = vector.broadcast %132 : vector<2x1xf32> to vector<2x16xf32>
    %135 = vector.broadcast %133 : vector<1x16xf32> to vector<2x16xf32>
    %136 = arith.mulf %134, %135 : vector<2x16xf32>
    %137 = arith.addf %131, %136 : vector<2x16xf32>
    %138 = vector.broadcast %37 : vector<1x16xf32> to vector<2x16xf32>
    %139 = arith.addf %137, %138 : vector<2x16xf32>
    %cst_72 = arith.constant 0.000000e+00 : f32
    %140 = vector.broadcast %cst_72 : f32 to vector<2x16xf32>
    %141 = arith.maximumf %139, %140 : vector<2x16xf32>
    %cst_73 = arith.constant dense<0.000000e+00> : vector<2x16xf32>
    %142 = tpu.matmul %141, %38, %cst_73 {dimension_numbers = #tpu.dot_dimension_numbers<[1], [0], [0], [1], [0, 0, 1, 1], [], []>} : vector<2x16xf32>, vector<16x16xf32>, vector<2x16xf32> -> vector<2x16xf32>
    %143 = vector.broadcast %39 : vector<1x16xf32> to vector<2x16xf32>
    %144 = arith.addf %142, %143 : vector<2x16xf32>
    %cst_74 = arith.constant 0.000000e+00 : f32
    %145 = vector.broadcast %cst_74 : f32 to vector<2x16xf32>
    %146 = arith.maximumf %144, %145 : vector<2x16xf32>
    %cst_75 = arith.constant dense<0.000000e+00> : vector<2x256xf32>
    %147 = tpu.matmul %146, %40, %cst_75 {dimension_numbers = #tpu.dot_dimension_numbers<[1], [0], [0], [1], [0, 0, 1, 1], [], []>} : vector<2x16xf32>, vector<16x256xf32>, vector<2x256xf32> -> vector<2x256xf32>
    %148 = vector.broadcast %41 : vector<1x256xf32> to vector<2x256xf32>
    %149 = arith.addf %147, %148 : vector<2x256xf32>
    %cst_76 = arith.constant dense<0.000000e+00> : vector<2x256xf32>
    %150 = tpu.matmul %98, %42, %cst_76 {dimension_numbers = #tpu.dot_dimension_numbers<[1], [0], [0], [1], [0, 0, 1, 1], [], []>} : vector<2x64xf32>, vector<64x256xf32>, vector<2x256xf32> -> vector<2x256xf32>
    %151 = arith.addf %149, %150 : vector<2x256xf32>
    %152 = vector.extract_strided_slice %151 {offsets = [0, 0], sizes = [2, 64], strides = [1, 1]} : vector<2x256xf32> to vector<2x64xf32>
    %153 = arith.negf %152 : vector<2x64xf32>
    %154 = math.exp %153 : vector<2x64xf32>
    %cst_77 = arith.constant 1.000000e+00 : f32
    %155 = vector.broadcast %cst_77 : f32 to vector<2x64xf32>
    %156 = arith.addf %155, %154 : vector<2x64xf32>
    %157 = arith.divf %155, %156 : vector<2x64xf32>
    %158 = vector.extract_strided_slice %151 {offsets = [0, 64], sizes = [2, 64], strides = [1, 1]} : vector<2x256xf32> to vector<2x64xf32>
    %159 = arith.negf %158 : vector<2x64xf32>
    %160 = math.exp %159 : vector<2x64xf32>
    %cst_78 = arith.constant 1.000000e+00 : f32
    %161 = vector.broadcast %cst_78 : f32 to vector<2x64xf32>
    %162 = arith.addf %161, %160 : vector<2x64xf32>
    %163 = arith.divf %161, %162 : vector<2x64xf32>
    %164 = vector.extract_strided_slice %151 {offsets = [0, 128], sizes = [2, 64], strides = [1, 1]} : vector<2x256xf32> to vector<2x64xf32>
    %165 = math.tanh %164 : vector<2x64xf32>
    %166 = vector.extract_strided_slice %151 {offsets = [0, 192], sizes = [2, 64], strides = [1, 1]} : vector<2x256xf32> to vector<2x64xf32>
    %167 = arith.negf %166 : vector<2x64xf32>
    %168 = math.exp %167 : vector<2x64xf32>
    %cst_79 = arith.constant 1.000000e+00 : f32
    %169 = vector.broadcast %cst_79 : f32 to vector<2x64xf32>
    %170 = arith.addf %169, %168 : vector<2x64xf32>
    %171 = arith.divf %169, %170 : vector<2x64xf32>
    %172 = arith.mulf %163, %96 : vector<2x64xf32>
    %173 = arith.mulf %157, %165 : vector<2x64xf32>
    %174 = arith.addf %172, %173 : vector<2x64xf32>
    %175 = math.tanh %174 : vector<2x64xf32>
    %176 = arith.mulf %171, %175 : vector<2x64xf32>
    %cst_80 = arith.constant dense<0.000000e+00> : vector<2x64xf32>
    %177 = tpu.matmul %176, %43, %cst_80 {dimension_numbers = #tpu.dot_dimension_numbers<[1], [0], [0], [1], [0, 0, 1, 1], [], []>} : vector<2x64xf32>, vector<64x64xf32>, vector<2x64xf32> -> vector<2x64xf32>
    %178 = vector.broadcast %44 : vector<1x64xf32> to vector<2x64xf32>
    %179 = arith.addf %177, %178 : vector<2x64xf32>
    %cst_81 = arith.constant 0.000000e+00 : f32
    %180 = vector.broadcast %cst_81 : f32 to vector<2x64xf32>
    %181 = arith.maximumf %179, %180 : vector<2x64xf32>
    %cst_82 = arith.constant dense<0.000000e+00> : vector<2x128xf32>
    %182 = tpu.matmul %181, %45, %cst_82 {dimension_numbers = #tpu.dot_dimension_numbers<[1], [0], [0], [1], [0, 0, 1, 1], [], []>} : vector<2x64xf32>, vector<64x128xf32>, vector<2x128xf32> -> vector<2x128xf32>
    %183 = vector.broadcast %46 : vector<1x128xf32> to vector<2x128xf32>
    %184 = arith.addf %182, %183 : vector<2x128xf32>
    %185 = tpu.iota {dimensions = array<i32: 1>} : vector<2x128xi32>
    %c0_i32_83 = arith.constant 0 : i32
    %186 = vector.broadcast %c0_i32_83 : i32 to vector<2x128xi32>
    %187 = arith.cmpi eq, %185, %186 : vector<2x128xi32>
    %188 = arith.negf %184 : vector<2x128xf32>
    %189 = math.exp %188 : vector<2x128xf32>
    %cst_84 = arith.constant 1.000000e+00 : f32
    %190 = vector.broadcast %cst_84 : f32 to vector<2x128xf32>
    %191 = arith.addf %190, %189 : vector<2x128xf32>
    %192 = arith.divf %190, %191 : vector<2x128xf32>
    %193 = arith.select %187, %192, %184 : vector<2x128xi1>, vector<2x128xf32>
    %c3_i32_85 = arith.constant 3 : i32
    %194 = vector.broadcast %c3_i32_85 : i32 to vector<2x128xi32>
    %195 = arith.cmpi eq, %185, %194 : vector<2x128xi32>
    %196 = math.tanh %184 : vector<2x128xf32>
    %cst_86 = arith.constant 3.14159274 : f32
    %197 = vector.broadcast %cst_86 : f32 to vector<2x128xf32>
    %198 = arith.mulf %196, %197 : vector<2x128xf32>
    %199 = arith.select %195, %198, %193 : vector<2x128xi1>, vector<2x128xf32>
    %c0_87 = arith.constant 0 : index
    %c1_88 = arith.constant 1 : index
    %c0_89 = arith.constant 0 : index
    %200 = vector.load %arg23[%c0_87, %c1_88, %c0_89] : memref<2x8x128xf32, #tpu.memory_space<vmem>>, vector<2x1x128xf32>
    %201 = vector.shape_cast %200 : vector<2x1x128xf32> to vector<2x128xf32>
    %202 = vector.shape_cast %199 : vector<2x128xf32> to vector<2x1x128xf32>
    tpu.vector_store %arg23[%c0_87, %c1_88, %c0_89], %202 {strides = array<i32>} : memref<2x8x128xf32, #tpu.memory_space<vmem>>, vector<2x1x128xf32>,
    %c0_90 = arith.constant 0 : index
    %c2 = arith.constant 2 : index
    %c0_91 = arith.constant 0 : index
    %203 = vector.load %arg1[%c0_90, %c2, %c0_91] : memref<2x8x2xf32, #tpu.memory_space<vmem>>, vector<2x1x2xf32>
    %204 = vector.shape_cast %203 : vector<2x1x2xf32> to vector<2x2xf32>
    %205 = vector.extract_strided_slice %204 {offsets = [0, 0], sizes = [2, 1], strides = [1, 1]} : vector<2x2xf32> to vector<2x1xf32>
    %206 = vector.extract_strided_slice %36 {offsets = [0, 0], sizes = [1, 16], strides = [1, 1]} : vector<2x16xf32> to vector<1x16xf32>
    %207 = vector.broadcast %205 : vector<2x1xf32> to vector<2x16xf32>
    %208 = vector.broadcast %206 : vector<1x16xf32> to vector<2x16xf32>
    %209 = arith.mulf %207, %208 : vector<2x16xf32>
    %210 = vector.extract_strided_slice %204 {offsets = [0, 1], sizes = [2, 1], strides = [1, 1]} : vector<2x2xf32> to vector<2x1xf32>
    %211 = vector.extract_strided_slice %36 {offsets = [1, 0], sizes = [1, 16], strides = [1, 1]} : vector<2x16xf32> to vector<1x16xf32>
    %212 = vector.broadcast %210 : vector<2x1xf32> to vector<2x16xf32>
    %213 = vector.broadcast %211 : vector<1x16xf32> to vector<2x16xf32>
    %214 = arith.mulf %212, %213 : vector<2x16xf32>
    %215 = arith.addf %209, %214 : vector<2x16xf32>
    %216 = vector.broadcast %37 : vector<1x16xf32> to vector<2x16xf32>
    %217 = arith.addf %215, %216 : vector<2x16xf32>
    %cst_92 = arith.constant 0.000000e+00 : f32
    %218 = vector.broadcast %cst_92 : f32 to vector<2x16xf32>
    %219 = arith.maximumf %217, %218 : vector<2x16xf32>
    %cst_93 = arith.constant dense<0.000000e+00> : vector<2x16xf32>
    %220 = tpu.matmul %219, %38, %cst_93 {dimension_numbers = #tpu.dot_dimension_numbers<[1], [0], [0], [1], [0, 0, 1, 1], [], []>} : vector<2x16xf32>, vector<16x16xf32>, vector<2x16xf32> -> vector<2x16xf32>
    %221 = vector.broadcast %39 : vector<1x16xf32> to vector<2x16xf32>
    %222 = arith.addf %220, %221 : vector<2x16xf32>
    %cst_94 = arith.constant 0.000000e+00 : f32
    %223 = vector.broadcast %cst_94 : f32 to vector<2x16xf32>
    %224 = arith.maximumf %222, %223 : vector<2x16xf32>
    %cst_95 = arith.constant dense<0.000000e+00> : vector<2x256xf32>
    %225 = tpu.matmul %224, %40, %cst_95 {dimension_numbers = #tpu.dot_dimension_numbers<[1], [0], [0], [1], [0, 0, 1, 1], [], []>} : vector<2x16xf32>, vector<16x256xf32>, vector<2x256xf32> -> vector<2x256xf32>
    %226 = vector.broadcast %41 : vector<1x256xf32> to vector<2x256xf32>
    %227 = arith.addf %225, %226 : vector<2x256xf32>
    %cst_96 = arith.constant dense<0.000000e+00> : vector<2x256xf32>
    %228 = tpu.matmul %176, %42, %cst_96 {dimension_numbers = #tpu.dot_dimension_numbers<[1], [0], [0], [1], [0, 0, 1, 1], [], []>} : vector<2x64xf32>, vector<64x256xf32>, vector<2x256xf32> -> vector<2x256xf32>
    %229 = arith.addf %227, %228 : vector<2x256xf32>
    %230 = vector.extract_strided_slice %229 {offsets = [0, 0], sizes = [2, 64], strides = [1, 1]} : vector<2x256xf32> to vector<2x64xf32>
    %231 = arith.negf %230 : vector<2x64xf32>
    %232 = math.exp %231 : vector<2x64xf32>
    %cst_97 = arith.constant 1.000000e+00 : f32
    %233 = vector.broadcast %cst_97 : f32 to vector<2x64xf32>
    %234 = arith.addf %233, %232 : vector<2x64xf32>
    %235 = arith.divf %233, %234 : vector<2x64xf32>
    %236 = vector.extract_strided_slice %229 {offsets = [0, 64], sizes = [2, 64], strides = [1, 1]} : vector<2x256xf32> to vector<2x64xf32>
    %237 = arith.negf %236 : vector<2x64xf32>
    %238 = math.exp %237 : vector<2x64xf32>
    %cst_98 = arith.constant 1.000000e+00 : f32
    %239 = vector.broadcast %cst_98 : f32 to vector<2x64xf32>
    %240 = arith.addf %239, %238 : vector<2x64xf32>
    %241 = arith.divf %239, %240 : vector<2x64xf32>
    %242 = vector.extract_strided_slice %229 {offsets = [0, 128], sizes = [2, 64], strides = [1, 1]} : vector<2x256xf32> to vector<2x64xf32>
    %243 = math.tanh %242 : vector<2x64xf32>
    %244 = vector.extract_strided_slice %229 {offsets = [0, 192], sizes = [2, 64], strides = [1, 1]} : vector<2x256xf32> to vector<2x64xf32>
    %245 = arith.negf %244 : vector<2x64xf32>
    %246 = math.exp %245 : vector<2x64xf32>
    %cst_99 = arith.constant 1.000000e+00 : f32
    %247 = vector.broadcast %cst_99 : f32 to vector<2x64xf32>
    %248 = arith.addf %247, %246 : vector<2x64xf32>
    %249 = arith.divf %247, %248 : vector<2x64xf32>
    %250 = arith.mulf %241, %174 : vector<2x64xf32>
    %251 = arith.mulf %235, %243 : vector<2x64xf32>
    %252 = arith.addf %250, %251 : vector<2x64xf32>
    %253 = math.tanh %252 : vector<2x64xf32>
    %254 = arith.mulf %249, %253 : vector<2x64xf32>
    %cst_100 = arith.constant dense<0.000000e+00> : vector<2x64xf32>
    %255 = tpu.matmul %254, %43, %cst_100 {dimension_numbers = #tpu.dot_dimension_numbers<[1], [0], [0], [1], [0, 0, 1, 1], [], []>} : vector<2x64xf32>, vector<64x64xf32>, vector<2x64xf32> -> vector<2x64xf32>
    %256 = vector.broadcast %44 : vector<1x64xf32> to vector<2x64xf32>
    %257 = arith.addf %255, %256 : vector<2x64xf32>
    %cst_101 = arith.constant 0.000000e+00 : f32
    %258 = vector.broadcast %cst_101 : f32 to vector<2x64xf32>
    %259 = arith.maximumf %257, %258 : vector<2x64xf32>
    %cst_102 = arith.constant dense<0.000000e+00> : vector<2x128xf32>
    %260 = tpu.matmul %259, %45, %cst_102 {dimension_numbers = #tpu.dot_dimension_numbers<[1], [0], [0], [1], [0, 0, 1, 1], [], []>} : vector<2x64xf32>, vector<64x128xf32>, vector<2x128xf32> -> vector<2x128xf32>
    %261 = vector.broadcast %46 : vector<1x128xf32> to vector<2x128xf32>
    %262 = arith.addf %260, %261 : vector<2x128xf32>
    %263 = tpu.iota {dimensions = array<i32: 1>} : vector<2x128xi32>
    %c0_i32_103 = arith.constant 0 : i32
    %264 = vector.broadcast %c0_i32_103 : i32 to vector<2x128xi32>
    %265 = arith.cmpi eq, %263, %264 : vector<2x128xi32>
    %266 = arith.negf %262 : vector<2x128xf32>
    %267 = math.exp %266 : vector<2x128xf32>
    %cst_104 = arith.constant 1.000000e+00 : f32
    %268 = vector.broadcast %cst_104 : f32 to vector<2x128xf32>
    %269 = arith.addf %268, %267 : vector<2x128xf32>
    %270 = arith.divf %268, %269 : vector<2x128xf32>
    %271 = arith.select %265, %270, %262 : vector<2x128xi1>, vector<2x128xf32>
    %c3_i32_105 = arith.constant 3 : i32
    %272 = vector.broadcast %c3_i32_105 : i32 to vector<2x128xi32>
    %273 = arith.cmpi eq, %263, %272 : vector<2x128xi32>
    %274 = math.tanh %262 : vector<2x128xf32>
    %cst_106 = arith.constant 3.14159274 : f32
    %275 = vector.broadcast %cst_106 : f32 to vector<2x128xf32>
    %276 = arith.mulf %274, %275 : vector<2x128xf32>
    %277 = arith.select %273, %276, %271 : vector<2x128xi1>, vector<2x128xf32>
    %c0_107 = arith.constant 0 : index
    %c2_108 = arith.constant 2 : index
    %c0_109 = arith.constant 0 : index
    %278 = vector.load %arg23[%c0_107, %c2_108, %c0_109] : memref<2x8x128xf32, #tpu.memory_space<vmem>>, vector<2x1x128xf32>
    %279 = vector.shape_cast %278 : vector<2x1x128xf32> to vector<2x128xf32>
    %280 = vector.shape_cast %277 : vector<2x128xf32> to vector<2x1x128xf32>
    tpu.vector_store %arg23[%c0_107, %c2_108, %c0_109], %280 {strides = array<i32>} : memref<2x8x128xf32, #tpu.memory_space<vmem>>, vector<2x1x128xf32>,
    %c0_110 = arith.constant 0 : index
    %c3 = arith.constant 3 : index
    %c0_111 = arith.constant 0 : index
    %281 = vector.load %arg1[%c0_110, %c3, %c0_111] : memref<2x8x2xf32, #tpu.memory_space<vmem>>, vector<2x1x2xf32>
    %282 = vector.shape_cast %281 : vector<2x1x2xf32> to vector<2x2xf32>
    %283 = vector.extract_strided_slice %282 {offsets = [0, 0], sizes = [2, 1], strides = [1, 1]} : vector<2x2xf32> to vector<2x1xf32>
    %284 = vector.extract_strided_slice %36 {offsets = [0, 0], sizes = [1, 16], strides = [1, 1]} : vector<2x16xf32> to vector<1x16xf32>
    %285 = vector.broadcast %283 : vector<2x1xf32> to vector<2x16xf32>
    %286 = vector.broadcast %284 : vector<1x16xf32> to vector<2x16xf32>
    %287 = arith.mulf %285, %286 : vector<2x16xf32>
    %288 = vector.extract_strided_slice %282 {offsets = [0, 1], sizes = [2, 1], strides = [1, 1]} : vector<2x2xf32> to vector<2x1xf32>
    %289 = vector.extract_strided_slice %36 {offsets = [1, 0], sizes = [1, 16], strides = [1, 1]} : vector<2x16xf32> to vector<1x16xf32>
    %290 = vector.broadcast %288 : vector<2x1xf32> to vector<2x16xf32>
    %291 = vector.broadcast %289 : vector<1x16xf32> to vector<2x16xf32>
    %292 = arith.mulf %290, %291 : vector<2x16xf32>
    %293 = arith.addf %287, %292 : vector<2x16xf32>
    %294 = vector.broadcast %37 : vector<1x16xf32> to vector<2x16xf32>
    %295 = arith.addf %293, %294 : vector<2x16xf32>
    %cst_112 = arith.constant 0.000000e+00 : f32
    %296 = vector.broadcast %cst_112 : f32 to vector<2x16xf32>
    %297 = arith.maximumf %295, %296 : vector<2x16xf32>
    %cst_113 = arith.constant dense<0.000000e+00> : vector<2x16xf32>
    %298 = tpu.matmul %297, %38, %cst_113 {dimension_numbers = #tpu.dot_dimension_numbers<[1], [0], [0], [1], [0, 0, 1, 1], [], []>} : vector<2x16xf32>, vector<16x16xf32>, vector<2x16xf32> -> vector<2x16xf32>
    %299 = vector.broadcast %39 : vector<1x16xf32> to vector<2x16xf32>
    %300 = arith.addf %298, %299 : vector<2x16xf32>
    %cst_114 = arith.constant 0.000000e+00 : f32
    %301 = vector.broadcast %cst_114 : f32 to vector<2x16xf32>
    %302 = arith.maximumf %300, %301 : vector<2x16xf32>
    %cst_115 = arith.constant dense<0.000000e+00> : vector<2x256xf32>
    %303 = tpu.matmul %302, %40, %cst_115 {dimension_numbers = #tpu.dot_dimension_numbers<[1], [0], [0], [1], [0, 0, 1, 1], [], []>} : vector<2x16xf32>, vector<16x256xf32>, vector<2x256xf32> -> vector<2x256xf32>
    %304 = vector.broadcast %41 : vector<1x256xf32> to vector<2x256xf32>
    %305 = arith.addf %303, %304 : vector<2x256xf32>
    %cst_116 = arith.constant dense<0.000000e+00> : vector<2x256xf32>
    %306 = tpu.matmul %254, %42, %cst_116 {dimension_numbers = #tpu.dot_dimension_numbers<[1], [0], [0], [1], [0, 0, 1, 1], [], []>} : vector<2x64xf32>, vector<64x256xf32>, vector<2x256xf32> -> vector<2x256xf32>
    %307 = arith.addf %305, %306 : vector<2x256xf32>
    %308 = vector.extract_strided_slice %307 {offsets = [0, 0], sizes = [2, 64], strides = [1, 1]} : vector<2x256xf32> to vector<2x64xf32>
    %309 = arith.negf %308 : vector<2x64xf32>
    %310 = math.exp %309 : vector<2x64xf32>
    %cst_117 = arith.constant 1.000000e+00 : f32
    %311 = vector.broadcast %cst_117 : f32 to vector<2x64xf32>
    %312 = arith.addf %311, %310 : vector<2x64xf32>
    %313 = arith.divf %311, %312 : vector<2x64xf32>
    %314 = vector.extract_strided_slice %307 {offsets = [0, 64], sizes = [2, 64], strides = [1, 1]} : vector<2x256xf32> to vector<2x64xf32>
    %315 = arith.negf %314 : vector<2x64xf32>
    %316 = math.exp %315 : vector<2x64xf32>
    %cst_118 = arith.constant 1.000000e+00 : f32
    %317 = vector.broadcast %cst_118 : f32 to vector<2x64xf32>
    %318 = arith.addf %317, %316 : vector<2x64xf32>
    %319 = arith.divf %317, %318 : vector<2x64xf32>
    %320 = vector.extract_strided_slice %307 {offsets = [0, 128], sizes = [2, 64], strides = [1, 1]} : vector<2x256xf32> to vector<2x64xf32>
    %321 = math.tanh %320 : vector<2x64xf32>
    %322 = vector.extract_strided_slice %307 {offsets = [0, 192], sizes = [2, 64], strides = [1, 1]} : vector<2x256xf32> to vector<2x64xf32>
    %323 = arith.negf %322 : vector<2x64xf32>
    %324 = math.exp %323 : vector<2x64xf32>
    %cst_119 = arith.constant 1.000000e+00 : f32
    %325 = vector.broadcast %cst_119 : f32 to vector<2x64xf32>
    %326 = arith.addf %325, %324 : vector<2x64xf32>
    %327 = arith.divf %325, %326 : vector<2x64xf32>
    %328 = arith.mulf %319, %252 : vector<2x64xf32>
    %329 = arith.mulf %313, %321 : vector<2x64xf32>
    %330 = arith.addf %328, %329 : vector<2x64xf32>
    %331 = math.tanh %330 : vector<2x64xf32>
    %332 = arith.mulf %327, %331 : vector<2x64xf32>
    %cst_120 = arith.constant dense<0.000000e+00> : vector<2x64xf32>
    %333 = tpu.matmul %332, %43, %cst_120 {dimension_numbers = #tpu.dot_dimension_numbers<[1], [0], [0], [1], [0, 0, 1, 1], [], []>} : vector<2x64xf32>, vector<64x64xf32>, vector<2x64xf32> -> vector<2x64xf32>
    %334 = vector.broadcast %44 : vector<1x64xf32> to vector<2x64xf32>
    %335 = arith.addf %333, %334 : vector<2x64xf32>
    %cst_121 = arith.constant 0.000000e+00 : f32
    %336 = vector.broadcast %cst_121 : f32 to vector<2x64xf32>
    %337 = arith.maximumf %335, %336 : vector<2x64xf32>
    %cst_122 = arith.constant dense<0.000000e+00> : vector<2x128xf32>
    %338 = tpu.matmul %337, %45, %cst_122 {dimension_numbers = #tpu.dot_dimension_numbers<[1], [0], [0], [1], [0, 0, 1, 1], [], []>} : vector<2x64xf32>, vector<64x128xf32>, vector<2x128xf32> -> vector<2x128xf32>
    %339 = vector.broadcast %46 : vector<1x128xf32> to vector<2x128xf32>
    %340 = arith.addf %338, %339 : vector<2x128xf32>
    %341 = tpu.iota {dimensions = array<i32: 1>} : vector<2x128xi32>
    %c0_i32_123 = arith.constant 0 : i32
    %342 = vector.broadcast %c0_i32_123 : i32 to vector<2x128xi32>
    %343 = arith.cmpi eq, %341, %342 : vector<2x128xi32>
    %344 = arith.negf %340 : vector<2x128xf32>
    %345 = math.exp %344 : vector<2x128xf32>
    %cst_124 = arith.constant 1.000000e+00 : f32
    %346 = vector.broadcast %cst_124 : f32 to vector<2x128xf32>
    %347 = arith.addf %346, %345 : vector<2x128xf32>
    %348 = arith.divf %346, %347 : vector<2x128xf32>
    %349 = arith.select %343, %348, %340 : vector<2x128xi1>, vector<2x128xf32>
    %c3_i32_125 = arith.constant 3 : i32
    %350 = vector.broadcast %c3_i32_125 : i32 to vector<2x128xi32>
    %351 = arith.cmpi eq, %341, %350 : vector<2x128xi32>
    %352 = math.tanh %340 : vector<2x128xf32>
    %cst_126 = arith.constant 3.14159274 : f32
    %353 = vector.broadcast %cst_126 : f32 to vector<2x128xf32>
    %354 = arith.mulf %352, %353 : vector<2x128xf32>
    %355 = arith.select %351, %354, %349 : vector<2x128xi1>, vector<2x128xf32>
    %c0_127 = arith.constant 0 : index
    %c3_128 = arith.constant 3 : index
    %c0_129 = arith.constant 0 : index
    %356 = vector.load %arg23[%c0_127, %c3_128, %c0_129] : memref<2x8x128xf32, #tpu.memory_space<vmem>>, vector<2x1x128xf32>
    %357 = vector.shape_cast %356 : vector<2x1x128xf32> to vector<2x128xf32>
    %358 = vector.shape_cast %355 : vector<2x128xf32> to vector<2x1x128xf32>
    tpu.vector_store %arg23[%c0_127, %c3_128, %c0_129], %358 {strides = array<i32>} : memref<2x8x128xf32, #tpu.memory_space<vmem>>, vector<2x1x128xf32>,
    %c0_130 = arith.constant 0 : index
    %c4 = arith.constant 4 : index
    %c0_131 = arith.constant 0 : index
    %359 = vector.load %arg1[%c0_130, %c4, %c0_131] : memref<2x8x2xf32, #tpu.memory_space<vmem>>, vector<2x1x2xf32>
    %360 = vector.shape_cast %359 : vector<2x1x2xf32> to vector<2x2xf32>
    %361 = vector.extract_strided_slice %360 {offsets = [0, 0], sizes = [2, 1], strides = [1, 1]} : vector<2x2xf32> to vector<2x1xf32>
    %362 = vector.extract_strided_slice %36 {offsets = [0, 0], sizes = [1, 16], strides = [1, 1]} : vector<2x16xf32> to vector<1x16xf32>
    %363 = vector.broadcast %361 : vector<2x1xf32> to vector<2x16xf32>
    %364 = vector.broadcast %362 : vector<1x16xf32> to vector<2x16xf32>
    %365 = arith.mulf %363, %364 : vector<2x16xf32>
    %366 = vector.extract_strided_slice %360 {offsets = [0, 1], sizes = [2, 1], strides = [1, 1]} : vector<2x2xf32> to vector<2x1xf32>
    %367 = vector.extract_strided_slice %36 {offsets = [1, 0], sizes = [1, 16], strides = [1, 1]} : vector<2x16xf32> to vector<1x16xf32>
    %368 = vector.broadcast %366 : vector<2x1xf32> to vector<2x16xf32>
    %369 = vector.broadcast %367 : vector<1x16xf32> to vector<2x16xf32>
    %370 = arith.mulf %368, %369 : vector<2x16xf32>
    %371 = arith.addf %365, %370 : vector<2x16xf32>
    %372 = vector.broadcast %37 : vector<1x16xf32> to vector<2x16xf32>
    %373 = arith.addf %371, %372 : vector<2x16xf32>
    %cst_132 = arith.constant 0.000000e+00 : f32
    %374 = vector.broadcast %cst_132 : f32 to vector<2x16xf32>
    %375 = arith.maximumf %373, %374 : vector<2x16xf32>
    %cst_133 = arith.constant dense<0.000000e+00> : vector<2x16xf32>
    %376 = tpu.matmul %375, %38, %cst_133 {dimension_numbers = #tpu.dot_dimension_numbers<[1], [0], [0], [1], [0, 0, 1, 1], [], []>} : vector<2x16xf32>, vector<16x16xf32>, vector<2x16xf32> -> vector<2x16xf32>
    %377 = vector.broadcast %39 : vector<1x16xf32> to vector<2x16xf32>
    %378 = arith.addf %376, %377 : vector<2x16xf32>
    %cst_134 = arith.constant 0.000000e+00 : f32
    %379 = vector.broadcast %cst_134 : f32 to vector<2x16xf32>
    %380 = arith.maximumf %378, %379 : vector<2x16xf32>
    %cst_135 = arith.constant dense<0.000000e+00> : vector<2x256xf32>
    %381 = tpu.matmul %380, %40, %cst_135 {dimension_numbers = #tpu.dot_dimension_numbers<[1], [0], [0], [1], [0, 0, 1, 1], [], []>} : vector<2x16xf32>, vector<16x256xf32>, vector<2x256xf32> -> vector<2x256xf32>
    %382 = vector.broadcast %41 : vector<1x256xf32> to vector<2x256xf32>
    %383 = arith.addf %381, %382 : vector<2x256xf32>
    %cst_136 = arith.constant dense<0.000000e+00> : vector<2x256xf32>
    %384 = tpu.matmul %332, %42, %cst_136 {dimension_numbers = #tpu.dot_dimension_numbers<[1], [0], [0], [1], [0, 0, 1, 1], [], []>} : vector<2x64xf32>, vector<64x256xf32>, vector<2x256xf32> -> vector<2x256xf32>
    %385 = arith.addf %383, %384 : vector<2x256xf32>
    %386 = vector.extract_strided_slice %385 {offsets = [0, 0], sizes = [2, 64], strides = [1, 1]} : vector<2x256xf32> to vector<2x64xf32>
    %387 = arith.negf %386 : vector<2x64xf32>
    %388 = math.exp %387 : vector<2x64xf32>
    %cst_137 = arith.constant 1.000000e+00 : f32
    %389 = vector.broadcast %cst_137 : f32 to vector<2x64xf32>
    %390 = arith.addf %389, %388 : vector<2x64xf32>
    %391 = arith.divf %389, %390 : vector<2x64xf32>
    %392 = vector.extract_strided_slice %385 {offsets = [0, 64], sizes = [2, 64], strides = [1, 1]} : vector<2x256xf32> to vector<2x64xf32>
    %393 = arith.negf %392 : vector<2x64xf32>
    %394 = math.exp %393 : vector<2x64xf32>
    %cst_138 = arith.constant 1.000000e+00 : f32
    %395 = vector.broadcast %cst_138 : f32 to vector<2x64xf32>
    %396 = arith.addf %395, %394 : vector<2x64xf32>
    %397 = arith.divf %395, %396 : vector<2x64xf32>
    %398 = vector.extract_strided_slice %385 {offsets = [0, 128], sizes = [2, 64], strides = [1, 1]} : vector<2x256xf32> to vector<2x64xf32>
    %399 = math.tanh %398 : vector<2x64xf32>
    %400 = vector.extract_strided_slice %385 {offsets = [0, 192], sizes = [2, 64], strides = [1, 1]} : vector<2x256xf32> to vector<2x64xf32>
    %401 = arith.negf %400 : vector<2x64xf32>
    %402 = math.exp %401 : vector<2x64xf32>
    %cst_139 = arith.constant 1.000000e+00 : f32
    %403 = vector.broadcast %cst_139 : f32 to vector<2x64xf32>
    %404 = arith.addf %403, %402 : vector<2x64xf32>
    %405 = arith.divf %403, %404 : vector<2x64xf32>
    %406 = arith.mulf %397, %330 : vector<2x64xf32>
    %407 = arith.mulf %391, %399 : vector<2x64xf32>
    %408 = arith.addf %406, %407 : vector<2x64xf32>
    %409 = math.tanh %408 : vector<2x64xf32>
    %410 = arith.mulf %405, %409 : vector<2x64xf32>
    %cst_140 = arith.constant dense<0.000000e+00> : vector<2x64xf32>
    %411 = tpu.matmul %410, %43, %cst_140 {dimension_numbers = #tpu.dot_dimension_numbers<[1], [0], [0], [1], [0, 0, 1, 1], [], []>} : vector<2x64xf32>, vector<64x64xf32>, vector<2x64xf32> -> vector<2x64xf32>
    %412 = vector.broadcast %44 : vector<1x64xf32> to vector<2x64xf32>
    %413 = arith.addf %411, %412 : vector<2x64xf32>
    %cst_141 = arith.constant 0.000000e+00 : f32
    %414 = vector.broadcast %cst_141 : f32 to vector<2x64xf32>
    %415 = arith.maximumf %413, %414 : vector<2x64xf32>
    %cst_142 = arith.constant dense<0.000000e+00> : vector<2x128xf32>
    %416 = tpu.matmul %415, %45, %cst_142 {dimension_numbers = #tpu.dot_dimension_numbers<[1], [0], [0], [1], [0, 0, 1, 1], [], []>} : vector<2x64xf32>, vector<64x128xf32>, vector<2x128xf32> -> vector<2x128xf32>
    %417 = vector.broadcast %46 : vector<1x128xf32> to vector<2x128xf32>
    %418 = arith.addf %416, %417 : vector<2x128xf32>
    %419 = tpu.iota {dimensions = array<i32: 1>} : vector<2x128xi32>
    %c0_i32_143 = arith.constant 0 : i32
    %420 = vector.broadcast %c0_i32_143 : i32 to vector<2x128xi32>
    %421 = arith.cmpi eq, %419, %420 : vector<2x128xi32>
    %422 = arith.negf %418 : vector<2x128xf32>
    %423 = math.exp %422 : vector<2x128xf32>
    %cst_144 = arith.constant 1.000000e+00 : f32
    %424 = vector.broadcast %cst_144 : f32 to vector<2x128xf32>
    %425 = arith.addf %424, %423 : vector<2x128xf32>
    %426 = arith.divf %424, %425 : vector<2x128xf32>
    %427 = arith.select %421, %426, %418 : vector<2x128xi1>, vector<2x128xf32>
    %c3_i32_145 = arith.constant 3 : i32
    %428 = vector.broadcast %c3_i32_145 : i32 to vector<2x128xi32>
    %429 = arith.cmpi eq, %419, %428 : vector<2x128xi32>
    %430 = math.tanh %418 : vector<2x128xf32>
    %cst_146 = arith.constant 3.14159274 : f32
    %431 = vector.broadcast %cst_146 : f32 to vector<2x128xf32>
    %432 = arith.mulf %430, %431 : vector<2x128xf32>
    %433 = arith.select %429, %432, %427 : vector<2x128xi1>, vector<2x128xf32>
    %c0_147 = arith.constant 0 : index
    %c4_148 = arith.constant 4 : index
    %c0_149 = arith.constant 0 : index
    %434 = vector.load %arg23[%c0_147, %c4_148, %c0_149] : memref<2x8x128xf32, #tpu.memory_space<vmem>>, vector<2x1x128xf32>
    %435 = vector.shape_cast %434 : vector<2x1x128xf32> to vector<2x128xf32>
    %436 = vector.shape_cast %433 : vector<2x128xf32> to vector<2x1x128xf32>
    tpu.vector_store %arg23[%c0_147, %c4_148, %c0_149], %436 {strides = array<i32>} : memref<2x8x128xf32, #tpu.memory_space<vmem>>, vector<2x1x128xf32>,
    %c0_150 = arith.constant 0 : index
    %c5 = arith.constant 5 : index
    %c0_151 = arith.constant 0 : index
    %437 = vector.load %arg1[%c0_150, %c5, %c0_151] : memref<2x8x2xf32, #tpu.memory_space<vmem>>, vector<2x1x2xf32>
    %438 = vector.shape_cast %437 : vector<2x1x2xf32> to vector<2x2xf32>
    %439 = vector.extract_strided_slice %438 {offsets = [0, 0], sizes = [2, 1], strides = [1, 1]} : vector<2x2xf32> to vector<2x1xf32>
    %440 = vector.extract_strided_slice %36 {offsets = [0, 0], sizes = [1, 16], strides = [1, 1]} : vector<2x16xf32> to vector<1x16xf32>
    %441 = vector.broadcast %439 : vector<2x1xf32> to vector<2x16xf32>
    %442 = vector.broadcast %440 : vector<1x16xf32> to vector<2x16xf32>
    %443 = arith.mulf %441, %442 : vector<2x16xf32>
    %444 = vector.extract_strided_slice %438 {offsets = [0, 1], sizes = [2, 1], strides = [1, 1]} : vector<2x2xf32> to vector<2x1xf32>
    %445 = vector.extract_strided_slice %36 {offsets = [1, 0], sizes = [1, 16], strides = [1, 1]} : vector<2x16xf32> to vector<1x16xf32>
    %446 = vector.broadcast %444 : vector<2x1xf32> to vector<2x16xf32>
    %447 = vector.broadcast %445 : vector<1x16xf32> to vector<2x16xf32>
    %448 = arith.mulf %446, %447 : vector<2x16xf32>
    %449 = arith.addf %443, %448 : vector<2x16xf32>
    %450 = vector.broadcast %37 : vector<1x16xf32> to vector<2x16xf32>
    %451 = arith.addf %449, %450 : vector<2x16xf32>
    %cst_152 = arith.constant 0.000000e+00 : f32
    %452 = vector.broadcast %cst_152 : f32 to vector<2x16xf32>
    %453 = arith.maximumf %451, %452 : vector<2x16xf32>
    %cst_153 = arith.constant dense<0.000000e+00> : vector<2x16xf32>
    %454 = tpu.matmul %453, %38, %cst_153 {dimension_numbers = #tpu.dot_dimension_numbers<[1], [0], [0], [1], [0, 0, 1, 1], [], []>} : vector<2x16xf32>, vector<16x16xf32>, vector<2x16xf32> -> vector<2x16xf32>
    %455 = vector.broadcast %39 : vector<1x16xf32> to vector<2x16xf32>
    %456 = arith.addf %454, %455 : vector<2x16xf32>
    %cst_154 = arith.constant 0.000000e+00 : f32
    %457 = vector.broadcast %cst_154 : f32 to vector<2x16xf32>
    %458 = arith.maximumf %456, %457 : vector<2x16xf32>
    %cst_155 = arith.constant dense<0.000000e+00> : vector<2x256xf32>
    %459 = tpu.matmul %458, %40, %cst_155 {dimension_numbers = #tpu.dot_dimension_numbers<[1], [0], [0], [1], [0, 0, 1, 1], [], []>} : vector<2x16xf32>, vector<16x256xf32>, vector<2x256xf32> -> vector<2x256xf32>
    %460 = vector.broadcast %41 : vector<1x256xf32> to vector<2x256xf32>
    %461 = arith.addf %459, %460 : vector<2x256xf32>
    %cst_156 = arith.constant dense<0.000000e+00> : vector<2x256xf32>
    %462 = tpu.matmul %410, %42, %cst_156 {dimension_numbers = #tpu.dot_dimension_numbers<[1], [0], [0], [1], [0, 0, 1, 1], [], []>} : vector<2x64xf32>, vector<64x256xf32>, vector<2x256xf32> -> vector<2x256xf32>
    %463 = arith.addf %461, %462 : vector<2x256xf32>
    %464 = vector.extract_strided_slice %463 {offsets = [0, 0], sizes = [2, 64], strides = [1, 1]} : vector<2x256xf32> to vector<2x64xf32>
    %465 = arith.negf %464 : vector<2x64xf32>
    %466 = math.exp %465 : vector<2x64xf32>
    %cst_157 = arith.constant 1.000000e+00 : f32
    %467 = vector.broadcast %cst_157 : f32 to vector<2x64xf32>
    %468 = arith.addf %467, %466 : vector<2x64xf32>
    %469 = arith.divf %467, %468 : vector<2x64xf32>
    %470 = vector.extract_strided_slice %463 {offsets = [0, 64], sizes = [2, 64], strides = [1, 1]} : vector<2x256xf32> to vector<2x64xf32>
    %471 = arith.negf %470 : vector<2x64xf32>
    %472 = math.exp %471 : vector<2x64xf32>
    %cst_158 = arith.constant 1.000000e+00 : f32
    %473 = vector.broadcast %cst_158 : f32 to vector<2x64xf32>
    %474 = arith.addf %473, %472 : vector<2x64xf32>
    %475 = arith.divf %473, %474 : vector<2x64xf32>
    %476 = vector.extract_strided_slice %463 {offsets = [0, 128], sizes = [2, 64], strides = [1, 1]} : vector<2x256xf32> to vector<2x64xf32>
    %477 = math.tanh %476 : vector<2x64xf32>
    %478 = vector.extract_strided_slice %463 {offsets = [0, 192], sizes = [2, 64], strides = [1, 1]} : vector<2x256xf32> to vector<2x64xf32>
    %479 = arith.negf %478 : vector<2x64xf32>
    %480 = math.exp %479 : vector<2x64xf32>
    %cst_159 = arith.constant 1.000000e+00 : f32
    %481 = vector.broadcast %cst_159 : f32 to vector<2x64xf32>
    %482 = arith.addf %481, %480 : vector<2x64xf32>
    %483 = arith.divf %481, %482 : vector<2x64xf32>
    %484 = arith.mulf %475, %408 : vector<2x64xf32>
    %485 = arith.mulf %469, %477 : vector<2x64xf32>
    %486 = arith.addf %484, %485 : vector<2x64xf32>
    %487 = math.tanh %486 : vector<2x64xf32>
    %488 = arith.mulf %483, %487 : vector<2x64xf32>
    %cst_160 = arith.constant dense<0.000000e+00> : vector<2x64xf32>
    %489 = tpu.matmul %488, %43, %cst_160 {dimension_numbers = #tpu.dot_dimension_numbers<[1], [0], [0], [1], [0, 0, 1, 1], [], []>} : vector<2x64xf32>, vector<64x64xf32>, vector<2x64xf32> -> vector<2x64xf32>
    %490 = vector.broadcast %44 : vector<1x64xf32> to vector<2x64xf32>
    %491 = arith.addf %489, %490 : vector<2x64xf32>
    %cst_161 = arith.constant 0.000000e+00 : f32
    %492 = vector.broadcast %cst_161 : f32 to vector<2x64xf32>
    %493 = arith.maximumf %491, %492 : vector<2x64xf32>
    %cst_162 = arith.constant dense<0.000000e+00> : vector<2x128xf32>
    %494 = tpu.matmul %493, %45, %cst_162 {dimension_numbers = #tpu.dot_dimension_numbers<[1], [0], [0], [1], [0, 0, 1, 1], [], []>} : vector<2x64xf32>, vector<64x128xf32>, vector<2x128xf32> -> vector<2x128xf32>
    %495 = vector.broadcast %46 : vector<1x128xf32> to vector<2x128xf32>
    %496 = arith.addf %494, %495 : vector<2x128xf32>
    %497 = tpu.iota {dimensions = array<i32: 1>} : vector<2x128xi32>
    %c0_i32_163 = arith.constant 0 : i32
    %498 = vector.broadcast %c0_i32_163 : i32 to vector<2x128xi32>
    %499 = arith.cmpi eq, %497, %498 : vector<2x128xi32>
    %500 = arith.negf %496 : vector<2x128xf32>
    %501 = math.exp %500 : vector<2x128xf32>
    %cst_164 = arith.constant 1.000000e+00 : f32
    %502 = vector.broadcast %cst_164 : f32 to vector<2x128xf32>
    %503 = arith.addf %502, %501 : vector<2x128xf32>
    %504 = arith.divf %502, %503 : vector<2x128xf32>
    %505 = arith.select %499, %504, %496 : vector<2x128xi1>, vector<2x128xf32>
    %c3_i32_165 = arith.constant 3 : i32
    %506 = vector.broadcast %c3_i32_165 : i32 to vector<2x128xi32>
    %507 = arith.cmpi eq, %497, %506 : vector<2x128xi32>
    %508 = math.tanh %496 : vector<2x128xf32>
    %cst_166 = arith.constant 3.14159274 : f32
    %509 = vector.broadcast %cst_166 : f32 to vector<2x128xf32>
    %510 = arith.mulf %508, %509 : vector<2x128xf32>
    %511 = arith.select %507, %510, %505 : vector<2x128xi1>, vector<2x128xf32>
    %c0_167 = arith.constant 0 : index
    %c5_168 = arith.constant 5 : index
    %c0_169 = arith.constant 0 : index
    %512 = vector.load %arg23[%c0_167, %c5_168, %c0_169] : memref<2x8x128xf32, #tpu.memory_space<vmem>>, vector<2x1x128xf32>
    %513 = vector.shape_cast %512 : vector<2x1x128xf32> to vector<2x128xf32>
    %514 = vector.shape_cast %511 : vector<2x128xf32> to vector<2x1x128xf32>
    tpu.vector_store %arg23[%c0_167, %c5_168, %c0_169], %514 {strides = array<i32>} : memref<2x8x128xf32, #tpu.memory_space<vmem>>, vector<2x1x128xf32>,
    %c0_170 = arith.constant 0 : index
    %c6 = arith.constant 6 : index
    %c0_171 = arith.constant 0 : index
    %515 = vector.load %arg1[%c0_170, %c6, %c0_171] : memref<2x8x2xf32, #tpu.memory_space<vmem>>, vector<2x1x2xf32>
    %516 = vector.shape_cast %515 : vector<2x1x2xf32> to vector<2x2xf32>
    %517 = vector.extract_strided_slice %516 {offsets = [0, 0], sizes = [2, 1], strides = [1, 1]} : vector<2x2xf32> to vector<2x1xf32>
    %518 = vector.extract_strided_slice %36 {offsets = [0, 0], sizes = [1, 16], strides = [1, 1]} : vector<2x16xf32> to vector<1x16xf32>
    %519 = vector.broadcast %517 : vector<2x1xf32> to vector<2x16xf32>
    %520 = vector.broadcast %518 : vector<1x16xf32> to vector<2x16xf32>
    %521 = arith.mulf %519, %520 : vector<2x16xf32>
    %522 = vector.extract_strided_slice %516 {offsets = [0, 1], sizes = [2, 1], strides = [1, 1]} : vector<2x2xf32> to vector<2x1xf32>
    %523 = vector.extract_strided_slice %36 {offsets = [1, 0], sizes = [1, 16], strides = [1, 1]} : vector<2x16xf32> to vector<1x16xf32>
    %524 = vector.broadcast %522 : vector<2x1xf32> to vector<2x16xf32>
    %525 = vector.broadcast %523 : vector<1x16xf32> to vector<2x16xf32>
    %526 = arith.mulf %524, %525 : vector<2x16xf32>
    %527 = arith.addf %521, %526 : vector<2x16xf32>
    %528 = vector.broadcast %37 : vector<1x16xf32> to vector<2x16xf32>
    %529 = arith.addf %527, %528 : vector<2x16xf32>
    %cst_172 = arith.constant 0.000000e+00 : f32
    %530 = vector.broadcast %cst_172 : f32 to vector<2x16xf32>
    %531 = arith.maximumf %529, %530 : vector<2x16xf32>
    %cst_173 = arith.constant dense<0.000000e+00> : vector<2x16xf32>
    %532 = tpu.matmul %531, %38, %cst_173 {dimension_numbers = #tpu.dot_dimension_numbers<[1], [0], [0], [1], [0, 0, 1, 1], [], []>} : vector<2x16xf32>, vector<16x16xf32>, vector<2x16xf32> -> vector<2x16xf32>
    %533 = vector.broadcast %39 : vector<1x16xf32> to vector<2x16xf32>
    %534 = arith.addf %532, %533 : vector<2x16xf32>
    %cst_174 = arith.constant 0.000000e+00 : f32
    %535 = vector.broadcast %cst_174 : f32 to vector<2x16xf32>
    %536 = arith.maximumf %534, %535 : vector<2x16xf32>
    %cst_175 = arith.constant dense<0.000000e+00> : vector<2x256xf32>
    %537 = tpu.matmul %536, %40, %cst_175 {dimension_numbers = #tpu.dot_dimension_numbers<[1], [0], [0], [1], [0, 0, 1, 1], [], []>} : vector<2x16xf32>, vector<16x256xf32>, vector<2x256xf32> -> vector<2x256xf32>
    %538 = vector.broadcast %41 : vector<1x256xf32> to vector<2x256xf32>
    %539 = arith.addf %537, %538 : vector<2x256xf32>
    %cst_176 = arith.constant dense<0.000000e+00> : vector<2x256xf32>
    %540 = tpu.matmul %488, %42, %cst_176 {dimension_numbers = #tpu.dot_dimension_numbers<[1], [0], [0], [1], [0, 0, 1, 1], [], []>} : vector<2x64xf32>, vector<64x256xf32>, vector<2x256xf32> -> vector<2x256xf32>
    %541 = arith.addf %539, %540 : vector<2x256xf32>
    %542 = vector.extract_strided_slice %541 {offsets = [0, 0], sizes = [2, 64], strides = [1, 1]} : vector<2x256xf32> to vector<2x64xf32>
    %543 = arith.negf %542 : vector<2x64xf32>
    %544 = math.exp %543 : vector<2x64xf32>
    %cst_177 = arith.constant 1.000000e+00 : f32
    %545 = vector.broadcast %cst_177 : f32 to vector<2x64xf32>
    %546 = arith.addf %545, %544 : vector<2x64xf32>
    %547 = arith.divf %545, %546 : vector<2x64xf32>
    %548 = vector.extract_strided_slice %541 {offsets = [0, 64], sizes = [2, 64], strides = [1, 1]} : vector<2x256xf32> to vector<2x64xf32>
    %549 = arith.negf %548 : vector<2x64xf32>
    %550 = math.exp %549 : vector<2x64xf32>
    %cst_178 = arith.constant 1.000000e+00 : f32
    %551 = vector.broadcast %cst_178 : f32 to vector<2x64xf32>
    %552 = arith.addf %551, %550 : vector<2x64xf32>
    %553 = arith.divf %551, %552 : vector<2x64xf32>
    %554 = vector.extract_strided_slice %541 {offsets = [0, 128], sizes = [2, 64], strides = [1, 1]} : vector<2x256xf32> to vector<2x64xf32>
    %555 = math.tanh %554 : vector<2x64xf32>
    %556 = vector.extract_strided_slice %541 {offsets = [0, 192], sizes = [2, 64], strides = [1, 1]} : vector<2x256xf32> to vector<2x64xf32>
    %557 = arith.negf %556 : vector<2x64xf32>
    %558 = math.exp %557 : vector<2x64xf32>
    %cst_179 = arith.constant 1.000000e+00 : f32
    %559 = vector.broadcast %cst_179 : f32 to vector<2x64xf32>
    %560 = arith.addf %559, %558 : vector<2x64xf32>
    %561 = arith.divf %559, %560 : vector<2x64xf32>
    %562 = arith.mulf %553, %486 : vector<2x64xf32>
    %563 = arith.mulf %547, %555 : vector<2x64xf32>
    %564 = arith.addf %562, %563 : vector<2x64xf32>
    %565 = math.tanh %564 : vector<2x64xf32>
    %566 = arith.mulf %561, %565 : vector<2x64xf32>
    %cst_180 = arith.constant dense<0.000000e+00> : vector<2x64xf32>
    %567 = tpu.matmul %566, %43, %cst_180 {dimension_numbers = #tpu.dot_dimension_numbers<[1], [0], [0], [1], [0, 0, 1, 1], [], []>} : vector<2x64xf32>, vector<64x64xf32>, vector<2x64xf32> -> vector<2x64xf32>
    %568 = vector.broadcast %44 : vector<1x64xf32> to vector<2x64xf32>
    %569 = arith.addf %567, %568 : vector<2x64xf32>
    %cst_181 = arith.constant 0.000000e+00 : f32
    %570 = vector.broadcast %cst_181 : f32 to vector<2x64xf32>
    %571 = arith.maximumf %569, %570 : vector<2x64xf32>
    %cst_182 = arith.constant dense<0.000000e+00> : vector<2x128xf32>
    %572 = tpu.matmul %571, %45, %cst_182 {dimension_numbers = #tpu.dot_dimension_numbers<[1], [0], [0], [1], [0, 0, 1, 1], [], []>} : vector<2x64xf32>, vector<64x128xf32>, vector<2x128xf32> -> vector<2x128xf32>
    %573 = vector.broadcast %46 : vector<1x128xf32> to vector<2x128xf32>
    %574 = arith.addf %572, %573 : vector<2x128xf32>
    %575 = tpu.iota {dimensions = array<i32: 1>} : vector<2x128xi32>
    %c0_i32_183 = arith.constant 0 : i32
    %576 = vector.broadcast %c0_i32_183 : i32 to vector<2x128xi32>
    %577 = arith.cmpi eq, %575, %576 : vector<2x128xi32>
    %578 = arith.negf %574 : vector<2x128xf32>
    %579 = math.exp %578 : vector<2x128xf32>
    %cst_184 = arith.constant 1.000000e+00 : f32
    %580 = vector.broadcast %cst_184 : f32 to vector<2x128xf32>
    %581 = arith.addf %580, %579 : vector<2x128xf32>
    %582 = arith.divf %580, %581 : vector<2x128xf32>
    %583 = arith.select %577, %582, %574 : vector<2x128xi1>, vector<2x128xf32>
    %c3_i32_185 = arith.constant 3 : i32
    %584 = vector.broadcast %c3_i32_185 : i32 to vector<2x128xi32>
    %585 = arith.cmpi eq, %575, %584 : vector<2x128xi32>
    %586 = math.tanh %574 : vector<2x128xf32>
    %cst_186 = arith.constant 3.14159274 : f32
    %587 = vector.broadcast %cst_186 : f32 to vector<2x128xf32>
    %588 = arith.mulf %586, %587 : vector<2x128xf32>
    %589 = arith.select %585, %588, %583 : vector<2x128xi1>, vector<2x128xf32>
    %c0_187 = arith.constant 0 : index
    %c6_188 = arith.constant 6 : index
    %c0_189 = arith.constant 0 : index
    %590 = vector.load %arg23[%c0_187, %c6_188, %c0_189] : memref<2x8x128xf32, #tpu.memory_space<vmem>>, vector<2x1x128xf32>
    %591 = vector.shape_cast %590 : vector<2x1x128xf32> to vector<2x128xf32>
    %592 = vector.shape_cast %589 : vector<2x128xf32> to vector<2x1x128xf32>
    tpu.vector_store %arg23[%c0_187, %c6_188, %c0_189], %592 {strides = array<i32>} : memref<2x8x128xf32, #tpu.memory_space<vmem>>, vector<2x1x128xf32>,
    %c0_190 = arith.constant 0 : index
    %c7 = arith.constant 7 : index
    %c0_191 = arith.constant 0 : index
    %593 = vector.load %arg1[%c0_190, %c7, %c0_191] : memref<2x8x2xf32, #tpu.memory_space<vmem>>, vector<2x1x2xf32>
    %594 = vector.shape_cast %593 : vector<2x1x2xf32> to vector<2x2xf32>
    %595 = vector.extract_strided_slice %594 {offsets = [0, 0], sizes = [2, 1], strides = [1, 1]} : vector<2x2xf32> to vector<2x1xf32>
    %596 = vector.extract_strided_slice %36 {offsets = [0, 0], sizes = [1, 16], strides = [1, 1]} : vector<2x16xf32> to vector<1x16xf32>
    %597 = vector.broadcast %595 : vector<2x1xf32> to vector<2x16xf32>
    %598 = vector.broadcast %596 : vector<1x16xf32> to vector<2x16xf32>
    %599 = arith.mulf %597, %598 : vector<2x16xf32>
    %600 = vector.extract_strided_slice %594 {offsets = [0, 1], sizes = [2, 1], strides = [1, 1]} : vector<2x2xf32> to vector<2x1xf32>
    %601 = vector.extract_strided_slice %36 {offsets = [1, 0], sizes = [1, 16], strides = [1, 1]} : vector<2x16xf32> to vector<1x16xf32>
    %602 = vector.broadcast %600 : vector<2x1xf32> to vector<2x16xf32>
    %603 = vector.broadcast %601 : vector<1x16xf32> to vector<2x16xf32>
    %604 = arith.mulf %602, %603 : vector<2x16xf32>
    %605 = arith.addf %599, %604 : vector<2x16xf32>
    %606 = vector.broadcast %37 : vector<1x16xf32> to vector<2x16xf32>
    %607 = arith.addf %605, %606 : vector<2x16xf32>
    %cst_192 = arith.constant 0.000000e+00 : f32
    %608 = vector.broadcast %cst_192 : f32 to vector<2x16xf32>
    %609 = arith.maximumf %607, %608 : vector<2x16xf32>
    %cst_193 = arith.constant dense<0.000000e+00> : vector<2x16xf32>
    %610 = tpu.matmul %609, %38, %cst_193 {dimension_numbers = #tpu.dot_dimension_numbers<[1], [0], [0], [1], [0, 0, 1, 1], [], []>} : vector<2x16xf32>, vector<16x16xf32>, vector<2x16xf32> -> vector<2x16xf32>
    %611 = vector.broadcast %39 : vector<1x16xf32> to vector<2x16xf32>
    %612 = arith.addf %610, %611 : vector<2x16xf32>
    %cst_194 = arith.constant 0.000000e+00 : f32
    %613 = vector.broadcast %cst_194 : f32 to vector<2x16xf32>
    %614 = arith.maximumf %612, %613 : vector<2x16xf32>
    %cst_195 = arith.constant dense<0.000000e+00> : vector<2x256xf32>
    %615 = tpu.matmul %614, %40, %cst_195 {dimension_numbers = #tpu.dot_dimension_numbers<[1], [0], [0], [1], [0, 0, 1, 1], [], []>} : vector<2x16xf32>, vector<16x256xf32>, vector<2x256xf32> -> vector<2x256xf32>
    %616 = vector.broadcast %41 : vector<1x256xf32> to vector<2x256xf32>
    %617 = arith.addf %615, %616 : vector<2x256xf32>
    %cst_196 = arith.constant dense<0.000000e+00> : vector<2x256xf32>
    %618 = tpu.matmul %566, %42, %cst_196 {dimension_numbers = #tpu.dot_dimension_numbers<[1], [0], [0], [1], [0, 0, 1, 1], [], []>} : vector<2x64xf32>, vector<64x256xf32>, vector<2x256xf32> -> vector<2x256xf32>
    %619 = arith.addf %617, %618 : vector<2x256xf32>
    %620 = vector.extract_strided_slice %619 {offsets = [0, 0], sizes = [2, 64], strides = [1, 1]} : vector<2x256xf32> to vector<2x64xf32>
    %621 = arith.negf %620 : vector<2x64xf32>
    %622 = math.exp %621 : vector<2x64xf32>
    %cst_197 = arith.constant 1.000000e+00 : f32
    %623 = vector.broadcast %cst_197 : f32 to vector<2x64xf32>
    %624 = arith.addf %623, %622 : vector<2x64xf32>
    %625 = arith.divf %623, %624 : vector<2x64xf32>
    %626 = vector.extract_strided_slice %619 {offsets = [0, 64], sizes = [2, 64], strides = [1, 1]} : vector<2x256xf32> to vector<2x64xf32>
    %627 = arith.negf %626 : vector<2x64xf32>
    %628 = math.exp %627 : vector<2x64xf32>
    %cst_198 = arith.constant 1.000000e+00 : f32
    %629 = vector.broadcast %cst_198 : f32 to vector<2x64xf32>
    %630 = arith.addf %629, %628 : vector<2x64xf32>
    %631 = arith.divf %629, %630 : vector<2x64xf32>
    %632 = vector.extract_strided_slice %619 {offsets = [0, 128], sizes = [2, 64], strides = [1, 1]} : vector<2x256xf32> to vector<2x64xf32>
    %633 = math.tanh %632 : vector<2x64xf32>
    %634 = vector.extract_strided_slice %619 {offsets = [0, 192], sizes = [2, 64], strides = [1, 1]} : vector<2x256xf32> to vector<2x64xf32>
    %635 = arith.negf %634 : vector<2x64xf32>
    %636 = math.exp %635 : vector<2x64xf32>
    %cst_199 = arith.constant 1.000000e+00 : f32
    %637 = vector.broadcast %cst_199 : f32 to vector<2x64xf32>
    %638 = arith.addf %637, %636 : vector<2x64xf32>
    %639 = arith.divf %637, %638 : vector<2x64xf32>
    %640 = arith.mulf %631, %564 : vector<2x64xf32>
    %641 = arith.mulf %625, %633 : vector<2x64xf32>
    %642 = arith.addf %640, %641 : vector<2x64xf32>
    %643 = math.tanh %642 : vector<2x64xf32>
    %644 = arith.mulf %639, %643 : vector<2x64xf32>
    %cst_200 = arith.constant dense<0.000000e+00> : vector<2x64xf32>
    %645 = tpu.matmul %644, %43, %cst_200 {dimension_numbers = #tpu.dot_dimension_numbers<[1], [0], [0], [1], [0, 0, 1, 1], [], []>} : vector<2x64xf32>, vector<64x64xf32>, vector<2x64xf32> -> vector<2x64xf32>
    %646 = vector.broadcast %44 : vector<1x64xf32> to vector<2x64xf32>
    %647 = arith.addf %645, %646 : vector<2x64xf32>
    %cst_201 = arith.constant 0.000000e+00 : f32
    %648 = vector.broadcast %cst_201 : f32 to vector<2x64xf32>
    %649 = arith.maximumf %647, %648 : vector<2x64xf32>
    %cst_202 = arith.constant dense<0.000000e+00> : vector<2x128xf32>
    %650 = tpu.matmul %649, %45, %cst_202 {dimension_numbers = #tpu.dot_dimension_numbers<[1], [0], [0], [1], [0, 0, 1, 1], [], []>} : vector<2x64xf32>, vector<64x128xf32>, vector<2x128xf32> -> vector<2x128xf32>
    %651 = vector.broadcast %46 : vector<1x128xf32> to vector<2x128xf32>
    %652 = arith.addf %650, %651 : vector<2x128xf32>
    %653 = tpu.iota {dimensions = array<i32: 1>} : vector<2x128xi32>
    %c0_i32_203 = arith.constant 0 : i32
    %654 = vector.broadcast %c0_i32_203 : i32 to vector<2x128xi32>
    %655 = arith.cmpi eq, %653, %654 : vector<2x128xi32>
    %656 = arith.negf %652 : vector<2x128xf32>
    %657 = math.exp %656 : vector<2x128xf32>
    %cst_204 = arith.constant 1.000000e+00 : f32
    %658 = vector.broadcast %cst_204 : f32 to vector<2x128xf32>
    %659 = arith.addf %658, %657 : vector<2x128xf32>
    %660 = arith.divf %658, %659 : vector<2x128xf32>
    %661 = arith.select %655, %660, %652 : vector<2x128xi1>, vector<2x128xf32>
    %c3_i32_205 = arith.constant 3 : i32
    %662 = vector.broadcast %c3_i32_205 : i32 to vector<2x128xi32>
    %663 = arith.cmpi eq, %653, %662 : vector<2x128xi32>
    %664 = math.tanh %652 : vector<2x128xf32>
    %cst_206 = arith.constant 3.14159274 : f32
    %665 = vector.broadcast %cst_206 : f32 to vector<2x128xf32>
    %666 = arith.mulf %664, %665 : vector<2x128xf32>
    %667 = arith.select %663, %666, %661 : vector<2x128xi1>, vector<2x128xf32>
    %c0_207 = arith.constant 0 : index
    %c7_208 = arith.constant 7 : index
    %c0_209 = arith.constant 0 : index
    %668 = vector.load %arg23[%c0_207, %c7_208, %c0_209] : memref<2x8x128xf32, #tpu.memory_space<vmem>>, vector<2x1x128xf32>
    %669 = vector.shape_cast %668 : vector<2x1x128xf32> to vector<2x128xf32>
    %670 = vector.shape_cast %667 : vector<2x128xf32> to vector<2x1x128xf32>
    tpu.vector_store %arg23[%c0_207, %c7_208, %c0_209], %670 {strides = array<i32>} : memref<2x8x128xf32, #tpu.memory_space<vmem>>, vector<2x1x128xf32>,
    return
  }
}

</mosaic_0001>

<llo_original>
// kernel: forward.1
$region0: #{forward.1}
  #allocation0 [shape = 'u32[]', space=smem, size = 0x4, offset = 0x4, fixed_abs, tag = 'smem constant byte address 0x4 - core index']
  #allocation1 [shape = 'u32[144,128]{1,0:T(1,128)}', space=vmem, size = 0x12000, scoped, tag = 'internal scratch']
  %s0 = inlined_call_operand.vmem [shape: f32[2,768], index: 0, kind: input, shape index: {}]
  %s1 = inlined_call_operand.vmem [shape: f32[2,8,2], index: 1, kind: input, shape index: {}]
  %s2 = inlined_call_operand.hbm [shape: f32[768,128], index: 2, kind: input, shape index: {}]
  %s3 = inlined_call_operand.vmem [shape: f32[1,128], index: 3, kind: input, shape index: {}]
  %s4 = inlined_call_operand.hbm [shape: f32[128,256], index: 4, kind: input, shape index: {}]
  %s5 = inlined_call_operand.vmem [shape: f32[1,256], index: 5, kind: input, shape index: {}]
  %s6 = inlined_call_operand.hbm [shape: f32[256,256], index: 6, kind: input, shape index: {}]
  %s7 = inlined_call_operand.vmem [shape: f32[1,256], index: 7, kind: input, shape index: {}]
  %s8 = inlined_call_operand.hbm [shape: f32[256,128], index: 8, kind: input, shape index: {}]
  %s9 = inlined_call_operand.vmem [shape: f32[1,128], index: 9, kind: input, shape index: {}]
  %s10 = inlined_call_operand.vmem [shape: f32[128,128], index: 10, kind: input, shape index: {}]
  %s11 = inlined_call_operand.vmem [shape: f32[1,128], index: 11, kind: input, shape index: {}]
  %s12 = inlined_call_operand.vmem [shape: f32[2,16], index: 12, kind: input, shape index: {}]
  %s13 = inlined_call_operand.vmem [shape: f32[1,16], index: 13, kind: input, shape index: {}]
  %s14 = inlined_call_operand.hbm [shape: f32[16,16], index: 14, kind: input, shape index: {}]
  %s15 = inlined_call_operand.vmem [shape: f32[1,16], index: 15, kind: input, shape index: {}]
  %s16 = inlined_call_operand.hbm [shape: f32[16,256], index: 16, kind: input, shape index: {}]
  %s17 = inlined_call_operand.vmem [shape: f32[1,256], index: 17, kind: input, shape index: {}]
  %s18 = inlined_call_operand.hbm [shape: f32[64,256], index: 18, kind: input, shape index: {}]
  %s19 = inlined_call_operand.hbm [shape: f32[64,64], index: 19, kind: input, shape index: {}]
  %s20 = inlined_call_operand.vmem [shape: f32[1,64], index: 20, kind: input, shape index: {}]
  %s21 = inlined_call_operand.hbm [shape: f32[64,128], index: 21, kind: input, shape index: {}]
  %s22 = inlined_call_operand.vmem [shape: f32[1,128], index: 22, kind: input, shape index: {}]
  %s23 = inlined_call_operand.vmem [shape: f32[2,8,128], index: 23, kind: output, shape index: {}]
  %s24 = sld [smem:[#allocation0]]
  $region138: #{forward.1} parent=0
    _
  %s26 = ssub.s32 1, %s24
  %s27 = scalar_select 0, %s26, %s24
  $region1: #{forward.1} parent=0
    #allocation2 [shape = 'u8[393216]{0}', space=vmem, size = 0x60000, scoped, tag = 'input window, operand 2, single buffered']
    #allocation3 [shape = 's32[1]{0}', space=sflag, size = 0x4, scoped, tag = 'scoped memory for forward.1']
    #allocation4 [shape = 'u8[131072]{0}', space=vmem, size = 0x20000, scoped, tag = 'input window, operand 4, single buffered']
    #allocation5 [shape = 's32[1]{0}', space=sflag, size = 0x4, scoped, tag = 'scoped memory for forward.1']
    #allocation6 [shape = 'u8[262144]{0}', space=vmem, size = 0x40000, scoped, tag = 'input window, operand 6, single buffered']
    #allocation7 [shape = 'u8[131072]{0}', space=vmem, size = 0x20000, scoped, tag = 'input window, operand 8, single buffered']
    #allocation8 [shape = 's32[1]{0}', space=sflag, size = 0x4, scoped, tag = 'scoped memory for forward.1']
    #allocation9 [shape = 'u8[8192]{0}', space=vmem, size = 0x2000, scoped, tag = 'input window, operand 14, single buffered']
    #allocation10 [shape = 'u8[16384]{0}', space=vmem, size = 0x4000, scoped, tag = 'input window, operand 16, single buffered']
    #allocation11 [shape = 's32[1]{0}', space=sflag, size = 0x4, scoped, tag = 'scoped memory for forward.1']
    #allocation12 [shape = 'u8[65536]{0}', space=vmem, size = 0x10000, scoped, tag = 'input window, operand 18, single buffered']
    #allocation13 [shape = 'u8[32768]{0}', space=vmem, size = 0x8000, scoped, tag = 'input window, operand 19, single buffered']
    #allocation14 [shape = 's32[1]{0}', space=sflag, size = 0x4, scoped, tag = 'scoped memory for forward.1']
    #allocation15 [shape = 'u8[32768]{0}', space=vmem, size = 0x8000, scoped, tag = 'input window, operand 21, single buffered']
    %28 = vsyncpa [#allocation3], 0
    %29 = vsyncpa [#allocation5], 0
    %30 = vsyncpa [#allocation8], 0
    %31 = vsyncpa [#allocation11], 0
    %32 = vsyncpa [#allocation14], 0
    // Predicated region
    $region2: #{forward.1} parent=1 // pred_check
      _
    $region3: #{forward.1} parent=1 // pred_check_branch
      %34 = sbr.rel (0) target = $region5
    $region4: #{forward.1} parent=1 // pred_region
      _
    $region5: #{forward.1} parent=1 // pred_fallthru
      _
    // Predicated region
    $region6: #{forward.1} parent=1 // pred_check
      _
    $region7: #{forward.1} parent=1 // pred_check_branch
      %36 = sbr.rel (0) target = $region9
    $region8: #{forward.1} parent=1 // pred_region
      _
    $region9: #{forward.1} parent=1 // pred_fallthru
      _
    // Predicated region
    $region10: #{forward.1} parent=1 // pred_check
      _
    $region11: #{forward.1} parent=1 // pred_check_branch
      %38 = sbr.rel (0) target = $region13
    $region12: #{forward.1} parent=1 // pred_region
      %s40 = ssub.s32 12288, 12288
      %41 = vsyncadd [#allocation3], %s40
      %s42 = sshll.u32 [#allocation2], 4
      %s43 = int_to_ptr.vmem [resolvable:$true] %s42
      %48 = dma.hbm_to_vmem [thread:$0]  %s2, 12288, %s43, [#allocation3], 128, 128, 8
    $region13: #{forward.1} parent=1 // pred_fallthru
      _
    // Predicated region
    $region14: #{forward.1} parent=1 // pred_check
      _
    $region15: #{forward.1} parent=1 // pred_check_branch
      %50 = sbr.rel (0) target = $region17
    $region16: #{forward.1} parent=1 // pred_region
      _
    $region17: #{forward.1} parent=1 // pred_fallthru
      _
    // Predicated region
    $region18: #{forward.1} parent=1 // pred_check
      _
    $region19: #{forward.1} parent=1 // pred_check_branch
      %52 = sbr.rel (0) target = $region21
    $region20: #{forward.1} parent=1 // pred_region
      %s54 = ssub.s32 4096, 4096
      %55 = vsyncadd [#allocation5], %s54
      %s56 = sshll.u32 [#allocation4], 4
      %s57 = int_to_ptr.vmem [resolvable:$true] %s56
      %62 = dma.hbm_to_vmem [thread:$0]  %s4, 4096, %s57, [#allocation5], 256, 256, 16
    $region21: #{forward.1} parent=1 // pred_fallthru
      _
    // Predicated region
    $region22: #{forward.1} parent=1 // pred_check
      _
    $region23: #{forward.1} parent=1 // pred_check_branch
      %64 = sbr.rel (0) target = $region25
    $region24: #{forward.1} parent=1 // pred_region
      _
    $region25: #{forward.1} parent=1 // pred_fallthru
      _
    // Predicated region
    $region26: #{forward.1} parent=1 // pred_check
      _
    $region27: #{forward.1} parent=1 // pred_check_branch
      %66 = sbr.rel (0) target = $region29
    $region28: #{forward.1} parent=1 // pred_region
      %s68 = ssub.s32 8192, 8192
      %69 = vsyncadd [#allocation5], %s68
      %s70 = sshll.u32 [#allocation6], 4
      %s71 = int_to_ptr.vmem [resolvable:$true] %s70
      %76 = dma.hbm_to_vmem [thread:$0]  %s6, 8192, %s71, [#allocation5], 256, 256, 16
    $region29: #{forward.1} parent=1 // pred_fallthru
      _
    // Predicated region
    $region30: #{forward.1} parent=1 // pred_check
      _
    $region31: #{forward.1} parent=1 // pred_check_branch
      %78 = sbr.rel (0) target = $region33
    $region32: #{forward.1} parent=1 // pred_region
      _
    $region33: #{forward.1} parent=1 // pred_fallthru
      _
    // Predicated region
    $region34: #{forward.1} parent=1 // pred_check
      _
    $region35: #{forward.1} parent=1 // pred_check_branch
      %80 = sbr.rel (0) target = $region37
    $region36: #{forward.1} parent=1 // pred_region
      %s82 = ssub.s32 4096, 4096
      %83 = vsyncadd [#allocation8], %s82
      %s84 = sshll.u32 [#allocation7], 4
      %s85 = int_to_ptr.vmem [resolvable:$true] %s84
      %90 = dma.hbm_to_vmem [thread:$0]  %s8, 4096, %s85, [#allocation8], 128, 128, 8
    $region37: #{forward.1} parent=1 // pred_fallthru
      _
    // Predicated region
    $region38: #{forward.1} parent=1 // pred_check
      _
    $region39: #{forward.1} parent=1 // pred_check_branch
      %92 = sbr.rel (0) target = $region41
    $region40: #{forward.1} parent=1 // pred_region
      _
    $region41: #{forward.1} parent=1 // pred_fallthru
      _
    // Predicated region
    $region42: #{forward.1} parent=1 // pred_check
      _
    $region43: #{forward.1} parent=1 // pred_check_branch
      %94 = sbr.rel (0) target = $region45
    $region44: #{forward.1} parent=1 // pred_region
      _
    $region45: #{forward.1} parent=1 // pred_fallthru
      _
    // Predicated region
    $region46: #{forward.1} parent=1 // pred_check
      _
    $region47: #{forward.1} parent=1 // pred_check_branch
      %96 = sbr.rel (0) target = $region49
    $region48: #{forward.1} parent=1 // pred_region
      _
    $region49: #{forward.1} parent=1 // pred_fallthru
      _
    // Predicated region
    $region50: #{forward.1} parent=1 // pred_check
      _
    $region51: #{forward.1} parent=1 // pred_check_branch
      %98 = sbr.rel (0) target = $region53
    $region52: #{forward.1} parent=1 // pred_region
      _
    $region53: #{forward.1} parent=1 // pred_fallthru
      _
    // Predicated region
    $region54: #{forward.1} parent=1 // pred_check
      _
    $region55: #{forward.1} parent=1 // pred_check_branch
      %100 = sbr.rel (0) target = $region57
    $region56: #{forward.1} parent=1 // pred_region
      _
    $region57: #{forward.1} parent=1 // pred_fallthru
      _
    // Predicated region
    $region58: #{forward.1} parent=1 // pred_check
      _
    $region59: #{forward.1} parent=1 // pred_check_branch
      %102 = sbr.rel (0) target = $region61
    $region60: #{forward.1} parent=1 // pred_region
      %s104 = ssub.s32 256, 256
      %105 = vsyncadd [#allocation8], %s104
      %s106 = sshll.u32 [#allocation9], 4
      %s107 = int_to_ptr.vmem [resolvable:$true] %s106
      %112 = dma.hbm_to_vmem [thread:$0]  %s14, 256, %s107, [#allocation8], 128, 128, 8
    $region61: #{forward.1} parent=1 // pred_fallthru
      _
    // Predicated region
    $region62: #{forward.1} parent=1 // pred_check
      _
    $region63: #{forward.1} parent=1 // pred_check_branch
      %114 = sbr.rel (0) target = $region65
    $region64: #{forward.1} parent=1 // pred_region
      _
    $region65: #{forward.1} parent=1 // pred_fallthru
      _
    // Predicated region
    $region66: #{forward.1} parent=1 // pred_check
      _
    $region67: #{forward.1} parent=1 // pred_check_branch
      %116 = sbr.rel (0) target = $region69
    $region68: #{forward.1} parent=1 // pred_region
      %s118 = ssub.s32 512, 512
      %119 = vsyncadd [#allocation11], %s118
      %s120 = sshll.u32 [#allocation10], 4
      %s121 = int_to_ptr.vmem [resolvable:$true] %s120
      %126 = dma.hbm_to_vmem [thread:$0]  %s16, 512, %s121, [#allocation11], 256, 256, 16
    $region69: #{forward.1} parent=1 // pred_fallthru
      _
    // Predicated region
    $region70: #{forward.1} parent=1 // pred_check
      _
    $region71: #{forward.1} parent=1 // pred_check_branch
      %128 = sbr.rel (0) target = $region73
    $region72: #{forward.1} parent=1 // pred_region
      _
    $region73: #{forward.1} parent=1 // pred_fallthru
      _
    // Predicated region
    $region74: #{forward.1} parent=1 // pred_check
      _
    $region75: #{forward.1} parent=1 // pred_check_branch
      %130 = sbr.rel (0) target = $region77
    $region76: #{forward.1} parent=1 // pred_region
      %s132 = ssub.s32 2048, 2048
      %133 = vsyncadd [#allocation11], %s132
      %s134 = sshll.u32 [#allocation12], 4
      %s135 = int_to_ptr.vmem [resolvable:$true] %s134
      %140 = dma.hbm_to_vmem [thread:$0]  %s18, 2048, %s135, [#allocation11], 256, 256, 16
    $region77: #{forward.1} parent=1 // pred_fallthru
      _
    // Predicated region
    $region78: #{forward.1} parent=1 // pred_check
      _
    $region79: #{forward.1} parent=1 // pred_check_branch
      %142 = sbr.rel (0) target = $region81
    $region80: #{forward.1} parent=1 // pred_region
      %s144 = ssub.s32 1024, 1024
      %145 = vsyncadd [#allocation14], %s144
      %s146 = sshll.u32 [#allocation13], 4
      %s147 = int_to_ptr.vmem [resolvable:$true] %s146
      %152 = dma.hbm_to_vmem [thread:$0]  %s19, 1024, %s147, [#allocation14], 128, 128, 8
    $region81: #{forward.1} parent=1 // pred_fallthru
      _
    // Predicated region
    $region82: #{forward.1} parent=1 // pred_check
      _
    $region83: #{forward.1} parent=1 // pred_check_branch
      %154 = sbr.rel (0) target = $region85
    $region84: #{forward.1} parent=1 // pred_region
      _
    $region85: #{forward.1} parent=1 // pred_fallthru
      _
    // Predicated region
    $region86: #{forward.1} parent=1 // pred_check
      _
    $region87: #{forward.1} parent=1 // pred_check_branch
      %156 = sbr.rel (0) target = $region89
    $region88: #{forward.1} parent=1 // pred_region
      %s158 = ssub.s32 1024, 1024
      %159 = vsyncadd [#allocation14], %s158
      %s160 = sshll.u32 [#allocation15], 4
      %s161 = int_to_ptr.vmem [resolvable:$true] %s160
      %166 = dma.hbm_to_vmem [thread:$0]  %s21, 1024, %s161, [#allocation14], 128, 128, 8
    $region89: #{forward.1} parent=1 // pred_fallthru
      _
    // Predicated region
    $region90: #{forward.1} parent=1 // pred_check
      _
    $region91: #{forward.1} parent=1 // pred_check_branch
      %168 = sbr.rel (0) target = $region93
    $region92: #{forward.1} parent=1 // pred_region
      _
    $region93: #{forward.1} parent=1 // pred_fallthru
      _
    // Predicated region
    $region94: #{forward.1} parent=1 // pred_check
      _
    $region95: #{forward.1} parent=1 // pred_check_branch
      %170 = sbr.rel (0) target = $region97
    $region96: #{forward.1} parent=1 // pred_region
      %171 = dma.done [#allocation3], 12288
    $region97: #{forward.1} parent=1 // pred_fallthru
      _
    // Predicated region
    $region98: #{forward.1} parent=1 // pred_check
      _
    $region99: #{forward.1} parent=1 // pred_check_branch
      %173 = sbr.rel (0) target = $region101
    $region100: #{forward.1} parent=1 // pred_region
      %174 = dma.done [#allocation5], 4096
    $region101: #{forward.1} parent=1 // pred_fallthru
      _
    // Predicated region
    $region102: #{forward.1} parent=1 // pred_check
      _
    $region103: #{forward.1} parent=1 // pred_check_branch
      %176 = sbr.rel (0) target = $region105
    $region104: #{forward.1} parent=1 // pred_region
      %177 = dma.done [#allocation5], 8192
    $region105: #{forward.1} parent=1 // pred_fallthru
      _
    // Predicated region
    $region106: #{forward.1} parent=1 // pred_check
      _
    $region107: #{forward.1} parent=1 // pred_check_branch
      %179 = sbr.rel (0) target = $region109
    $region108: #{forward.1} parent=1 // pred_region
      %180 = dma.done [#allocation8], 4096
    $region109: #{forward.1} parent=1 // pred_fallthru
      _
    // Predicated region
    $region110: #{forward.1} parent=1 // pred_check
      _
    $region111: #{forward.1} parent=1 // pred_check_branch
      %182 = sbr.rel (0) target = $region113
    $region112: #{forward.1} parent=1 // pred_region
      %183 = dma.done [#allocation8], 256
    $region113: #{forward.1} parent=1 // pred_fallthru
      _
    // Predicated region
    $region114: #{forward.1} parent=1 // pred_check
      _
    $region115: #{forward.1} parent=1 // pred_check_branch
      %185 = sbr.rel (0) target = $region117
    $region116: #{forward.1} parent=1 // pred_region
      %186 = dma.done [#allocation11], 512
    $region117: #{forward.1} parent=1 // pred_fallthru
      _
    // Predicated region
    $region118: #{forward.1} parent=1 // pred_check
      _
    $region119: #{forward.1} parent=1 // pred_check_branch
      %188 = sbr.rel (0) target = $region121
    $region120: #{forward.1} parent=1 // pred_region
      %189 = dma.done [#allocation11], 2048
    $region121: #{forward.1} parent=1 // pred_fallthru
      _
    // Predicated region
    $region122: #{forward.1} parent=1 // pred_check
      _
    $region123: #{forward.1} parent=1 // pred_check_branch
      %191 = sbr.rel (0) target = $region125
    $region124: #{forward.1} parent=1 // pred_region
      %192 = dma.done [#allocation14], 1024
    $region125: #{forward.1} parent=1 // pred_fallthru
      _
    // Predicated region
    $region126: #{forward.1} parent=1 // pred_check
      _
    $region127: #{forward.1} parent=1 // pred_check_branch
      %194 = sbr.rel (0) target = $region129
    $region128: #{forward.1} parent=1 // pred_region
      %195 = dma.done [#allocation14], 1024
    $region129: #{forward.1} parent=1 // pred_fallthru
      _
    %v196 = vld [vmem:[%s0] sm:$0xff]
    %v197 = vld [vmem:[%s0 + $0x8] sm:$0xf]
    %v198 = vld [vmem:[#allocation2] sm:$0xff]
    %v199 = vld [vmem:[#allocation2 + $0x8] sm:$0xff]
    %v200 = vld [vmem:[#allocation2 + $0x10] sm:$0xff]
    %v201 = vld [vmem:[#allocation2 + $0x18] sm:$0xff]
    %v202 = vld [vmem:[#allocation2 + $0x20] sm:$0xff]
    %v203 = vld [vmem:[#allocation2 + $0x28] sm:$0xff]
    %v204 = vld [vmem:[#allocation2 + $0x30] sm:$0xff]
    %v205 = vld [vmem:[#allocation2 + $0x38] sm:$0xff]
    %v206 = vld [vmem:[#allocation2 + $0x40] sm:$0xff]
    %v207 = vld [vmem:[#allocation2 + $0x48] sm:$0xff]
    %v208 = vld [vmem:[#allocation2 + $0x50] sm:$0xff]
    %v209 = vld [vmem:[#allocation2 + $0x58] sm:$0xff]
    %v210 = vld [vmem:[#allocation2 + $0x60] sm:$0xff]
    %v211 = vld [vmem:[#allocation2 + $0x68] sm:$0xff]
    %v212 = vld [vmem:[#allocation2 + $0x70] sm:$0xff]
    %v213 = vld [vmem:[#allocation2 + $0x78] sm:$0xff]
    %v214 = vld [vmem:[#allocation2 + $0x80] sm:$0xff]
    %v215 = vld [vmem:[#allocation2 + $0x88] sm:$0xff]
    %v216 = vld [vmem:[#allocation2 + $0x90] sm:$0xff]
    %v217 = vld [vmem:[#allocation2 + $0x98] sm:$0xff]
    %v218 = vld [vmem:[#allocation2 + $0xa0] sm:$0xff]
    %v219 = vld [vmem:[#allocation2 + $0xa8] sm:$0xff]
    %v220 = vld [vmem:[#allocation2 + $0xb0] sm:$0xff]
    %v221 = vld [vmem:[#allocation2 + $0xb8] sm:$0xff]
    %v222 = vld [vmem:[#allocation2 + $0xc0] sm:$0xff]
    %v223 = vld [vmem:[#allocation2 + $0xc8] sm:$0xff]
    %v224 = vld [vmem:[#allocation2 + $0xd0] sm:$0xff]
    %v225 = vld [vmem:[#allocation2 + $0xd8] sm:$0xff]
    %v226 = vld [vmem:[#allocation2 + $0xe0] sm:$0xff]
    %v227 = vld [vmem:[#allocation2 + $0xe8] sm:$0xff]
    %v228 = vld [vmem:[#allocation2 + $0xf0] sm:$0xff]
    %v229 = vld [vmem:[#allocation2 + $0xf8] sm:$0xff]
    %v230 = vld [vmem:[#allocation2 + $0x100] sm:$0xff]
    %v231 = vld [vmem:[#allocation2 + $0x108] sm:$0xff]
    %v232 = vld [vmem:[#allocation2 + $0x110] sm:$0xff]
    %v233 = vld [vmem:[#allocation2 + $0x118] sm:$0xff]
    %v234 = vld [vmem:[#allocation2 + $0x120] sm:$0xff]
    %v235 = vld [vmem:[#allocation2 + $0x128] sm:$0xff]
    %v236 = vld [vmem:[#allocation2 + $0x130] sm:$0xff]
    %v237 = vld [vmem:[#allocation2 + $0x138] sm:$0xff]
    %v238 = vld [vmem:[#allocation2 + $0x140] sm:$0xff]
    %v239 = vld [vmem:[#allocation2 + $0x148] sm:$0xff]
    %v240 = vld [vmem:[#allocation2 + $0x150] sm:$0xff]
    %v241 = vld [vmem:[#allocation2 + $0x158] sm:$0xff]
    %v242 = vld [vmem:[#allocation2 + $0x160] sm:$0xff]
    %v243 = vld [vmem:[#allocation2 + $0x168] sm:$0xff]
    %v244 = vld [vmem:[#allocation2 + $0x170] sm:$0xff]
    %v245 = vld [vmem:[#allocation2 + $0x178] sm:$0xff]
    %v246 = vld [vmem:[#allocation2 + $0x180] sm:$0xff]
    %v247 = vld [vmem:[#allocation2 + $0x188] sm:$0xff]
    %v248 = vld [vmem:[#allocation2 + $0x190] sm:$0xff]
    %v249 = vld [vmem:[#allocation2 + $0x198] sm:$0xff]
    %v250 = vld [vmem:[#allocation2 + $0x1a0] sm:$0xff]
    %v251 = vld [vmem:[#allocation2 + $0x1a8] sm:$0xff]
    %v252 = vld [vmem:[#allocation2 + $0x1b0] sm:$0xff]
    %v253 = vld [vmem:[#allocation2 + $0x1b8] sm:$0xff]
    %v254 = vld [vmem:[#allocation2 + $0x1c0] sm:$0xff]
    %v255 = vld [vmem:[#allocation2 + $0x1c8] sm:$0xff]
    %v256 = vld [vmem:[#allocation2 + $0x1d0] sm:$0xff]
    %v257 = vld [vmem:[#allocation2 + $0x1d8] sm:$0xff]
    %v258 = vld [vmem:[#allocation2 + $0x1e0] sm:$0xff]
    %v259 = vld [vmem:[#allocation2 + $0x1e8] sm:$0xff]
    %v260 = vld [vmem:[#allocation2 + $0x1f0] sm:$0xff]
    %v261 = vld [vmem:[#allocation2 + $0x1f8] sm:$0xff]
    %v262 = vld [vmem:[#allocation2 + $0x200] sm:$0xff]
    %v263 = vld [vmem:[#allocation2 + $0x208] sm:$0xff]
    %v264 = vld [vmem:[#allocation2 + $0x210] sm:$0xff]
    %v265 = vld [vmem:[#allocation2 + $0x218] sm:$0xff]
    %v266 = vld [vmem:[#allocation2 + $0x220] sm:$0xff]
    %v267 = vld [vmem:[#allocation2 + $0x228] sm:$0xff]
    %v268 = vld [vmem:[#allocation2 + $0x230] sm:$0xff]
    %v269 = vld [vmem:[#allocation2 + $0x238] sm:$0xff]
    %v270 = vld [vmem:[#allocation2 + $0x240] sm:$0xff]
    %v271 = vld [vmem:[#allocation2 + $0x248] sm:$0xff]
    %v272 = vld [vmem:[#allocation2 + $0x250] sm:$0xff]
    %v273 = vld [vmem:[#allocation2 + $0x258] sm:$0xff]
    %v274 = vld [vmem:[#allocation2 + $0x260] sm:$0xff]
    %v275 = vld [vmem:[#allocation2 + $0x268] sm:$0xff]
    %v276 = vld [vmem:[#allocation2 + $0x270] sm:$0xff]
    %v277 = vld [vmem:[#allocation2 + $0x278] sm:$0xff]
    %v278 = vld [vmem:[#allocation2 + $0x280] sm:$0xff]
    %v279 = vld [vmem:[#allocation2 + $0x288] sm:$0xff]
    %v280 = vld [vmem:[#allocation2 + $0x290] sm:$0xff]
    %v281 = vld [vmem:[#allocation2 + $0x298] sm:$0xff]
    %v282 = vld [vmem:[#allocation2 + $0x2a0] sm:$0xff]
    %v283 = vld [vmem:[#allocation2 + $0x2a8] sm:$0xff]
    %v284 = vld [vmem:[#allocation2 + $0x2b0] sm:$0xff]
    %v285 = vld [vmem:[#allocation2 + $0x2b8] sm:$0xff]
    %v286 = vld [vmem:[#allocation2 + $0x2c0] sm:$0xff]
    %v287 = vld [vmem:[#allocation2 + $0x2c8] sm:$0xff]
    %v288 = vld [vmem:[#allocation2 + $0x2d0] sm:$0xff]
    %v289 = vld [vmem:[#allocation2 + $0x2d8] sm:$0xff]
    %v290 = vld [vmem:[#allocation2 + $0x2e0] sm:$0xff]
    %v291 = vld [vmem:[#allocation2 + $0x2e8] sm:$0xff]
    %v292 = vld [vmem:[#allocation2 + $0x2f0] sm:$0xff]
    %v293 = vld [vmem:[#allocation2 + $0x2f8] sm:$0xff]
    %v294 = vld [vmem:[%s3] sm:$0x1]
    %v296 = vlaneseq
    %v297 = vshrl.u32 %v296, 7
    %v298 = vsub.s32 0, %v297
    %v299 = vrot.slane %v294, %v298
    %v303 = vcombine.high %v196, %v196
    %v305 = vunpack.c.l.s4 1983009808
    %v306 = vunpack.c.0.s8 %v305
    %v307 = vlaneseq
    %v308 = vshrl.u32 %v307, 7
    %v309 = vsub.s32 %v306, %v308
    %v310 = vrot.slane %v196, %v309
    %v312 = vunpack.c.l.s4 1983009808
    %v313 = vunpack.c.0.s8 %v312
    %v314 = vlaneseq
    %v315 = vshrl.u32 %v314, 7
    %v316 = vsub.s32 %v313, %v315
    %v317 = vrot.slane %v303, %v316
    %v318 = vcombine.high %v310, %v310
    %v319 = vcombine.high %v317, %v317
    %v321 = vunpack.c.l.s4 1983009808
    %v322 = vunpack.c.0.s8 %v321
    %v323 = vlaneseq
    %v324 = vshrl.u32 %v323, 7
    %v325 = vsub.s32 %v322, %v324
    %v326 = vrot.slane %v197, %v325
    %v327 = vcombine.high %v326, %v326
    %334 = vmatprep.subr.mxu0 0.0
    %335 = vmatpush1.msra.mxu0 %v213
    %336 = vmatprep.subr.mxu0 0.0
    %337 = vmatpush1.msra.mxu0 %v212
    %338 = vmatprep.subr.mxu0 0.0
    %339 = vmatpush1.msra.mxu0 %v211
    %340 = vmatprep.subr.mxu0 0.0
    %341 = vmatpush1.msra.mxu0 %v210
    %342 = vmatprep.subr.mxu0 0.0
    %343 = vmatpush1.msra.mxu0 %v209
    %344 = vmatprep.subr.mxu0 0.0
    %345 = vmatpush1.msra.mxu0 %v208
    %346 = vmatprep.subr.mxu0 0.0
    %347 = vmatpush1.msra.mxu0 %v207
    %348 = vmatprep.subr.mxu0 0.0
    %349 = vmatpush1.msra.mxu0 %v206
    %350 = vmatprep.subr.mxu0 0.0
    %351 = vmatpush1.msra.mxu0 %v205
    %352 = vmatprep.subr.mxu0 0.0
    %353 = vmatpush1.msra.mxu0 %v204
    %354 = vmatprep.subr.mxu0 0.0
    %355 = vmatpush1.msra.mxu0 %v203
    %356 = vmatprep.subr.mxu0 0.0
    %357 = vmatpush1.msra.mxu0 %v202
    %358 = vmatprep.subr.mxu0 0.0
    %359 = vmatpush1.msra.mxu0 %v201
    %360 = vmatprep.subr.mxu0 0.0
    %361 = vmatpush1.msra.mxu0 %v200
    %362 = vmatprep.subr.mxu0 0.0
    %363 = vmatpush1.msra.mxu0 %v199
    %364 = vmatprep.subr.mxu0 0.0
    %365 = vmatpush1.msra.mxu0 %v198
    %366 = vmatprep.subr.mxu0 0.0
    %367 = vmatpush2.msra.mxu0 %v229
    %368 = vmatprep.subr.mxu0 0.0
    %369 = vmatpush2.msra.mxu0 %v228
    %370 = vmatprep.subr.mxu0 0.0
    %371 = vmatpush2.msra.mxu0 %v227
    %372 = vmatprep.subr.mxu0 0.0
    %373 = vmatpush2.msra.mxu0 %v226
    %374 = vmatprep.subr.mxu0 0.0
    %375 = vmatpush2.msra.mxu0 %v225
    %376 = vmatprep.subr.mxu0 0.0
    %377 = vmatpush2.msra.mxu0 %v224
    %378 = vmatprep.subr.mxu0 0.0
    %379 = vmatpush2.msra.mxu0 %v223
    %380 = vmatprep.subr.mxu0 0.0
    %381 = vmatpush2.msra.mxu0 %v222
    %382 = vmatprep.subr.mxu0 0.0
    %383 = vmatpush2.msra.mxu0 %v221
    %384 = vmatprep.subr.mxu0 0.0
    %385 = vmatpush2.msra.mxu0 %v220
    %386 = vmatprep.subr.mxu0 0.0
    %387 = vmatpush2.msra.mxu0 %v219
    %388 = vmatprep.subr.mxu0 0.0
    %389 = vmatpush2.msra.mxu0 %v218
    %390 = vmatprep.subr.mxu0 0.0
    %391 = vmatpush2.msra.mxu0 %v217
    %392 = vmatprep.subr.mxu0 0.0
    %393 = vmatpush2.msra.mxu0 %v216
    %394 = vmatprep.subr.mxu0 0.0
    %395 = vmatpush2.msra.mxu0 %v215
    %396 = vmatprep.subr.mxu0 0.0
    %397 = vmatpush2.msra.mxu0 %v214
    %398 = vmatprep.mubr.f32.mxu0 %v318
    %399 = vmatmul.mubr.f32.gmra.mxu0 %v310
    %v400 = vpop.f32.mrf.mxu0
    %v401 = vadd.f32 %v299, %v400
    %v402 = vpop.f32.mrf.mxu0
    %403 = vdwg.mxu0
    %404 = vmatprep.subr.mxu0 0.0
    %405 = vmatpush1.msra.mxu0 %v245
    %406 = vmatprep.subr.mxu0 0.0
    %407 = vmatpush1.msra.mxu0 %v244
    %408 = vmatprep.subr.mxu0 0.0
    %409 = vmatpush1.msra.mxu0 %v243
    %410 = vmatprep.subr.mxu0 0.0
    %411 = vmatpush1.msra.mxu0 %v242
    %412 = vmatprep.subr.mxu0 0.0
    %413 = vmatpush1.msra.mxu0 %v241
    %414 = vmatprep.subr.mxu0 0.0
    %415 = vmatpush1.msra.mxu0 %v240
    %416 = vmatprep.subr.mxu0 0.0
    %417 = vmatpush1.msra.mxu0 %v239
    %418 = vmatprep.subr.mxu0 0.0
    %419 = vmatpush1.msra.mxu0 %v238
    %420 = vmatprep.subr.mxu0 0.0
    %421 = vmatpush1.msra.mxu0 %v237
    %422 = vmatprep.subr.mxu0 0.0
    %423 = vmatpush1.msra.mxu0 %v236
    %424 = vmatprep.subr.mxu0 0.0
    %425 = vmatpush1.msra.mxu0 %v235
    %426 = vmatprep.subr.mxu0 0.0
    %427 = vmatpush1.msra.mxu0 %v234
    %428 = vmatprep.subr.mxu0 0.0
    %429 = vmatpush1.msra.mxu0 %v233
    %430 = vmatprep.subr.mxu0 0.0
    %431 = vmatpush1.msra.mxu0 %v232
    %432 = vmatprep.subr.mxu0 0.0
    %433 = vmatpush1.msra.mxu0 %v231
    %434 = vmatprep.subr.mxu0 0.0
    %435 = vmatpush1.msra.mxu0 %v230
    %436 = vmatprep.subr.mxu0 0.0
    %437 = vmatpush2.msra.mxu0 %v261
    %438 = vmatprep.subr.mxu0 0.0
    %439 = vmatpush2.msra.mxu0 %v260
    %440 = vmatprep.subr.mxu0 0.0
    %441 = vmatpush2.msra.mxu0 %v259
    %442 = vmatprep.subr.mxu0 0.0
    %443 = vmatpush2.msra.mxu0 %v258
    %444 = vmatprep.subr.mxu0 0.0
    %445 = vmatpush2.msra.mxu0 %v257
    %446 = vmatprep.subr.mxu0 0.0
    %447 = vmatpush2.msra.mxu0 %v256
    %448 = vmatprep.subr.mxu0 0.0
    %449 = vmatpush2.msra.mxu0 %v255
    %450 = vmatprep.subr.mxu0 0.0
    %451 = vmatpush2.msra.mxu0 %v254
    %452 = vmatprep.subr.mxu0 0.0
    %453 = vmatpush2.msra.mxu0 %v253
    %454 = vmatprep.subr.mxu0 0.0
    %455 = vmatpush2.msra.mxu0 %v252
    %456 = vmatprep.subr.mxu0 0.0
    %457 = vmatpush2.msra.mxu0 %v251
    %458 = vmatprep.subr.mxu0 0.0
    %459 = vmatpush2.msra.mxu0 %v250
    %460 = vmatprep.subr.mxu0 0.0
    %461 = vmatpush2.msra.mxu0 %v249
    %462 = vmatprep.subr.mxu0 0.0
    %463 = vmatpush2.msra.mxu0 %v248
    %464 = vmatprep.subr.mxu0 0.0
    %465 = vmatpush2.msra.mxu0 %v247
    %466 = vmatprep.subr.mxu0 0.0
    %467 = vmatpush2.msra.mxu0 %v246
    %468 = vmatprep.mubr.f32.mxu0 %v319
    %469 = vmatmul.mubr.f32.gmra.mxu0 %v317
    %v470 = vpop.f32.mrf.mxu0
    %v471 = vadd.f32 %v401, %v470
    %v472 = vpop.f32.mrf.mxu0
    %473 = vdwg.mxu0
    %474 = vmatprep.subr.mxu0 0.0
    %475 = vmatpush1.msra.mxu0 %v277
    %476 = vmatprep.subr.mxu0 0.0
    %477 = vmatpush1.msra.mxu0 %v276
    %478 = vmatprep.subr.mxu0 0.0
    %479 = vmatpush1.msra.mxu0 %v275
    %480 = vmatprep.subr.mxu0 0.0
    %481 = vmatpush1.msra.mxu0 %v274
    %482 = vmatprep.subr.mxu0 0.0
    %483 = vmatpush1.msra.mxu0 %v273
    %484 = vmatprep.subr.mxu0 0.0
    %485 = vmatpush1.msra.mxu0 %v272
    %486 = vmatprep.subr.mxu0 0.0
    %487 = vmatpush1.msra.mxu0 %v271
    %488 = vmatprep.subr.mxu0 0.0
    %489 = vmatpush1.msra.mxu0 %v270
    %490 = vmatprep.subr.mxu0 0.0
    %491 = vmatpush1.msra.mxu0 %v269
    %492 = vmatprep.subr.mxu0 0.0
    %493 = vmatpush1.msra.mxu0 %v268
    %494 = vmatprep.subr.mxu0 0.0
    %495 = vmatpush1.msra.mxu0 %v267
    %496 = vmatprep.subr.mxu0 0.0
    %497 = vmatpush1.msra.mxu0 %v266
    %498 = vmatprep.subr.mxu0 0.0
    %499 = vmatpush1.msra.mxu0 %v265
    %500 = vmatprep.subr.mxu0 0.0
    %501 = vmatpush1.msra.mxu0 %v264
    %502 = vmatprep.subr.mxu0 0.0
    %503 = vmatpush1.msra.mxu0 %v263
    %504 = vmatprep.subr.mxu0 0.0
    %505 = vmatpush1.msra.mxu0 %v262
    %506 = vmatprep.subr.mxu0 0.0
    %507 = vmatpush2.msra.mxu0 %v293
    %508 = vmatprep.subr.mxu0 0.0
    %509 = vmatpush2.msra.mxu0 %v292
    %510 = vmatprep.subr.mxu0 0.0
    %511 = vmatpush2.msra.mxu0 %v291
    %512 = vmatprep.subr.mxu0 0.0
    %513 = vmatpush2.msra.mxu0 %v290
    %514 = vmatprep.subr.mxu0 0.0
    %515 = vmatpush2.msra.mxu0 %v289
    %516 = vmatprep.subr.mxu0 0.0
    %517 = vmatpush2.msra.mxu0 %v288
    %518 = vmatprep.subr.mxu0 0.0
    %519 = vmatpush2.msra.mxu0 %v287
    %520 = vmatprep.subr.mxu0 0.0
    %521 = vmatpush2.msra.mxu0 %v286
    %522 = vmatprep.subr.mxu0 0.0
    %523 = vmatpush2.msra.mxu0 %v285
    %524 = vmatprep.subr.mxu0 0.0
    %525 = vmatpush2.msra.mxu0 %v284
    %526 = vmatprep.subr.mxu0 0.0
    %527 = vmatpush2.msra.mxu0 %v283
    %528 = vmatprep.subr.mxu0 0.0
    %529 = vmatpush2.msra.mxu0 %v282
    %530 = vmatprep.subr.mxu0 0.0
    %531 = vmatpush2.msra.mxu0 %v281
    %532 = vmatprep.subr.mxu0 0.0
    %533 = vmatpush2.msra.mxu0 %v280
    %534 = vmatprep.subr.mxu0 0.0
    %535 = vmatpush2.msra.mxu0 %v279
    %536 = vmatprep.subr.mxu0 0.0
    %537 = vmatpush2.msra.mxu0 %v278
    %538 = vmatprep.mubr.f32.mxu0 %v327
    %539 = vmatmul.mubr.f32.gmra.mxu0 %v326
    %v540 = vpop.f32.mrf.mxu0
    %v541 = vadd.f32 %v471, %v540
    %v542 = vpop.f32.mrf.mxu0
    %543 = vdwg.mxu0
    %v544 = vmax.f32 %v541, 0.0
    %v545 = vld [vmem:[#allocation4] sm:$0xff]
    %v546 = vld [vmem:[#allocation4 + $0x8] sm:$0xff]
    %v547 = vld [vmem:[#allocation4 + $0x10] sm:$0xff]
    %v548 = vld [vmem:[#allocation4 + $0x18] sm:$0xff]
    %v549 = vld [vmem:[#allocation4 + $0x20] sm:$0xff]
    %v550 = vld [vmem:[#allocation4 + $0x28] sm:$0xff]
    %v551 = vld [vmem:[#allocation4 + $0x30] sm:$0xff]
    %v552 = vld [vmem:[#allocation4 + $0x38] sm:$0xff]
    %v553 = vld [vmem:[#allocation4 + $0x40] sm:$0xff]
    %v554 = vld [vmem:[#allocation4 + $0x48] sm:$0xff]
    %v555 = vld [vmem:[#allocation4 + $0x50] sm:$0xff]
    %v556 = vld [vmem:[#allocation4 + $0x58] sm:$0xff]
    %v557 = vld [vmem:[#allocation4 + $0x60] sm:$0xff]
    %v558 = vld [vmem:[#allocation4 + $0x68] sm:$0xff]
    %v559 = vld [vmem:[#allocation4 + $0x70] sm:$0xff]
    %v560 = vld [vmem:[#allocation4 + $0x78] sm:$0xff]
    %v561 = vld [vmem:[#allocation4 + $0x80] sm:$0xff]
    %v562 = vld [vmem:[#allocation4 + $0x88] sm:$0xff]
    %v563 = vld [vmem:[#allocation4 + $0x90] sm:$0xff]
    %v564 = vld [vmem:[#allocation4 + $0x98] sm:$0xff]
    %v565 = vld [vmem:[#allocation4 + $0xa0] sm:$0xff]
    %v566 = vld [vmem:[#allocation4 + $0xa8] sm:$0xff]
    %v567 = vld [vmem:[#allocation4 + $0xb0] sm:$0xff]
    %v568 = vld [vmem:[#allocation4 + $0xb8] sm:$0xff]
    %v569 = vld [vmem:[#allocation4 + $0xc0] sm:$0xff]
    %v570 = vld [vmem:[#allocation4 + $0xc8] sm:$0xff]
    %v571 = vld [vmem:[#allocation4 + $0xd0] sm:$0xff]
    %v572 = vld [vmem:[#allocation4 + $0xd8] sm:$0xff]
    %v573 = vld [vmem:[#allocation4 + $0xe0] sm:$0xff]
    %v574 = vld [vmem:[#allocation4 + $0xe8] sm:$0xff]
    %v575 = vld [vmem:[#allocation4 + $0xf0] sm:$0xff]
    %v576 = vld [vmem:[#allocation4 + $0xf8] sm:$0xff]
    %v577 = vld [vmem:[%s5] sm:$0x3]
    %v579 = vlaneseq
    %v580 = vshrl.u32 %v579, 7
    %v581 = vsub.s32 0, %v580
    %v582 = vrot.slane %v577, %v581
    %v583 = vlaneseq
    %v584 = vshrl.u32 %v583, 7
    %v585 = vsub.s32 1, %v584
    %v586 = vrot.slane %v577, %v585
    %589 = vmatprep.subr.mxu0 %v576
    %590 = vmatpush1.msra.mxu0 %v575
    %591 = vmatprep.subr.mxu0 %v574
    %592 = vmatpush1.msra.mxu0 %v573
    %593 = vmatprep.subr.mxu0 %v572
    %594 = vmatpush1.msra.mxu0 %v571
    %595 = vmatprep.subr.mxu0 %v570
    %596 = vmatpush1.msra.mxu0 %v569
    %597 = vmatprep.subr.mxu0 %v568
    %598 = vmatpush1.msra.mxu0 %v567
    %599 = vmatprep.subr.mxu0 %v566
    %600 = vmatpush1.msra.mxu0 %v565
    %601 = vmatprep.subr.mxu0 %v564
    %602 = vmatpush1.msra.mxu0 %v563
    %603 = vmatprep.subr.mxu0 %v562
    %604 = vmatpush1.msra.mxu0 %v561
    %605 = vmatprep.subr.mxu0 %v560
    %606 = vmatpush1.msra.mxu0 %v559
    %607 = vmatprep.subr.mxu0 %v558
    %608 = vmatpush1.msra.mxu0 %v557
    %609 = vmatprep.subr.mxu0 %v556
    %610 = vmatpush1.msra.mxu0 %v555
    %611 = vmatprep.subr.mxu0 %v554
    %612 = vmatpush1.msra.mxu0 %v553
    %613 = vmatprep.subr.mxu0 %v552
    %614 = vmatpush1.msra.mxu0 %v551
    %615 = vmatprep.subr.mxu0 %v550
    %616 = vmatpush1.msra.mxu0 %v549
    %617 = vmatprep.subr.mxu0 %v548
    %618 = vmatpush1.msra.mxu0 %v547
    %619 = vmatprep.subr.mxu0 %v546
    %620 = vmatpush1.msra.mxu0 %v545
    %621 = vmatprep.subr.mxu0 0.0
    %622 = vmatpush2.msra.mxu0 0.0
    %623 = vmatprep.subr.mxu0 0.0
    %624 = vmatpush2.msra.mxu0 0.0
    %625 = vmatprep.subr.mxu0 0.0
    %626 = vmatpush2.msra.mxu0 0.0
    %627 = vmatprep.subr.mxu0 0.0
    %628 = vmatpush2.msra.mxu0 0.0
    %629 = vmatprep.subr.mxu0 0.0
    %630 = vmatpush2.msra.mxu0 0.0
    %631 = vmatprep.subr.mxu0 0.0
    %632 = vmatpush2.msra.mxu0 0.0
    %633 = vmatprep.subr.mxu0 0.0
    %634 = vmatpush2.msra.mxu0 0.0
    %635 = vmatprep.subr.mxu0 0.0
    %636 = vmatpush2.msra.mxu0 0.0
    %637 = vmatprep.subr.mxu0 0.0
    %638 = vmatpush2.msra.mxu0 0.0
    %639 = vmatprep.subr.mxu0 0.0
    %640 = vmatpush2.msra.mxu0 0.0
    %641 = vmatprep.subr.mxu0 0.0
    %642 = vmatpush2.msra.mxu0 0.0
    %643 = vmatprep.subr.mxu0 0.0
    %644 = vmatpush2.msra.mxu0 0.0
    %645 = vmatprep.subr.mxu0 0.0
    %646 = vmatpush2.msra.mxu0 0.0
    %647 = vmatprep.subr.mxu0 0.0
    %648 = vmatpush2.msra.mxu0 0.0
    %649 = vmatprep.subr.mxu0 0.0
    %650 = vmatpush2.msra.mxu0 0.0
    %651 = vmatprep.subr.mxu0 0.0
    %652 = vmatpush2.msra.mxu0 0.0
    %653 = vmatprep.mubr.f32.mxu0 0.0
    %654 = vmatmul.mubr.f32.gmra.mxu0 %v544
    %v655 = vpop.f32.mrf.mxu0
    %v656 = vadd.f32 %v582, %v655
    %v657 = vpop.f32.mrf.mxu0
    %v658 = vadd.f32 %v586, %v657
    %659 = vdwg.mxu0
    %v660 = vmax.f32 %v656, 0.0
    %v661 = vmax.f32 %v658, 0.0
    %v662 = vld [vmem:[#allocation6] sm:$0xff]
    %v663 = vld [vmem:[#allocation6 + $0x8] sm:$0xff]
    %v664 = vld [vmem:[#allocation6 + $0x10] sm:$0xff]
    %v665 = vld [vmem:[#allocation6 + $0x18] sm:$0xff]
    %v666 = vld [vmem:[#allocation6 + $0x20] sm:$0xff]
    %v667 = vld [vmem:[#allocation6 + $0x28] sm:$0xff]
    %v668 = vld [vmem:[#allocation6 + $0x30] sm:$0xff]
    %v669 = vld [vmem:[#allocation6 + $0x38] sm:$0xff]
    %v670 = vld [vmem:[#allocation6 + $0x40] sm:$0xff]
    %v671 = vld [vmem:[#allocation6 + $0x48] sm:$0xff]
    %v672 = vld [vmem:[#allocation6 + $0x50] sm:$0xff]
    %v673 = vld [vmem:[#allocation6 + $0x58] sm:$0xff]
    %v674 = vld [vmem:[#allocation6 + $0x60] sm:$0xff]
    %v675 = vld [vmem:[#allocation6 + $0x68] sm:$0xff]
    %v676 = vld [vmem:[#allocation6 + $0x70] sm:$0xff]
    %v677 = vld [vmem:[#allocation6 + $0x78] sm:$0xff]
    %v678 = vld [vmem:[#allocation6 + $0x80] sm:$0xff]
    %v679 = vld [vmem:[#allocation6 + $0x88] sm:$0xff]
    %v680 = vld [vmem:[#allocation6 + $0x90] sm:$0xff]
    %v681 = vld [vmem:[#allocation6 + $0x98] sm:$0xff]
    %v682 = vld [vmem:[#allocation6 + $0xa0] sm:$0xff]
    %v683 = vld [vmem:[#allocation6 + $0xa8] sm:$0xff]
    %v684 = vld [vmem:[#allocation6 + $0xb0] sm:$0xff]
    %v685 = vld [vmem:[#allocation6 + $0xb8] sm:$0xff]
    %v686 = vld [vmem:[#allocation6 + $0xc0] sm:$0xff]
    %v687 = vld [vmem:[#allocation6 + $0xc8] sm:$0xff]
    %v688 = vld [vmem:[#allocation6 + $0xd0] sm:$0xff]
    %v689 = vld [vmem:[#allocation6 + $0xd8] sm:$0xff]
    %v690 = vld [vmem:[#allocation6 + $0xe0] sm:$0xff]
    %v691 = vld [vmem:[#allocation6 + $0xe8] sm:$0xff]
    %v692 = vld [vmem:[#allocation6 + $0xf0] sm:$0xff]
    %v693 = vld [vmem:[#allocation6 + $0xf8] sm:$0xff]
    %v694 = vld [vmem:[#allocation6 + $0x100] sm:$0xff]
    %v695 = vld [vmem:[#allocation6 + $0x108] sm:$0xff]
    %v696 = vld [vmem:[#allocation6 + $0x110] sm:$0xff]
    %v697 = vld [vmem:[#allocation6 + $0x118] sm:$0xff]
    %v698 = vld [vmem:[#allocation6 + $0x120] sm:$0xff]
    %v699 = vld [vmem:[#allocation6 + $0x128] sm:$0xff]
    %v700 = vld [vmem:[#allocation6 + $0x130] sm:$0xff]
    %v701 = vld [vmem:[#allocation6 + $0x138] sm:$0xff]
    %v702 = vld [vmem:[#allocation6 + $0x140] sm:$0xff]
    %v703 = vld [vmem:[#allocation6 + $0x148] sm:$0xff]
    %v704 = vld [vmem:[#allocation6 + $0x150] sm:$0xff]
    %v705 = vld [vmem:[#allocation6 + $0x158] sm:$0xff]
    %v706 = vld [vmem:[#allocation6 + $0x160] sm:$0xff]
    %v707 = vld [vmem:[#allocation6 + $0x168] sm:$0xff]
    %v708 = vld [vmem:[#allocation6 + $0x170] sm:$0xff]
    %v709 = vld [vmem:[#allocation6 + $0x178] sm:$0xff]
    %v710 = vld [vmem:[#allocation6 + $0x180] sm:$0xff]
    %v711 = vld [vmem:[#allocation6 + $0x188] sm:$0xff]
    %v712 = vld [vmem:[#allocation6 + $0x190] sm:$0xff]
    %v713 = vld [vmem:[#allocation6 + $0x198] sm:$0xff]
    %v714 = vld [vmem:[#allocation6 + $0x1a0] sm:$0xff]
    %v715 = vld [vmem:[#allocation6 + $0x1a8] sm:$0xff]
    %v716 = vld [vmem:[#allocation6 + $0x1b0] sm:$0xff]
    %v717 = vld [vmem:[#allocation6 + $0x1b8] sm:$0xff]
    %v718 = vld [vmem:[#allocation6 + $0x1c0] sm:$0xff]
    %v719 = vld [vmem:[#allocation6 + $0x1c8] sm:$0xff]
    %v720 = vld [vmem:[#allocation6 + $0x1d0] sm:$0xff]
    %v721 = vld [vmem:[#allocation6 + $0x1d8] sm:$0xff]
    %v722 = vld [vmem:[#allocation6 + $0x1e0] sm:$0xff]
    %v723 = vld [vmem:[#allocation6 + $0x1e8] sm:$0xff]
    %v724 = vld [vmem:[#allocation6 + $0x1f0] sm:$0xff]
    %v725 = vld [vmem:[#allocation6 + $0x1f8] sm:$0xff]
    %v726 = vld [vmem:[%s7] sm:$0x3]
    %v728 = vlaneseq
    %v729 = vshrl.u32 %v728, 7
    %v730 = vsub.s32 0, %v729
    %v731 = vrot.slane %v726, %v730
    %v732 = vlaneseq
    %v733 = vshrl.u32 %v732, 7
    %v734 = vsub.s32 1, %v733
    %v735 = vrot.slane %v726, %v734
    %738 = vmatprep.subr.mxu0 %v693
    %739 = vmatpush1.msra.mxu0 %v692
    %740 = vmatprep.subr.mxu0 %v691
    %741 = vmatpush1.msra.mxu0 %v690
    %742 = vmatprep.subr.mxu0 %v689
    %743 = vmatpush1.msra.mxu0 %v688
    %744 = vmatprep.subr.mxu0 %v687
    %745 = vmatpush1.msra.mxu0 %v686
    %746 = vmatprep.subr.mxu0 %v685
    %747 = vmatpush1.msra.mxu0 %v684
    %748 = vmatprep.subr.mxu0 %v683
    %749 = vmatpush1.msra.mxu0 %v682
    %750 = vmatprep.subr.mxu0 %v681
    %751 = vmatpush1.msra.mxu0 %v680
    %752 = vmatprep.subr.mxu0 %v679
    %753 = vmatpush1.msra.mxu0 %v678
    %754 = vmatprep.subr.mxu0 %v677
    %755 = vmatpush1.msra.mxu0 %v676
    %756 = vmatprep.subr.mxu0 %v675
    %757 = vmatpush1.msra.mxu0 %v674
    %758 = vmatprep.subr.mxu0 %v673
    %759 = vmatpush1.msra.mxu0 %v672
    %760 = vmatprep.subr.mxu0 %v671
    %761 = vmatpush1.msra.mxu0 %v670
    %762 = vmatprep.subr.mxu0 %v669
    %763 = vmatpush1.msra.mxu0 %v668
    %764 = vmatprep.subr.mxu0 %v667
    %765 = vmatpush1.msra.mxu0 %v666
    %766 = vmatprep.subr.mxu0 %v665
    %767 = vmatpush1.msra.mxu0 %v664
    %768 = vmatprep.subr.mxu0 %v663
    %769 = vmatpush1.msra.mxu0 %v662
    %770 = vmatprep.subr.mxu0 %v725
    %771 = vmatpush2.msra.mxu0 %v724
    %772 = vmatprep.subr.mxu0 %v723
    %773 = vmatpush2.msra.mxu0 %v722
    %774 = vmatprep.subr.mxu0 %v721
    %775 = vmatpush2.msra.mxu0 %v720
    %776 = vmatprep.subr.mxu0 %v719
    %777 = vmatpush2.msra.mxu0 %v718
    %778 = vmatprep.subr.mxu0 %v717
    %779 = vmatpush2.msra.mxu0 %v716
    %780 = vmatprep.subr.mxu0 %v715
    %781 = vmatpush2.msra.mxu0 %v714
    %782 = vmatprep.subr.mxu0 %v713
    %783 = vmatpush2.msra.mxu0 %v712
    %784 = vmatprep.subr.mxu0 %v711
    %785 = vmatpush2.msra.mxu0 %v710
    %786 = vmatprep.subr.mxu0 %v709
    %787 = vmatpush2.msra.mxu0 %v708
    %788 = vmatprep.subr.mxu0 %v707
    %789 = vmatpush2.msra.mxu0 %v706
    %790 = vmatprep.subr.mxu0 %v705
    %791 = vmatpush2.msra.mxu0 %v704
    %792 = vmatprep.subr.mxu0 %v703
    %793 = vmatpush2.msra.mxu0 %v702
    %794 = vmatprep.subr.mxu0 %v701
    %795 = vmatpush2.msra.mxu0 %v700
    %796 = vmatprep.subr.mxu0 %v699
    %797 = vmatpush2.msra.mxu0 %v698
    %798 = vmatprep.subr.mxu0 %v697
    %799 = vmatpush2.msra.mxu0 %v696
    %800 = vmatprep.subr.mxu0 %v695
    %801 = vmatpush2.msra.mxu0 %v694
    %802 = vmatprep.mubr.f32.mxu0 %v661
    %803 = vmatmul.mubr.f32.gmra.mxu0 %v660
    %v804 = vpop.f32.mrf.mxu0
    %v805 = vadd.f32 %v731, %v804
    %v806 = vpop.f32.mrf.mxu0
    %v807 = vadd.f32 %v735, %v806
    %808 = vdwg.mxu0
    %v809 = vmax.f32 %v805, 0.0
    %v810 = vmax.f32 %v807, 0.0
    %v811 = vld [vmem:[#allocation7] sm:$0xff]
    %v812 = vld [vmem:[#allocation7 + $0x8] sm:$0xff]
    %v813 = vld [vmem:[#allocation7 + $0x10] sm:$0xff]
    %v814 = vld [vmem:[#allocation7 + $0x18] sm:$0xff]
    %v815 = vld [vmem:[#allocation7 + $0x20] sm:$0xff]
    %v816 = vld [vmem:[#allocation7 + $0x28] sm:$0xff]
    %v817 = vld [vmem:[#allocation7 + $0x30] sm:$0xff]
    %v818 = vld [vmem:[#allocation7 + $0x38] sm:$0xff]
    %v819 = vld [vmem:[#allocation7 + $0x40] sm:$0xff]
    %v820 = vld [vmem:[#allocation7 + $0x48] sm:$0xff]
    %v821 = vld [vmem:[#allocation7 + $0x50] sm:$0xff]
    %v822 = vld [vmem:[#allocation7 + $0x58] sm:$0xff]
    %v823 = vld [vmem:[#allocation7 + $0x60] sm:$0xff]
    %v824 = vld [vmem:[#allocation7 + $0x68] sm:$0xff]
    %v825 = vld [vmem:[#allocation7 + $0x70] sm:$0xff]
    %v826 = vld [vmem:[#allocation7 + $0x78] sm:$0xff]
    %v827 = vld [vmem:[#allocation7 + $0x80] sm:$0xff]
    %v828 = vld [vmem:[#allocation7 + $0x88] sm:$0xff]
    %v829 = vld [vmem:[#allocation7 + $0x90] sm:$0xff]
    %v830 = vld [vmem:[#allocation7 + $0x98] sm:$0xff]
    %v831 = vld [vmem:[#allocation7 + $0xa0] sm:$0xff]
    %v832 = vld [vmem:[#allocation7 + $0xa8] sm:$0xff]
    %v833 = vld [vmem:[#allocation7 + $0xb0] sm:$0xff]
    %v834 = vld [vmem:[#allocation7 + $0xb8] sm:$0xff]
    %v835 = vld [vmem:[#allocation7 + $0xc0] sm:$0xff]
    %v836 = vld [vmem:[#allocation7 + $0xc8] sm:$0xff]
    %v837 = vld [vmem:[#allocation7 + $0xd0] sm:$0xff]
    %v838 = vld [vmem:[#allocation7 + $0xd8] sm:$0xff]
    %v839 = vld [vmem:[#allocation7 + $0xe0] sm:$0xff]
    %v840 = vld [vmem:[#allocation7 + $0xe8] sm:$0xff]
    %v841 = vld [vmem:[#allocation7 + $0xf0] sm:$0xff]
    %v842 = vld [vmem:[#allocation7 + $0xf8] sm:$0xff]
    %v843 = vld [vmem:[%s9] sm:$0x1]
    %v845 = vlaneseq
    %v846 = vshrl.u32 %v845, 7
    %v847 = vsub.s32 0, %v846
    %v848 = vrot.slane %v843, %v847
    %850 = vmatprep.subr.mxu0 0.0
    %851 = vmatpush1.msra.mxu0 %v826
    %852 = vmatprep.subr.mxu0 0.0
    %853 = vmatpush1.msra.mxu0 %v825
    %854 = vmatprep.subr.mxu0 0.0
    %855 = vmatpush1.msra.mxu0 %v824
    %856 = vmatprep.subr.mxu0 0.0
    %857 = vmatpush1.msra.mxu0 %v823
    %858 = vmatprep.subr.mxu0 0.0
    %859 = vmatpush1.msra.mxu0 %v822
    %860 = vmatprep.subr.mxu0 0.0
    %861 = vmatpush1.msra.mxu0 %v821
    %862 = vmatprep.subr.mxu0 0.0
    %863 = vmatpush1.msra.mxu0 %v820
    %864 = vmatprep.subr.mxu0 0.0
    %865 = vmatpush1.msra.mxu0 %v819
    %866 = vmatprep.subr.mxu0 0.0
    %867 = vmatpush1.msra.mxu0 %v818
    %868 = vmatprep.subr.mxu0 0.0
    %869 = vmatpush1.msra.mxu0 %v817
    %870 = vmatprep.subr.mxu0 0.0
    %871 = vmatpush1.msra.mxu0 %v816
    %872 = vmatprep.subr.mxu0 0.0
    %873 = vmatpush1.msra.mxu0 %v815
    %874 = vmatprep.subr.mxu0 0.0
    %875 = vmatpush1.msra.mxu0 %v814
    %876 = vmatprep.subr.mxu0 0.0
    %877 = vmatpush1.msra.mxu0 %v813
    %878 = vmatprep.subr.mxu0 0.0
    %879 = vmatpush1.msra.mxu0 %v812
    %880 = vmatprep.subr.mxu0 0.0
    %881 = vmatpush1.msra.mxu0 %v811
    %882 = vmatprep.subr.mxu0 0.0
    %883 = vmatpush2.msra.mxu0 %v842
    %884 = vmatprep.subr.mxu0 0.0
    %885 = vmatpush2.msra.mxu0 %v841
    %886 = vmatprep.subr.mxu0 0.0
    %887 = vmatpush2.msra.mxu0 %v840
    %888 = vmatprep.subr.mxu0 0.0
    %889 = vmatpush2.msra.mxu0 %v839
    %890 = vmatprep.subr.mxu0 0.0
    %891 = vmatpush2.msra.mxu0 %v838
    %892 = vmatprep.subr.mxu0 0.0
    %893 = vmatpush2.msra.mxu0 %v837
    %894 = vmatprep.subr.mxu0 0.0
    %895 = vmatpush2.msra.mxu0 %v836
    %896 = vmatprep.subr.mxu0 0.0
    %897 = vmatpush2.msra.mxu0 %v835
    %898 = vmatprep.subr.mxu0 0.0
    %899 = vmatpush2.msra.mxu0 %v834
    %900 = vmatprep.subr.mxu0 0.0
    %901 = vmatpush2.msra.mxu0 %v833
    %902 = vmatprep.subr.mxu0 0.0
    %903 = vmatpush2.msra.mxu0 %v832
    %904 = vmatprep.subr.mxu0 0.0
    %905 = vmatpush2.msra.mxu0 %v831
    %906 = vmatprep.subr.mxu0 0.0
    %907 = vmatpush2.msra.mxu0 %v830
    %908 = vmatprep.subr.mxu0 0.0
    %909 = vmatpush2.msra.mxu0 %v829
    %910 = vmatprep.subr.mxu0 0.0
    %911 = vmatpush2.msra.mxu0 %v828
    %912 = vmatprep.subr.mxu0 0.0
    %913 = vmatpush2.msra.mxu0 %v827
    %914 = vmatprep.mubr.f32.mxu0 %v810
    %915 = vmatmul.mubr.f32.gmra.mxu0 %v809
    %v916 = vpop.f32.mrf.mxu0
    %v917 = vadd.f32 %v848, %v916
    %v918 = vpop.f32.mrf.mxu0
    %919 = vdwg.mxu0
    %v920 = vmax.f32 %v917, 0.0
    %v921 = vld [vmem:[%s10] sm:$0xff]
    %v922 = vld [vmem:[%s10 + $0x8] sm:$0xff]
    %v923 = vld [vmem:[%s10 + $0x10] sm:$0xff]
    %v924 = vld [vmem:[%s10 + $0x18] sm:$0xff]
    %v925 = vld [vmem:[%s10 + $0x20] sm:$0xff]
    %v926 = vld [vmem:[%s10 + $0x28] sm:$0xff]
    %v927 = vld [vmem:[%s10 + $0x30] sm:$0xff]
    %v928 = vld [vmem:[%s10 + $0x38] sm:$0xff]
    %v929 = vld [vmem:[%s10 + $0x40] sm:$0xff]
    %v930 = vld [vmem:[%s10 + $0x48] sm:$0xff]
    %v931 = vld [vmem:[%s10 + $0x50] sm:$0xff]
    %v932 = vld [vmem:[%s10 + $0x58] sm:$0xff]
    %v933 = vld [vmem:[%s10 + $0x60] sm:$0xff]
    %v934 = vld [vmem:[%s10 + $0x68] sm:$0xff]
    %v935 = vld [vmem:[%s10 + $0x70] sm:$0xff]
    %v936 = vld [vmem:[%s10 + $0x78] sm:$0xff]
    %v937 = vld [vmem:[%s11] sm:$0x1]
    %v939 = vlaneseq
    %v940 = vshrl.u32 %v939, 7
    %v941 = vsub.s32 0, %v940
    %v942 = vrot.slane %v937, %v941
    %944 = vmatprep.subr.mxu0 0.0
    %945 = vmatpush1.msra.mxu0 %v936
    %946 = vmatprep.subr.mxu0 0.0
    %947 = vmatpush1.msra.mxu0 %v935
    %948 = vmatprep.subr.mxu0 0.0
    %949 = vmatpush1.msra.mxu0 %v934
    %950 = vmatprep.subr.mxu0 0.0
    %951 = vmatpush1.msra.mxu0 %v933
    %952 = vmatprep.subr.mxu0 0.0
    %953 = vmatpush1.msra.mxu0 %v932
    %954 = vmatprep.subr.mxu0 0.0
    %955 = vmatpush1.msra.mxu0 %v931
    %956 = vmatprep.subr.mxu0 0.0
    %957 = vmatpush1.msra.mxu0 %v930
    %958 = vmatprep.subr.mxu0 0.0
    %959 = vmatpush1.msra.mxu0 %v929
    %960 = vmatprep.subr.mxu0 0.0
    %961 = vmatpush1.msra.mxu0 %v928
    %962 = vmatprep.subr.mxu0 0.0
    %963 = vmatpush1.msra.mxu0 %v927
    %964 = vmatprep.subr.mxu0 0.0
    %965 = vmatpush1.msra.mxu0 %v926
    %966 = vmatprep.subr.mxu0 0.0
    %967 = vmatpush1.msra.mxu0 %v925
    %968 = vmatprep.subr.mxu0 0.0
    %969 = vmatpush1.msra.mxu0 %v924
    %970 = vmatprep.subr.mxu0 0.0
    %971 = vmatpush1.msra.mxu0 %v923
    %972 = vmatprep.subr.mxu0 0.0
    %973 = vmatpush1.msra.mxu0 %v922
    %974 = vmatprep.subr.mxu0 0.0
    %975 = vmatpush1.msra.mxu0 %v921
    %976 = vmatprep.subr.mxu0 0.0
    %977 = vmatpush2.msra.mxu0 0.0
    %978 = vmatprep.subr.mxu0 0.0
    %979 = vmatpush2.msra.mxu0 0.0
    %980 = vmatprep.subr.mxu0 0.0
    %981 = vmatpush2.msra.mxu0 0.0
    %982 = vmatprep.subr.mxu0 0.0
    %983 = vmatpush2.msra.mxu0 0.0
    %984 = vmatprep.subr.mxu0 0.0
    %985 = vmatpush2.msra.mxu0 0.0
    %986 = vmatprep.subr.mxu0 0.0
    %987 = vmatpush2.msra.mxu0 0.0
    %988 = vmatprep.subr.mxu0 0.0
    %989 = vmatpush2.msra.mxu0 0.0
    %990 = vmatprep.subr.mxu0 0.0
    %991 = vmatpush2.msra.mxu0 0.0
    %992 = vmatprep.subr.mxu0 0.0
    %993 = vmatpush2.msra.mxu0 0.0
    %994 = vmatprep.subr.mxu0 0.0
    %995 = vmatpush2.msra.mxu0 0.0
    %996 = vmatprep.subr.mxu0 0.0
    %997 = vmatpush2.msra.mxu0 0.0
    %998 = vmatprep.subr.mxu0 0.0
    %999 = vmatpush2.msra.mxu0 0.0
    %1000 = vmatprep.subr.mxu0 0.0
    %1001 = vmatpush2.msra.mxu0 0.0
    %1002 = vmatprep.subr.mxu0 0.0
    %1003 = vmatpush2.msra.mxu0 0.0
    %1004 = vmatprep.subr.mxu0 0.0
    %1005 = vmatpush2.msra.mxu0 0.0
    %1006 = vmatprep.subr.mxu0 0.0
    %1007 = vmatpush2.msra.mxu0 0.0
    %1008 = vmatprep.mubr.f32.mxu0 0.0
    %1009 = vmatmul.mubr.f32.gmra.mxu0 %v920
    %v1010 = vpop.f32.mrf.mxu0
    %v1011 = vadd.f32 %v942, %v1010
    %v1012 = vpop.f32.mrf.mxu0
    %1013 = vdwg.mxu0
    %v1014 = vld [vmem:[%s12] sm:$0x3]
    %v1015 = vld [vmem:[%s13] sm:$0x1]
    %v1016 = vld [vmem:[#allocation9] sm:$0xff]
    %v1017 = vld [vmem:[#allocation9 + $0x8] sm:$0xff]
    %v1018 = vld [vmem:[%s15] sm:$0x1]
    %v1019 = vld [vmem:[#allocation10] sm:$0xff]
    %v1020 = vld [vmem:[#allocation10 + $0x8] sm:$0xff]
    %v1021 = vld [vmem:[#allocation10 + $0x10] sm:$0xff]
    %v1022 = vld [vmem:[#allocation10 + $0x18] sm:$0xff]
    %v1023 = vld [vmem:[%s17] sm:$0x3]
    %v1024 = vld [vmem:[#allocation12] sm:$0xff]
    %v1025 = vld [vmem:[#allocation12 + $0x8] sm:$0xff]
    %v1026 = vld [vmem:[#allocation12 + $0x10] sm:$0xff]
    %v1027 = vld [vmem:[#allocation12 + $0x18] sm:$0xff]
    %v1028 = vld [vmem:[#allocation12 + $0x20] sm:$0xff]
    %v1029 = vld [vmem:[#allocation12 + $0x28] sm:$0xff]
    %v1030 = vld [vmem:[#allocation12 + $0x30] sm:$0xff]
    %v1031 = vld [vmem:[#allocation12 + $0x38] sm:$0xff]
    %v1032 = vld [vmem:[#allocation12 + $0x40] sm:$0xff]
    %v1033 = vld [vmem:[#allocation12 + $0x48] sm:$0xff]
    %v1034 = vld [vmem:[#allocation12 + $0x50] sm:$0xff]
    %v1035 = vld [vmem:[#allocation12 + $0x58] sm:$0xff]
    %v1036 = vld [vmem:[#allocation12 + $0x60] sm:$0xff]
    %v1037 = vld [vmem:[#allocation12 + $0x68] sm:$0xff]
    %v1038 = vld [vmem:[#allocation12 + $0x70] sm:$0xff]
    %v1039 = vld [vmem:[#allocation12 + $0x78] sm:$0xff]
    %v1040 = vld [vmem:[#allocation13] sm:$0xff]
    %v1041 = vld [vmem:[#allocation13 + $0x8] sm:$0xff]
    %v1042 = vld [vmem:[#allocation13 + $0x10] sm:$0xff]
    %v1043 = vld [vmem:[#allocation13 + $0x18] sm:$0xff]
    %v1044 = vld [vmem:[#allocation13 + $0x20] sm:$0xff]
    %v1045 = vld [vmem:[#allocation13 + $0x28] sm:$0xff]
    %v1046 = vld [vmem:[#allocation13 + $0x30] sm:$0xff]
    %v1047 = vld [vmem:[#allocation13 + $0x38] sm:$0xff]
    %v1048 = vld [vmem:[%s20] sm:$0x1]
    %v1049 = vld [vmem:[#allocation15] sm:$0xff]
    %v1050 = vld [vmem:[#allocation15 + $0x8] sm:$0xff]
    %v1051 = vld [vmem:[#allocation15 + $0x10] sm:$0xff]
    %v1052 = vld [vmem:[#allocation15 + $0x18] sm:$0xff]
    %v1053 = vld [vmem:[#allocation15 + $0x20] sm:$0xff]
    %v1054 = vld [vmem:[#allocation15 + $0x28] sm:$0xff]
    %v1055 = vld [vmem:[#allocation15 + $0x30] sm:$0xff]
    %v1056 = vld [vmem:[#allocation15 + $0x38] sm:$0xff]
    %v1057 = vld [vmem:[%s22] sm:$0x1]
    %v1058 = vld [vmem:[%s1] sm:$0x1]
    %v1059 = vld [vmem:[%s1 + $0x8] sm:$0x1]
    %1061 = vset.pattern.permute.xlu0 0
    %1062 = vperm.xlu0 %1061, %v1058
    %v1063 = vpop.permute.xlu0 %1062
    %1066 = vset.pattern.permute.xlu0 0
    %1067 = vperm.xlu0 %1066, %v1059
    %v1068 = vpop.permute.xlu0 %1067
    %v1070 = vlaneseq
    %v1071 = vshrl.u32 %v1070, 7
    %v1072 = vsub.s32 0, %v1071
    %v1073 = vrot.slane %v1014, %v1072
    %v1074 = vmul.f32 %v1063, %v1073
    %v1075 = vmul.f32 %v1068, %v1073
    %1076 = vset.pattern.permute.xlu0 1
    %1077 = vperm.xlu0 %1076, %v1058
    %v1078 = vpop.permute.xlu0 %1077
    %1080 = vset.pattern.permute.xlu0 1
    %1081 = vperm.xlu0 %1080, %v1059
    %v1082 = vpop.permute.xlu0 %1081
    %v1084 = vlaneseq
    %v1085 = vshrl.u32 %v1084, 7
    %v1086 = vsub.s32 1, %v1085
    %v1087 = vrot.slane %v1014, %v1086
    %v1088 = vmul.f32 %v1078, %v1087
    %v1089 = vmul.f32 %v1082, %v1087
    %v1090 = vadd.f32 %v1074, %v1088
    %v1091 = vadd.f32 %v1075, %v1089
    %v1093 = vlaneseq
    %v1094 = vshrl.u32 %v1093, 7
    %v1095 = vsub.s32 0, %v1094
    %v1096 = vrot.slane %v1015, %v1095
    %v1098 = vadd.f32 %v1090, %v1096
    %v1099 = vadd.f32 %v1091, %v1096
    %v1100 = vmax.f32 %v1098, 0.0
    %v1101 = vmax.f32 %v1099, 0.0
    %v1103 = vlaneseq
    %v1104 = vshrl.u32 %v1103, 7
    %v1105 = vsub.s32 0, %v1104
    %v1106 = vrot.slane %v1018, %v1105
    %v1110 = vrot.slane %v1101, 7
    %vm1111 = vcmask 1041409
    %v1112 = vsel %vm1111, %v1110, %v1100
    %vm1113 = vcmask 130048
    %v1114 = vsel %vm1113, %v1112, 0
    %1116 = vmatprep.subr.mxu0 0.0
    %1117 = vmatpush1.msra.mxu0 0.0
    %1118 = vmatprep.subr.mxu0 0.0
    %1119 = vmatpush1.msra.mxu0 0.0
    %1120 = vmatprep.subr.mxu0 0.0
    %1121 = vmatpush1.msra.mxu0 0.0
    %1122 = vmatprep.subr.mxu0 0.0
    %1123 = vmatpush1.msra.mxu0 0.0
    %1124 = vmatprep.subr.mxu0 0.0
    %1125 = vmatpush1.msra.mxu0 0.0
    %1126 = vmatprep.subr.mxu0 0.0
    %1127 = vmatpush1.msra.mxu0 0.0
    %1128 = vmatprep.subr.mxu0 0.0
    %1129 = vmatpush1.msra.mxu0 0.0
    %1130 = vmatprep.subr.mxu0 0.0
    %1131 = vmatpush1.msra.mxu0 0.0
    %1132 = vmatprep.subr.mxu0 0.0
    %1133 = vmatpush1.msra.mxu0 0.0
    %1134 = vmatprep.subr.mxu0 0.0
    %1135 = vmatpush1.msra.mxu0 0.0
    %1136 = vmatprep.subr.mxu0 0.0
    %1137 = vmatpush1.msra.mxu0 0.0
    %1138 = vmatprep.subr.mxu0 0.0
    %1139 = vmatpush1.msra.mxu0 0.0
    %1140 = vmatprep.subr.mxu0 0.0
    %1141 = vmatpush1.msra.mxu0 0.0
    %1142 = vmatprep.subr.mxu0 0.0
    %1143 = vmatpush1.msra.mxu0 0.0
    %1144 = vmatprep.subr.mxu0 0.0
    %1145 = vmatpush1.msra.mxu0 %v1017
    %1146 = vmatprep.subr.mxu0 0.0
    %1147 = vmatpush1.msra.mxu0 %v1016
    %1148 = vmatprep.subr.mxu0 0.0
    %1149 = vmatpush2.msra.mxu0 0.0
    %1150 = vmatprep.subr.mxu0 0.0
    %1151 = vmatpush2.msra.mxu0 0.0
    %1152 = vmatprep.subr.mxu0 0.0
    %1153 = vmatpush2.msra.mxu0 0.0
    %1154 = vmatprep.subr.mxu0 0.0
    %1155 = vmatpush2.msra.mxu0 0.0
    %1156 = vmatprep.subr.mxu0 0.0
    %1157 = vmatpush2.msra.mxu0 0.0
    %1158 = vmatprep.subr.mxu0 0.0
    %1159 = vmatpush2.msra.mxu0 0.0
    %1160 = vmatprep.subr.mxu0 0.0
    %1161 = vmatpush2.msra.mxu0 0.0
    %1162 = vmatprep.subr.mxu0 0.0
    %1163 = vmatpush2.msra.mxu0 0.0
    %1164 = vmatprep.subr.mxu0 0.0
    %1165 = vmatpush2.msra.mxu0 0.0
    %1166 = vmatprep.subr.mxu0 0.0
    %1167 = vmatpush2.msra.mxu0 0.0
    %1168 = vmatprep.subr.mxu0 0.0
    %1169 = vmatpush2.msra.mxu0 0.0
    %1170 = vmatprep.subr.mxu0 0.0
    %1171 = vmatpush2.msra.mxu0 0.0
    %1172 = vmatprep.subr.mxu0 0.0
    %1173 = vmatpush2.msra.mxu0 0.0
    %1174 = vmatprep.subr.mxu0 0.0
    %1175 = vmatpush2.msra.mxu0 0.0
    %1176 = vmatprep.subr.mxu0 0.0
    %1177 = vmatpush2.msra.mxu0 0.0
    %1178 = vmatprep.subr.mxu0 0.0
    %1179 = vmatpush2.msra.mxu0 0.0
    %1180 = vmatprep.mubr.f32.mxu0 0.0
    %1181 = vmatmul.mubr.f32.gmra.mxu0 %v1114
    %v1182 = vpop.f32.mrf.mxu0
    %v1183 = vadd.f32 %v1106, %v1182
    %v1184 = vpop.f32.mrf.mxu0
    %1185 = vdwg.mxu0
    %v1186 = vmax.f32 %v1183, 0.0
    %v1188 = vlaneseq
    %v1189 = vshrl.u32 %v1188, 7
    %v1190 = vsub.s32 0, %v1189
    %v1191 = vrot.slane %v1023, %v1190
    %v1192 = vlaneseq
    %v1193 = vshrl.u32 %v1192, 7
    %v1194 = vsub.s32 1, %v1193
    %v1195 = vrot.slane %v1023, %v1194
    %v1199 = vsel %vm1113, %v1186, 0
    %1201 = vmatprep.subr.mxu0 0.0
    %1202 = vmatpush1.msra.mxu0 0.0
    %1203 = vmatprep.subr.mxu0 0.0
    %1204 = vmatpush1.msra.mxu0 0.0
    %1205 = vmatprep.subr.mxu0 0.0
    %1206 = vmatpush1.msra.mxu0 0.0
    %1207 = vmatprep.subr.mxu0 0.0
    %1208 = vmatpush1.msra.mxu0 0.0
    %1209 = vmatprep.subr.mxu0 0.0
    %1210 = vmatpush1.msra.mxu0 0.0
    %1211 = vmatprep.subr.mxu0 0.0
    %1212 = vmatpush1.msra.mxu0 0.0
    %1213 = vmatprep.subr.mxu0 0.0
    %1214 = vmatpush1.msra.mxu0 0.0
    %1215 = vmatprep.subr.mxu0 0.0
    %1216 = vmatpush1.msra.mxu0 0.0
    %1217 = vmatprep.subr.mxu0 0.0
    %1218 = vmatpush1.msra.mxu0 0.0
    %1219 = vmatprep.subr.mxu0 0.0
    %1220 = vmatpush1.msra.mxu0 0.0
    %1221 = vmatprep.subr.mxu0 0.0
    %1222 = vmatpush1.msra.mxu0 0.0
    %1223 = vmatprep.subr.mxu0 0.0
    %1224 = vmatpush1.msra.mxu0 0.0
    %1225 = vmatprep.subr.mxu0 0.0
    %1226 = vmatpush1.msra.mxu0 0.0
    %1227 = vmatprep.subr.mxu0 0.0
    %1228 = vmatpush1.msra.mxu0 0.0
    %1229 = vmatprep.subr.mxu0 %v1022
    %1230 = vmatpush1.msra.mxu0 %v1021
    %1231 = vmatprep.subr.mxu0 %v1020
    %1232 = vmatpush1.msra.mxu0 %v1019
    %1233 = vmatprep.subr.mxu0 0.0
    %1234 = vmatpush2.msra.mxu0 0.0
    %1235 = vmatprep.subr.mxu0 0.0
    %1236 = vmatpush2.msra.mxu0 0.0
    %1237 = vmatprep.subr.mxu0 0.0
    %1238 = vmatpush2.msra.mxu0 0.0
    %1239 = vmatprep.subr.mxu0 0.0
    %1240 = vmatpush2.msra.mxu0 0.0
    %1241 = vmatprep.subr.mxu0 0.0
    %1242 = vmatpush2.msra.mxu0 0.0
    %1243 = vmatprep.subr.mxu0 0.0
    %1244 = vmatpush2.msra.mxu0 0.0
    %1245 = vmatprep.subr.mxu0 0.0
    %1246 = vmatpush2.msra.mxu0 0.0
    %1247 = vmatprep.subr.mxu0 0.0
    %1248 = vmatpush2.msra.mxu0 0.0
    %1249 = vmatprep.subr.mxu0 0.0
    %1250 = vmatpush2.msra.mxu0 0.0
    %1251 = vmatprep.subr.mxu0 0.0
    %1252 = vmatpush2.msra.mxu0 0.0
    %1253 = vmatprep.subr.mxu0 0.0
    %1254 = vmatpush2.msra.mxu0 0.0
    %1255 = vmatprep.subr.mxu0 0.0
    %1256 = vmatpush2.msra.mxu0 0.0
    %1257 = vmatprep.subr.mxu0 0.0
    %1258 = vmatpush2.msra.mxu0 0.0
    %1259 = vmatprep.subr.mxu0 0.0
    %1260 = vmatpush2.msra.mxu0 0.0
    %1261 = vmatprep.subr.mxu0 0.0
    %1262 = vmatpush2.msra.mxu0 0.0
    %1263 = vmatprep.subr.mxu0 0.0
    %1264 = vmatpush2.msra.mxu0 0.0
    %1265 = vmatprep.mubr.f32.mxu0 0.0
    %1266 = vmatmul.mubr.f32.gmra.mxu0 %v1199
    %v1267 = vpop.f32.mrf.mxu0
    %v1268 = vadd.f32 %v1191, %v1267
    %v1269 = vpop.f32.mrf.mxu0
    %v1270 = vadd.f32 %v1195, %v1269
    %1271 = vdwg.mxu0
    %vm1272 = vcmask 523264
    %v1274 = vsel %vm1272, %v1011, 0
    %1276 = vmatprep.subr.mxu0 0.0
    %1277 = vmatpush1.msra.mxu0 0.0
    %1278 = vmatprep.subr.mxu0 0.0
    %1279 = vmatpush1.msra.mxu0 0.0
    %1280 = vmatprep.subr.mxu0 0.0
    %1281 = vmatpush1.msra.mxu0 0.0
    %1282 = vmatprep.subr.mxu0 0.0
    %1283 = vmatpush1.msra.mxu0 0.0
    %1284 = vmatprep.subr.mxu0 0.0
    %1285 = vmatpush1.msra.mxu0 0.0
    %1286 = vmatprep.subr.mxu0 0.0
    %1287 = vmatpush1.msra.mxu0 0.0
    %1288 = vmatprep.subr.mxu0 0.0
    %1289 = vmatpush1.msra.mxu0 0.0
    %1290 = vmatprep.subr.mxu0 0.0
    %1291 = vmatpush1.msra.mxu0 0.0
    %1292 = vmatprep.subr.mxu0 %v1039
    %1293 = vmatpush1.msra.mxu0 %v1038
    %1294 = vmatprep.subr.mxu0 %v1037
    %1295 = vmatpush1.msra.mxu0 %v1036
    %1296 = vmatprep.subr.mxu0 %v1035
    %1297 = vmatpush1.msra.mxu0 %v1034
    %1298 = vmatprep.subr.mxu0 %v1033
    %1299 = vmatpush1.msra.mxu0 %v1032
    %1300 = vmatprep.subr.mxu0 %v1031
    %1301 = vmatpush1.msra.mxu0 %v1030
    %1302 = vmatprep.subr.mxu0 %v1029
    %1303 = vmatpush1.msra.mxu0 %v1028
    %1304 = vmatprep.subr.mxu0 %v1027
    %1305 = vmatpush1.msra.mxu0 %v1026
    %1306 = vmatprep.subr.mxu0 %v1025
    %1307 = vmatpush1.msra.mxu0 %v1024
    %1308 = vmatprep.subr.mxu0 0.0
    %1309 = vmatpush2.msra.mxu0 0.0
    %1310 = vmatprep.subr.mxu0 0.0
    %1311 = vmatpush2.msra.mxu0 0.0
    %1312 = vmatprep.subr.mxu0 0.0
    %1313 = vmatpush2.msra.mxu0 0.0
    %1314 = vmatprep.subr.mxu0 0.0
    %1315 = vmatpush2.msra.mxu0 0.0
    %1316 = vmatprep.subr.mxu0 0.0
    %1317 = vmatpush2.msra.mxu0 0.0
    %1318 = vmatprep.subr.mxu0 0.0
    %1319 = vmatpush2.msra.mxu0 0.0
    %1320 = vmatprep.subr.mxu0 0.0
    %1321 = vmatpush2.msra.mxu0 0.0
    %1322 = vmatprep.subr.mxu0 0.0
    %1323 = vmatpush2.msra.mxu0 0.0
    %1324 = vmatprep.subr.mxu0 0.0
    %1325 = vmatpush2.msra.mxu0 0.0
    %1326 = vmatprep.subr.mxu0 0.0
    %1327 = vmatpush2.msra.mxu0 0.0
    %1328 = vmatprep.subr.mxu0 0.0
    %1329 = vmatpush2.msra.mxu0 0.0
    %1330 = vmatprep.subr.mxu0 0.0
    %1331 = vmatpush2.msra.mxu0 0.0
    %1332 = vmatprep.subr.mxu0 0.0
    %1333 = vmatpush2.msra.mxu0 0.0
    %1334 = vmatprep.subr.mxu0 0.0
    %1335 = vmatpush2.msra.mxu0 0.0
    %1336 = vmatprep.subr.mxu0 0.0
    %1337 = vmatpush2.msra.mxu0 0.0
    %1338 = vmatprep.subr.mxu0 0.0
    %1339 = vmatpush2.msra.mxu0 0.0
    %1340 = vmatprep.mubr.f32.mxu0 0.0
    %1341 = vmatmul.mubr.f32.gmra.mxu0 %v1274
    %v1342 = vpop.f32.mrf.mxu0
    %v1343 = vadd.f32 0.0, %v1342
    %v1344 = vpop.f32.mrf.mxu0
    %v1345 = vadd.f32 0.0, %v1344
    %1346 = vdwg.mxu0
    %v1347 = vadd.f32 %v1268, %v1343
    %v1348 = vadd.f32 %v1270, %v1345
    %v1349 = vxor.u32 %v1347, 2147483648
    %v1350 = vmul.f32 %v1349, 1.442695
    %v1351 = vpow.pop %v1350
    %v1352 = vadd.f32 %v1351, 1.0
    %v1353 = vrcp.pop %v1352
    %v1354 = vmul.f32 1.0, %v1353
    %v1355 = vtanh.pop %v1348
    %v1356 = vxor.u32 %v1348, 2147483648
    %v1357 = vmul.f32 %v1356, 1.442695
    %v1358 = vpow.pop %v1357
    %v1359 = vadd.f32 %v1358, 1.0
    %v1360 = vrcp.pop %v1359
    %v1361 = vmul.f32 1.0, %v1360
    %v1362 = vmul.f32 %v1354, %v1011
    %v1363 = vmul.f32 %v1354, %v1355
    %1365 = vrot.lane.b32.xlu0 %v1363, 64
    %v1366 = vpop.permute.xlu0 %1365
    %v1368 = vadd.f32 %v1362, %v1366
    %v1369 = vtanh.pop %v1368
    %v1370 = vmul.f32 %v1361, %v1369
    %v1372 = vlaneseq
    %v1373 = vshrl.u32 %v1372, 7
    %v1374 = vsub.s32 0, %v1373
    %v1375 = vrot.slane %v1048, %v1374
    %1378 = vrot.lane.b32.xlu0 %v1370, 64
    %v1379 = vpop.permute.xlu0 %1378
    %v1380 = vsel %vm1272, %v1379, 0
    %1382 = vmatprep.subr.mxu0 0.0
    %1383 = vmatpush1.msra.mxu0 0.0
    %1384 = vmatprep.subr.mxu0 0.0
    %1385 = vmatpush1.msra.mxu0 0.0
    %1386 = vmatprep.subr.mxu0 0.0
    %1387 = vmatpush1.msra.mxu0 0.0
    %1388 = vmatprep.subr.mxu0 0.0
    %1389 = vmatpush1.msra.mxu0 0.0
    %1390 = vmatprep.subr.mxu0 0.0
    %1391 = vmatpush1.msra.mxu0 0.0
    %1392 = vmatprep.subr.mxu0 0.0
    %1393 = vmatpush1.msra.mxu0 0.0
    %1394 = vmatprep.subr.mxu0 0.0
    %1395 = vmatpush1.msra.mxu0 0.0
    %1396 = vmatprep.subr.mxu0 0.0
    %1397 = vmatpush1.msra.mxu0 0.0
    %1398 = vmatprep.subr.mxu0 0.0
    %1399 = vmatpush1.msra.mxu0 %v1047
    %1400 = vmatprep.subr.mxu0 0.0
    %1401 = vmatpush1.msra.mxu0 %v1046
    %1402 = vmatprep.subr.mxu0 0.0
    %1403 = vmatpush1.msra.mxu0 %v1045
    %1404 = vmatprep.subr.mxu0 0.0
    %1405 = vmatpush1.msra.mxu0 %v1044
    %1406 = vmatprep.subr.mxu0 0.0
    %1407 = vmatpush1.msra.mxu0 %v1043
    %1408 = vmatprep.subr.mxu0 0.0
    %1409 = vmatpush1.msra.mxu0 %v1042
    %1410 = vmatprep.subr.mxu0 0.0
    %1411 = vmatpush1.msra.mxu0 %v1041
    %1412 = vmatprep.subr.mxu0 0.0
    %1413 = vmatpush1.msra.mxu0 %v1040
    %1414 = vmatprep.subr.mxu0 0.0
    %1415 = vmatpush2.msra.mxu0 0.0
    %1416 = vmatprep.subr.mxu0 0.0
    %1417 = vmatpush2.msra.mxu0 0.0
    %1418 = vmatprep.subr.mxu0 0.0
    %1419 = vmatpush2.msra.mxu0 0.0
    %1420 = vmatprep.subr.mxu0 0.0
    %1421 = vmatpush2.msra.mxu0 0.0
    %1422 = vmatprep.subr.mxu0 0.0
    %1423 = vmatpush2.msra.mxu0 0.0
    %1424 = vmatprep.subr.mxu0 0.0
    %1425 = vmatpush2.msra.mxu0 0.0
    %1426 = vmatprep.subr.mxu0 0.0
    %1427 = vmatpush2.msra.mxu0 0.0
    %1428 = vmatprep.subr.mxu0 0.0
    %1429 = vmatpush2.msra.mxu0 0.0
    %1430 = vmatprep.subr.mxu0 0.0
    %1431 = vmatpush2.msra.mxu0 0.0
    %1432 = vmatprep.subr.mxu0 0.0
    %1433 = vmatpush2.msra.mxu0 0.0
    %1434 = vmatprep.subr.mxu0 0.0
    %1435 = vmatpush2.msra.mxu0 0.0
    %1436 = vmatprep.subr.mxu0 0.0
    %1437 = vmatpush2.msra.mxu0 0.0
    %1438 = vmatprep.subr.mxu0 0.0
    %1439 = vmatpush2.msra.mxu0 0.0
    %1440 = vmatprep.subr.mxu0 0.0
    %1441 = vmatpush2.msra.mxu0 0.0
    %1442 = vmatprep.subr.mxu0 0.0
    %1443 = vmatpush2.msra.mxu0 0.0
    %1444 = vmatprep.subr.mxu0 0.0
    %1445 = vmatpush2.msra.mxu0 0.0
    %1446 = vmatprep.mubr.f32.mxu0 0.0
    %1447 = vmatmul.mubr.f32.gmra.mxu0 %v1380
    %v1448 = vpop.f32.mrf.mxu0
    %v1449 = vadd.f32 %v1375, %v1448
    %v1450 = vpop.f32.mrf.mxu0
    %1451 = vdwg.mxu0
    %v1452 = vmax.f32 %v1449, 0.0
    %v1454 = vlaneseq
    %v1455 = vshrl.u32 %v1454, 7
    %v1456 = vsub.s32 0, %v1455
    %v1457 = vrot.slane %v1057, %v1456
    %v1460 = vsel %vm1272, %v1452, 0
    %1462 = vmatprep.subr.mxu0 0.0
    %1463 = vmatpush1.msra.mxu0 0.0
    %1464 = vmatprep.subr.mxu0 0.0
    %1465 = vmatpush1.msra.mxu0 0.0
    %1466 = vmatprep.subr.mxu0 0.0
    %1467 = vmatpush1.msra.mxu0 0.0
    %1468 = vmatprep.subr.mxu0 0.0
    %1469 = vmatpush1.msra.mxu0 0.0
    %1470 = vmatprep.subr.mxu0 0.0
    %1471 = vmatpush1.msra.mxu0 0.0
    %1472 = vmatprep.subr.mxu0 0.0
    %1473 = vmatpush1.msra.mxu0 0.0
    %1474 = vmatprep.subr.mxu0 0.0
    %1475 = vmatpush1.msra.mxu0 0.0
    %1476 = vmatprep.subr.mxu0 0.0
    %1477 = vmatpush1.msra.mxu0 0.0
    %1478 = vmatprep.subr.mxu0 0.0
    %1479 = vmatpush1.msra.mxu0 %v1056
    %1480 = vmatprep.subr.mxu0 0.0
    %1481 = vmatpush1.msra.mxu0 %v1055
    %1482 = vmatprep.subr.mxu0 0.0
    %1483 = vmatpush1.msra.mxu0 %v1054
    %1484 = vmatprep.subr.mxu0 0.0
    %1485 = vmatpush1.msra.mxu0 %v1053
    %1486 = vmatprep.subr.mxu0 0.0
    %1487 = vmatpush1.msra.mxu0 %v1052
    %1488 = vmatprep.subr.mxu0 0.0
    %1489 = vmatpush1.msra.mxu0 %v1051
    %1490 = vmatprep.subr.mxu0 0.0
    %1491 = vmatpush1.msra.mxu0 %v1050
    %1492 = vmatprep.subr.mxu0 0.0
    %1493 = vmatpush1.msra.mxu0 %v1049
    %1494 = vmatprep.subr.mxu0 0.0
    %1495 = vmatpush2.msra.mxu0 0.0
    %1496 = vmatprep.subr.mxu0 0.0
    %1497 = vmatpush2.msra.mxu0 0.0
    %1498 = vmatprep.subr.mxu0 0.0
    %1499 = vmatpush2.msra.mxu0 0.0
    %1500 = vmatprep.subr.mxu0 0.0
    %1501 = vmatpush2.msra.mxu0 0.0
    %1502 = vmatprep.subr.mxu0 0.0
    %1503 = vmatpush2.msra.mxu0 0.0
    %1504 = vmatprep.subr.mxu0 0.0
    %1505 = vmatpush2.msra.mxu0 0.0
    %1506 = vmatprep.subr.mxu0 0.0
    %1507 = vmatpush2.msra.mxu0 0.0
    %1508 = vmatprep.subr.mxu0 0.0
    %1509 = vmatpush2.msra.mxu0 0.0
    %1510 = vmatprep.subr.mxu0 0.0
    %1511 = vmatpush2.msra.mxu0 0.0
    %1512 = vmatprep.subr.mxu0 0.0
    %1513 = vmatpush2.msra.mxu0 0.0
    %1514 = vmatprep.subr.mxu0 0.0
    %1515 = vmatpush2.msra.mxu0 0.0
    %1516 = vmatprep.subr.mxu0 0.0
    %1517 = vmatpush2.msra.mxu0 0.0
    %1518 = vmatprep.subr.mxu0 0.0
    %1519 = vmatpush2.msra.mxu0 0.0
    %1520 = vmatprep.subr.mxu0 0.0
    %1521 = vmatpush2.msra.mxu0 0.0
    %1522 = vmatprep.subr.mxu0 0.0
    %1523 = vmatpush2.msra.mxu0 0.0
    %1524 = vmatprep.subr.mxu0 0.0
    %1525 = vmatpush2.msra.mxu0 0.0
    %1526 = vmatprep.mubr.f32.mxu0 0.0
    %1527 = vmatmul.mubr.f32.gmra.mxu0 %v1460
    %v1528 = vpop.f32.mrf.mxu0
    %v1529 = vadd.f32 %v1457, %v1528
    %v1530 = vpop.f32.mrf.mxu0
    %1531 = vdwg.mxu0
    %v1532 = vlaneseq
    %v1533 = vand.u32 %v1532, 127
    %vm1534 = vcmp.eq.s32.totalorder %v1533, 0
    %v1535 = vxor.u32 %v1529, 2147483648
    %v1536 = vmul.f32 %v1535, 1.442695
    %v1537 = vpow.pop %v1536
    %v1538 = vadd.f32 %v1537, 1.0
    %v1539 = vrcp.pop %v1538
    %v1540 = vmul.f32 1.0, %v1539
    %v1541 = vsel %vm1534, %v1540, %v1529
    %vm1542 = vcmp.eq.s32.totalorder %v1533, 3
    %v1543 = vtanh.pop %v1529
    %v1544 = vmul.f32 %v1543, 3.1415927
    %v1545 = vsel %vm1542, %v1544, %v1541
    %v1548 = vunpack.c.l.s4 1966171168
    %v1549 = vunpack.c.0.s8 %v1548
    %v1550 = vlaneseq
    %v1551 = vshrl.u32 %v1550, 7
    %v1552 = vsub.s32 %v1549, %v1551
    %v1553 = vrot.slane %v1545, %v1552
    %v1554 = vcombine.high %v1553, %v1553
    %v1556 = vunpack.c.l.s4 1966171168
    %v1557 = vunpack.c.0.s8 %v1556
    %v1558 = vlaneseq
    %v1559 = vshrl.u32 %v1558, 7
    %v1560 = vsub.s32 %v1557, %v1559
    %v1561 = vrot.slane %v1553, %v1560
    %v1563 = vunpack.c.l.s4 1966171168
    %v1564 = vunpack.c.0.s8 %v1563
    %v1565 = vlaneseq
    %v1566 = vshrl.u32 %v1565, 7
    %v1567 = vsub.s32 %v1564, %v1566
    %v1568 = vrot.slane %v1554, %v1567
    %1571 = vst [vmem:[%s23] sm:$0x1] %v1561
    %1572 = vst [vmem:[%s23 + $0x8] sm:$0x1] %v1568
    %v1573 = vld [vmem:[%s1 + $0x1] sm:$0x1]
    %v1574 = vld [vmem:[%s1 + $0x9] sm:$0x1]
    %1576 = vset.pattern.permute.xlu0 0
    %1577 = vperm.xlu0 %1576, %v1573
    %v1578 = vpop.permute.xlu0 %1577
    %1581 = vset.pattern.permute.xlu0 0
    %1582 = vperm.xlu0 %1581, %v1574
    %v1583 = vpop.permute.xlu0 %1582
    %v1585 = vmul.f32 %v1578, %v1073
    %v1586 = vmul.f32 %v1583, %v1073
    %1587 = vset.pattern.permute.xlu0 1
    %1588 = vperm.xlu0 %1587, %v1573
    %v1589 = vpop.permute.xlu0 %1588
    %1591 = vset.pattern.permute.xlu0 1
    %1592 = vperm.xlu0 %1591, %v1574
    %v1593 = vpop.permute.xlu0 %1592
    %v1595 = vmul.f32 %v1589, %v1087
    %v1596 = vmul.f32 %v1593, %v1087
    %v1597 = vadd.f32 %v1585, %v1595
    %v1598 = vadd.f32 %v1586, %v1596
    %v1599 = vadd.f32 %v1597, %v1096
    %v1600 = vadd.f32 %v1598, %v1096
    %v1601 = vmax.f32 %v1599, 0.0
    %v1602 = vmax.f32 %v1600, 0.0
    %v1605 = vrot.slane %v1602, 7
    %v1606 = vsel %vm1111, %v1605, %v1601
    %v1607 = vsel %vm1113, %v1606, 0
    %1609 = vmatprep.subr.mxu0 0.0
    %1610 = vmatpush1.msra.mxu0 0.0
    %1611 = vmatprep.subr.mxu0 0.0
    %1612 = vmatpush1.msra.mxu0 0.0
    %1613 = vmatprep.subr.mxu0 0.0
    %1614 = vmatpush1.msra.mxu0 0.0
    %1615 = vmatprep.subr.mxu0 0.0
    %1616 = vmatpush1.msra.mxu0 0.0
    %1617 = vmatprep.subr.mxu0 0.0
    %1618 = vmatpush1.msra.mxu0 0.0
    %1619 = vmatprep.subr.mxu0 0.0
    %1620 = vmatpush1.msra.mxu0 0.0
    %1621 = vmatprep.subr.mxu0 0.0
    %1622 = vmatpush1.msra.mxu0 0.0
    %1623 = vmatprep.subr.mxu0 0.0
    %1624 = vmatpush1.msra.mxu0 0.0
    %1625 = vmatprep.subr.mxu0 0.0
    %1626 = vmatpush1.msra.mxu0 0.0
    %1627 = vmatprep.subr.mxu0 0.0
    %1628 = vmatpush1.msra.mxu0 0.0
    %1629 = vmatprep.subr.mxu0 0.0
    %1630 = vmatpush1.msra.mxu0 0.0
    %1631 = vmatprep.subr.mxu0 0.0
    %1632 = vmatpush1.msra.mxu0 0.0
    %1633 = vmatprep.subr.mxu0 0.0
    %1634 = vmatpush1.msra.mxu0 0.0
    %1635 = vmatprep.subr.mxu0 0.0
    %1636 = vmatpush1.msra.mxu0 0.0
    %1637 = vmatprep.subr.mxu0 0.0
    %1638 = vmatpush1.msra.mxu0 %v1017
    %1639 = vmatprep.subr.mxu0 0.0
    %1640 = vmatpush1.msra.mxu0 %v1016
    %1641 = vmatprep.subr.mxu0 0.0
    %1642 = vmatpush2.msra.mxu0 0.0
    %1643 = vmatprep.subr.mxu0 0.0
    %1644 = vmatpush2.msra.mxu0 0.0
    %1645 = vmatprep.subr.mxu0 0.0
    %1646 = vmatpush2.msra.mxu0 0.0
    %1647 = vmatprep.subr.mxu0 0.0
    %1648 = vmatpush2.msra.mxu0 0.0
    %1649 = vmatprep.subr.mxu0 0.0
    %1650 = vmatpush2.msra.mxu0 0.0
    %1651 = vmatprep.subr.mxu0 0.0
    %1652 = vmatpush2.msra.mxu0 0.0
    %1653 = vmatprep.subr.mxu0 0.0
    %1654 = vmatpush2.msra.mxu0 0.0
    %1655 = vmatprep.subr.mxu0 0.0
    %1656 = vmatpush2.msra.mxu0 0.0
    %1657 = vmatprep.subr.mxu0 0.0
    %1658 = vmatpush2.msra.mxu0 0.0
    %1659 = vmatprep.subr.mxu0 0.0
    %1660 = vmatpush2.msra.mxu0 0.0
    %1661 = vmatprep.subr.mxu0 0.0
    %1662 = vmatpush2.msra.mxu0 0.0
    %1663 = vmatprep.subr.mxu0 0.0
    %1664 = vmatpush2.msra.mxu0 0.0
    %1665 = vmatprep.subr.mxu0 0.0
    %1666 = vmatpush2.msra.mxu0 0.0
    %1667 = vmatprep.subr.mxu0 0.0
    %1668 = vmatpush2.msra.mxu0 0.0
    %1669 = vmatprep.subr.mxu0 0.0
    %1670 = vmatpush2.msra.mxu0 0.0
    %1671 = vmatprep.subr.mxu0 0.0
    %1672 = vmatpush2.msra.mxu0 0.0
    %1673 = vmatprep.mubr.f32.mxu0 0.0
    %1674 = vmatmul.mubr.f32.gmra.mxu0 %v1607
    %v1675 = vpop.f32.mrf.mxu0
    %v1676 = vadd.f32 %v1106, %v1675
    %v1677 = vpop.f32.mrf.mxu0
    %1678 = vdwg.mxu0
    %v1679 = vmax.f32 %v1676, 0.0
    %v1681 = vsel %vm1113, %v1679, 0
    %1683 = vmatprep.subr.mxu0 0.0
    %1684 = vmatpush1.msra.mxu0 0.0
    %1685 = vmatprep.subr.mxu0 0.0
    %1686 = vmatpush1.msra.mxu0 0.0
    %1687 = vmatprep.subr.mxu0 0.0
    %1688 = vmatpush1.msra.mxu0 0.0
    %1689 = vmatprep.subr.mxu0 0.0
    %1690 = vmatpush1.msra.mxu0 0.0
    %1691 = vmatprep.subr.mxu0 0.0
    %1692 = vmatpush1.msra.mxu0 0.0
    %1693 = vmatprep.subr.mxu0 0.0
    %1694 = vmatpush1.msra.mxu0 0.0
    %1695 = vmatprep.subr.mxu0 0.0
    %1696 = vmatpush1.msra.mxu0 0.0
    %1697 = vmatprep.subr.mxu0 0.0
    %1698 = vmatpush1.msra.mxu0 0.0
    %1699 = vmatprep.subr.mxu0 0.0
    %1700 = vmatpush1.msra.mxu0 0.0
    %1701 = vmatprep.subr.mxu0 0.0
    %1702 = vmatpush1.msra.mxu0 0.0
    %1703 = vmatprep.subr.mxu0 0.0
    %1704 = vmatpush1.msra.mxu0 0.0
    %1705 = vmatprep.subr.mxu0 0.0
    %1706 = vmatpush1.msra.mxu0 0.0
    %1707 = vmatprep.subr.mxu0 0.0
    %1708 = vmatpush1.msra.mxu0 0.0
    %1709 = vmatprep.subr.mxu0 0.0
    %1710 = vmatpush1.msra.mxu0 0.0
    %1711 = vmatprep.subr.mxu0 %v1022
    %1712 = vmatpush1.msra.mxu0 %v1021
    %1713 = vmatprep.subr.mxu0 %v1020
    %1714 = vmatpush1.msra.mxu0 %v1019
    %1715 = vmatprep.subr.mxu0 0.0
    %1716 = vmatpush2.msra.mxu0 0.0
    %1717 = vmatprep.subr.mxu0 0.0
    %1718 = vmatpush2.msra.mxu0 0.0
    %1719 = vmatprep.subr.mxu0 0.0
    %1720 = vmatpush2.msra.mxu0 0.0
    %1721 = vmatprep.subr.mxu0 0.0
    %1722 = vmatpush2.msra.mxu0 0.0
    %1723 = vmatprep.subr.mxu0 0.0
    %1724 = vmatpush2.msra.mxu0 0.0
    %1725 = vmatprep.subr.mxu0 0.0
    %1726 = vmatpush2.msra.mxu0 0.0
    %1727 = vmatprep.subr.mxu0 0.0
    %1728 = vmatpush2.msra.mxu0 0.0
    %1729 = vmatprep.subr.mxu0 0.0
    %1730 = vmatpush2.msra.mxu0 0.0
    %1731 = vmatprep.subr.mxu0 0.0
    %1732 = vmatpush2.msra.mxu0 0.0
    %1733 = vmatprep.subr.mxu0 0.0
    %1734 = vmatpush2.msra.mxu0 0.0
    %1735 = vmatprep.subr.mxu0 0.0
    %1736 = vmatpush2.msra.mxu0 0.0
    %1737 = vmatprep.subr.mxu0 0.0
    %1738 = vmatpush2.msra.mxu0 0.0
    %1739 = vmatprep.subr.mxu0 0.0
    %1740 = vmatpush2.msra.mxu0 0.0
    %1741 = vmatprep.subr.mxu0 0.0
    %1742 = vmatpush2.msra.mxu0 0.0
    %1743 = vmatprep.subr.mxu0 0.0
    %1744 = vmatpush2.msra.mxu0 0.0
    %1745 = vmatprep.subr.mxu0 0.0
    %1746 = vmatpush2.msra.mxu0 0.0
    %1747 = vmatprep.mubr.f32.mxu0 0.0
    %1748 = vmatmul.mubr.f32.gmra.mxu0 %v1681
    %v1749 = vpop.f32.mrf.mxu0
    %v1750 = vadd.f32 %v1191, %v1749
    %v1751 = vpop.f32.mrf.mxu0
    %v1752 = vadd.f32 %v1195, %v1751
    %1753 = vdwg.mxu0
    %1754 = vmatprep.subr.mxu0 0.0
    %1755 = vmatpush1.msra.mxu0 0.0
    %1756 = vmatprep.subr.mxu0 0.0
    %1757 = vmatpush1.msra.mxu0 0.0
    %1758 = vmatprep.subr.mxu0 0.0
    %1759 = vmatpush1.msra.mxu0 0.0
    %1760 = vmatprep.subr.mxu0 0.0
    %1761 = vmatpush1.msra.mxu0 0.0
    %1762 = vmatprep.subr.mxu0 0.0
    %1763 = vmatpush1.msra.mxu0 0.0
    %1764 = vmatprep.subr.mxu0 0.0
    %1765 = vmatpush1.msra.mxu0 0.0
    %1766 = vmatprep.subr.mxu0 0.0
    %1767 = vmatpush1.msra.mxu0 0.0
    %1768 = vmatprep.subr.mxu0 0.0
    %1769 = vmatpush1.msra.mxu0 0.0
    %1770 = vmatprep.subr.mxu0 %v1039
    %1771 = vmatpush1.msra.mxu0 %v1038
    %1772 = vmatprep.subr.mxu0 %v1037
    %1773 = vmatpush1.msra.mxu0 %v1036
    %1774 = vmatprep.subr.mxu0 %v1035
    %1775 = vmatpush1.msra.mxu0 %v1034
    %1776 = vmatprep.subr.mxu0 %v1033
    %1777 = vmatpush1.msra.mxu0 %v1032
    %1778 = vmatprep.subr.mxu0 %v1031
    %1779 = vmatpush1.msra.mxu0 %v1030
    %1780 = vmatprep.subr.mxu0 %v1029
    %1781 = vmatpush1.msra.mxu0 %v1028
    %1782 = vmatprep.subr.mxu0 %v1027
    %1783 = vmatpush1.msra.mxu0 %v1026
    %1784 = vmatprep.subr.mxu0 %v1025
    %1785 = vmatpush1.msra.mxu0 %v1024
    %1786 = vmatprep.subr.mxu0 0.0
    %1787 = vmatpush2.msra.mxu0 0.0
    %1788 = vmatprep.subr.mxu0 0.0
    %1789 = vmatpush2.msra.mxu0 0.0
    %1790 = vmatprep.subr.mxu0 0.0
    %1791 = vmatpush2.msra.mxu0 0.0
    %1792 = vmatprep.subr.mxu0 0.0
    %1793 = vmatpush2.msra.mxu0 0.0
    %1794 = vmatprep.subr.mxu0 0.0
    %1795 = vmatpush2.msra.mxu0 0.0
    %1796 = vmatprep.subr.mxu0 0.0
    %1797 = vmatpush2.msra.mxu0 0.0
    %1798 = vmatprep.subr.mxu0 0.0
    %1799 = vmatpush2.msra.mxu0 0.0
    %1800 = vmatprep.subr.mxu0 0.0
    %1801 = vmatpush2.msra.mxu0 0.0
    %1802 = vmatprep.subr.mxu0 0.0
    %1803 = vmatpush2.msra.mxu0 0.0
    %1804 = vmatprep.subr.mxu0 0.0
    %1805 = vmatpush2.msra.mxu0 0.0
    %1806 = vmatprep.subr.mxu0 0.0
    %1807 = vmatpush2.msra.mxu0 0.0
    %1808 = vmatprep.subr.mxu0 0.0
    %1809 = vmatpush2.msra.mxu0 0.0
    %1810 = vmatprep.subr.mxu0 0.0
    %1811 = vmatpush2.msra.mxu0 0.0
    %1812 = vmatprep.subr.mxu0 0.0
    %1813 = vmatpush2.msra.mxu0 0.0
    %1814 = vmatprep.subr.mxu0 0.0
    %1815 = vmatpush2.msra.mxu0 0.0
    %1816 = vmatprep.subr.mxu0 0.0
    %1817 = vmatpush2.msra.mxu0 0.0
    %1818 = vmatprep.mubr.f32.mxu0 0.0
    %1819 = vmatmul.mubr.f32.gmra.mxu0 %v1380
    %v1820 = vpop.f32.mrf.mxu0
    %v1821 = vadd.f32 0.0, %v1820
    %v1822 = vpop.f32.mrf.mxu0
    %v1823 = vadd.f32 0.0, %v1822
    %1824 = vdwg.mxu0
    %v1825 = vadd.f32 %v1750, %v1821
    %v1826 = vadd.f32 %v1752, %v1823
    %v1827 = vxor.u32 %v1825, 2147483648
    %v1828 = vmul.f32 %v1827, 1.442695
    %v1829 = vpow.pop %v1828
    %v1830 = vadd.f32 %v1829, 1.0
    %v1831 = vrcp.pop %v1830
    %v1832 = vmul.f32 1.0, %v1831
    %v1833 = vtanh.pop %v1826
    %v1834 = vxor.u32 %v1826, 2147483648
    %v1835 = vmul.f32 %v1834, 1.442695
    %v1836 = vpow.pop %v1835
    %v1837 = vadd.f32 %v1836, 1.0
    %v1838 = vrcp.pop %v1837
    %v1839 = vmul.f32 1.0, %v1838
    %v1840 = vmul.f32 %v1832, %v1368
    %v1841 = vmul.f32 %v1832, %v1833
    %1843 = vrot.lane.b32.xlu0 %v1841, 64
    %v1844 = vpop.permute.xlu0 %1843
    %v1846 = vadd.f32 %v1840, %v1844
    %v1847 = vtanh.pop %v1846
    %v1848 = vmul.f32 %v1839, %v1847
    %1850 = vrot.lane.b32.xlu0 %v1848, 64
    %v1851 = vpop.permute.xlu0 %1850
    %v1852 = vsel %vm1272, %v1851, 0
    %1854 = vmatprep.subr.mxu0 0.0
    %1855 = vmatpush1.msra.mxu0 0.0
    %1856 = vmatprep.subr.mxu0 0.0
    %1857 = vmatpush1.msra.mxu0 0.0
    %1858 = vmatprep.subr.mxu0 0.0
    %1859 = vmatpush1.msra.mxu0 0.0
    %1860 = vmatprep.subr.mxu0 0.0
    %1861 = vmatpush1.msra.mxu0 0.0
    %1862 = vmatprep.subr.mxu0 0.0
    %1863 = vmatpush1.msra.mxu0 0.0
    %1864 = vmatprep.subr.mxu0 0.0
    %1865 = vmatpush1.msra.mxu0 0.0
    %1866 = vmatprep.subr.mxu0 0.0
    %1867 = vmatpush1.msra.mxu0 0.0
    %1868 = vmatprep.subr.mxu0 0.0
    %1869 = vmatpush1.msra.mxu0 0.0
    %1870 = vmatprep.subr.mxu0 0.0
    %1871 = vmatpush1.msra.mxu0 %v1047
    %1872 = vmatprep.subr.mxu0 0.0
    %1873 = vmatpush1.msra.mxu0 %v1046
    %1874 = vmatprep.subr.mxu0 0.0
    %1875 = vmatpush1.msra.mxu0 %v1045
    %1876 = vmatprep.subr.mxu0 0.0
    %1877 = vmatpush1.msra.mxu0 %v1044
    %1878 = vmatprep.subr.mxu0 0.0
    %1879 = vmatpush1.msra.mxu0 %v1043
    %1880 = vmatprep.subr.mxu0 0.0
    %1881 = vmatpush1.msra.mxu0 %v1042
    %1882 = vmatprep.subr.mxu0 0.0
    %1883 = vmatpush1.msra.mxu0 %v1041
    %1884 = vmatprep.subr.mxu0 0.0
    %1885 = vmatpush1.msra.mxu0 %v1040
    %1886 = vmatprep.subr.mxu0 0.0
    %1887 = vmatpush2.msra.mxu0 0.0
    %1888 = vmatprep.subr.mxu0 0.0
    %1889 = vmatpush2.msra.mxu0 0.0
    %1890 = vmatprep.subr.mxu0 0.0
    %1891 = vmatpush2.msra.mxu0 0.0
    %1892 = vmatprep.subr.mxu0 0.0
    %1893 = vmatpush2.msra.mxu0 0.0
    %1894 = vmatprep.subr.mxu0 0.0
    %1895 = vmatpush2.msra.mxu0 0.0
    %1896 = vmatprep.subr.mxu0 0.0
    %1897 = vmatpush2.msra.mxu0 0.0
    %1898 = vmatprep.subr.mxu0 0.0
    %1899 = vmatpush2.msra.mxu0 0.0
    %1900 = vmatprep.subr.mxu0 0.0
    %1901 = vmatpush2.msra.mxu0 0.0
    %1902 = vmatprep.subr.mxu0 0.0
    %1903 = vmatpush2.msra.mxu0 0.0
    %1904 = vmatprep.subr.mxu0 0.0
    %1905 = vmatpush2.msra.mxu0 0.0
    %1906 = vmatprep.subr.mxu0 0.0
    %1907 = vmatpush2.msra.mxu0 0.0
    %1908 = vmatprep.subr.mxu0 0.0
    %1909 = vmatpush2.msra.mxu0 0.0
    %1910 = vmatprep.subr.mxu0 0.0
    %1911 = vmatpush2.msra.mxu0 0.0
    %1912 = vmatprep.subr.mxu0 0.0
    %1913 = vmatpush2.msra.mxu0 0.0
    %1914 = vmatprep.subr.mxu0 0.0
    %1915 = vmatpush2.msra.mxu0 0.0
    %1916 = vmatprep.subr.mxu0 0.0
    %1917 = vmatpush2.msra.mxu0 0.0
    %1918 = vmatprep.mubr.f32.mxu0 0.0
    %1919 = vmatmul.mubr.f32.gmra.mxu0 %v1852
    %v1920 = vpop.f32.mrf.mxu0
    %v1921 = vadd.f32 %v1375, %v1920
    %v1922 = vpop.f32.mrf.mxu0
    %1923 = vdwg.mxu0
    %v1924 = vmax.f32 %v1921, 0.0
    %v1926 = vsel %vm1272, %v1924, 0
    %1928 = vmatprep.subr.mxu0 0.0
    %1929 = vmatpush1.msra.mxu0 0.0
    %1930 = vmatprep.subr.mxu0 0.0
    %1931 = vmatpush1.msra.mxu0 0.0
    %1932 = vmatprep.subr.mxu0 0.0
    %1933 = vmatpush1.msra.mxu0 0.0
    %1934 = vmatprep.subr.mxu0 0.0
    %1935 = vmatpush1.msra.mxu0 0.0
    %1936 = vmatprep.subr.mxu0 0.0
    %1937 = vmatpush1.msra.mxu0 0.0
    %1938 = vmatprep.subr.mxu0 0.0
    %1939 = vmatpush1.msra.mxu0 0.0
    %1940 = vmatprep.subr.mxu0 0.0
    %1941 = vmatpush1.msra.mxu0 0.0
    %1942 = vmatprep.subr.mxu0 0.0
    %1943 = vmatpush1.msra.mxu0 0.0
    %1944 = vmatprep.subr.mxu0 0.0
    %1945 = vmatpush1.msra.mxu0 %v1056
    %1946 = vmatprep.subr.mxu0 0.0
    %1947 = vmatpush1.msra.mxu0 %v1055
    %1948 = vmatprep.subr.mxu0 0.0
    %1949 = vmatpush1.msra.mxu0 %v1054
    %1950 = vmatprep.subr.mxu0 0.0
    %1951 = vmatpush1.msra.mxu0 %v1053
    %1952 = vmatprep.subr.mxu0 0.0
    %1953 = vmatpush1.msra.mxu0 %v1052
    %1954 = vmatprep.subr.mxu0 0.0
    %1955 = vmatpush1.msra.mxu0 %v1051
    %1956 = vmatprep.subr.mxu0 0.0
    %1957 = vmatpush1.msra.mxu0 %v1050
    %1958 = vmatprep.subr.mxu0 0.0
    %1959 = vmatpush1.msra.mxu0 %v1049
    %1960 = vmatprep.subr.mxu0 0.0
    %1961 = vmatpush2.msra.mxu0 0.0
    %1962 = vmatprep.subr.mxu0 0.0
    %1963 = vmatpush2.msra.mxu0 0.0
    %1964 = vmatprep.subr.mxu0 0.0
    %1965 = vmatpush2.msra.mxu0 0.0
    %1966 = vmatprep.subr.mxu0 0.0
    %1967 = vmatpush2.msra.mxu0 0.0
    %1968 = vmatprep.subr.mxu0 0.0
    %1969 = vmatpush2.msra.mxu0 0.0
    %1970 = vmatprep.subr.mxu0 0.0
    %1971 = vmatpush2.msra.mxu0 0.0
    %1972 = vmatprep.subr.mxu0 0.0
    %1973 = vmatpush2.msra.mxu0 0.0
    %1974 = vmatprep.subr.mxu0 0.0
    %1975 = vmatpush2.msra.mxu0 0.0
    %1976 = vmatprep.subr.mxu0 0.0
    %1977 = vmatpush2.msra.mxu0 0.0
    %1978 = vmatprep.subr.mxu0 0.0
    %1979 = vmatpush2.msra.mxu0 0.0
    %1980 = vmatprep.subr.mxu0 0.0
    %1981 = vmatpush2.msra.mxu0 0.0
    %1982 = vmatprep.subr.mxu0 0.0
    %1983 = vmatpush2.msra.mxu0 0.0
    %1984 = vmatprep.subr.mxu0 0.0
    %1985 = vmatpush2.msra.mxu0 0.0
    %1986 = vmatprep.subr.mxu0 0.0
    %1987 = vmatpush2.msra.mxu0 0.0
    %1988 = vmatprep.subr.mxu0 0.0
    %1989 = vmatpush2.msra.mxu0 0.0
    %1990 = vmatprep.subr.mxu0 0.0
    %1991 = vmatpush2.msra.mxu0 0.0
    %1992 = vmatprep.mubr.f32.mxu0 0.0
    %1993 = vmatmul.mubr.f32.gmra.mxu0 %v1926
    %v1994 = vpop.f32.mrf.mxu0
    %v1995 = vadd.f32 %v1457, %v1994
    %v1996 = vpop.f32.mrf.mxu0
    %1997 = vdwg.mxu0
    %v1998 = vxor.u32 %v1995, 2147483648
    %v1999 = vmul.f32 %v1998, 1.442695
    %v2000 = vpow.pop %v1999
    %v2001 = vadd.f32 %v2000, 1.0
    %v2002 = vrcp.pop %v2001
    %v2003 = vmul.f32 1.0, %v2002
    %v2004 = vsel %vm1534, %v2003, %v1995
    %v2005 = vtanh.pop %v1995
    %v2006 = vmul.f32 %v2005, 3.1415927
    %v2007 = vsel %vm1542, %v2006, %v2004
    %v2010 = vunpack.c.l.s4 1966171168
    %v2011 = vunpack.c.0.s8 %v2010
    %v2012 = vlaneseq
    %v2013 = vshrl.u32 %v2012, 7
    %v2014 = vsub.s32 %v2011, %v2013
    %v2015 = vrot.slane %v2007, %v2014
    %v2016 = vcombine.high %v2015, %v2015
    %v2018 = vunpack.c.l.s4 1966171168
    %v2019 = vunpack.c.0.s8 %v2018
    %v2020 = vlaneseq
    %v2021 = vshrl.u32 %v2020, 7
    %v2022 = vsub.s32 %v2019, %v2021
    %v2023 = vrot.slane %v2015, %v2022
    %v2025 = vunpack.c.l.s4 1966171168
    %v2026 = vunpack.c.0.s8 %v2025
    %v2027 = vlaneseq
    %v2028 = vshrl.u32 %v2027, 7
    %v2029 = vsub.s32 %v2026, %v2028
    %v2030 = vrot.slane %v2016, %v2029
    %2033 = vst [vmem:[%s23 + $0x1] sm:$0x1] %v2023
    %2034 = vst [vmem:[%s23 + $0x9] sm:$0x1] %v2030
    %v2035 = vld [vmem:[%s1 + $0x2] sm:$0x1]
    %v2036 = vld [vmem:[%s1 + $0xa] sm:$0x1]
    %2038 = vset.pattern.permute.xlu0 0
    %2039 = vperm.xlu0 %2038, %v2035
    %v2040 = vpop.permute.xlu0 %2039
    %2043 = vset.pattern.permute.xlu0 0
    %2044 = vperm.xlu0 %2043, %v2036
    %v2045 = vpop.permute.xlu0 %2044
    %v2047 = vmul.f32 %v2040, %v1073
    %v2048 = vmul.f32 %v2045, %v1073
    %2049 = vset.pattern.permute.xlu0 1
    %2050 = vperm.xlu0 %2049, %v2035
    %v2051 = vpop.permute.xlu0 %2050
    %2053 = vset.pattern.permute.xlu0 1
    %2054 = vperm.xlu0 %2053, %v2036
    %v2055 = vpop.permute.xlu0 %2054
    %v2057 = vmul.f32 %v2051, %v1087
    %v2058 = vmul.f32 %v2055, %v1087
    %v2059 = vadd.f32 %v2047, %v2057
    %v2060 = vadd.f32 %v2048, %v2058
    %v2061 = vadd.f32 %v2059, %v1096
    %v2062 = vadd.f32 %v2060, %v1096
    %v2063 = vmax.f32 %v2061, 0.0
    %v2064 = vmax.f32 %v2062, 0.0
    %v2067 = vrot.slane %v2064, 7
    %v2068 = vsel %vm1111, %v2067, %v2063
    %v2069 = vsel %vm1113, %v2068, 0
    %2071 = vmatprep.subr.mxu0 0.0
    %2072 = vmatpush1.msra.mxu0 0.0
    %2073 = vmatprep.subr.mxu0 0.0
    %2074 = vmatpush1.msra.mxu0 0.0
    %2075 = vmatprep.subr.mxu0 0.0
    %2076 = vmatpush1.msra.mxu0 0.0
    %2077 = vmatprep.subr.mxu0 0.0
    %2078 = vmatpush1.msra.mxu0 0.0
    %2079 = vmatprep.subr.mxu0 0.0
    %2080 = vmatpush1.msra.mxu0 0.0
    %2081 = vmatprep.subr.mxu0 0.0
    %2082 = vmatpush1.msra.mxu0 0.0
    %2083 = vmatprep.subr.mxu0 0.0
    %2084 = vmatpush1.msra.mxu0 0.0
    %2085 = vmatprep.subr.mxu0 0.0
    %2086 = vmatpush1.msra.mxu0 0.0
    %2087 = vmatprep.subr.mxu0 0.0
    %2088 = vmatpush1.msra.mxu0 0.0
    %2089 = vmatprep.subr.mxu0 0.0
    %2090 = vmatpush1.msra.mxu0 0.0
    %2091 = vmatprep.subr.mxu0 0.0
    %2092 = vmatpush1.msra.mxu0 0.0
    %2093 = vmatprep.subr.mxu0 0.0
    %2094 = vmatpush1.msra.mxu0 0.0
    %2095 = vmatprep.subr.mxu0 0.0
    %2096 = vmatpush1.msra.mxu0 0.0
    %2097 = vmatprep.subr.mxu0 0.0
    %2098 = vmatpush1.msra.mxu0 0.0
    %2099 = vmatprep.subr.mxu0 0.0
    %2100 = vmatpush1.msra.mxu0 %v1017
    %2101 = vmatprep.subr.mxu0 0.0
    %2102 = vmatpush1.msra.mxu0 %v1016
    %2103 = vmatprep.subr.mxu0 0.0
    %2104 = vmatpush2.msra.mxu0 0.0
    %2105 = vmatprep.subr.mxu0 0.0
    %2106 = vmatpush2.msra.mxu0 0.0
    %2107 = vmatprep.subr.mxu0 0.0
    %2108 = vmatpush2.msra.mxu0 0.0
    %2109 = vmatprep.subr.mxu0 0.0
    %2110 = vmatpush2.msra.mxu0 0.0
    %2111 = vmatprep.subr.mxu0 0.0
    %2112 = vmatpush2.msra.mxu0 0.0
    %2113 = vmatprep.subr.mxu0 0.0
    %2114 = vmatpush2.msra.mxu0 0.0
    %2115 = vmatprep.subr.mxu0 0.0
    %2116 = vmatpush2.msra.mxu0 0.0
    %2117 = vmatprep.subr.mxu0 0.0
    %2118 = vmatpush2.msra.mxu0 0.0
    %2119 = vmatprep.subr.mxu0 0.0
    %2120 = vmatpush2.msra.mxu0 0.0
    %2121 = vmatprep.subr.mxu0 0.0
    %2122 = vmatpush2.msra.mxu0 0.0
    %2123 = vmatprep.subr.mxu0 0.0
    %2124 = vmatpush2.msra.mxu0 0.0
    %2125 = vmatprep.subr.mxu0 0.0
    %2126 = vmatpush2.msra.mxu0 0.0
    %2127 = vmatprep.subr.mxu0 0.0
    %2128 = vmatpush2.msra.mxu0 0.0
    %2129 = vmatprep.subr.mxu0 0.0
    %2130 = vmatpush2.msra.mxu0 0.0
    %2131 = vmatprep.subr.mxu0 0.0
    %2132 = vmatpush2.msra.mxu0 0.0
    %2133 = vmatprep.subr.mxu0 0.0
    %2134 = vmatpush2.msra.mxu0 0.0
    %2135 = vmatprep.mubr.f32.mxu0 0.0
    %2136 = vmatmul.mubr.f32.gmra.mxu0 %v2069
    %v2137 = vpop.f32.mrf.mxu0
    %v2138 = vadd.f32 %v1106, %v2137
    %v2139 = vpop.f32.mrf.mxu0
    %2140 = vdwg.mxu0
    %v2141 = vmax.f32 %v2138, 0.0
    %v2143 = vsel %vm1113, %v2141, 0
    %2145 = vmatprep.subr.mxu0 0.0
    %2146 = vmatpush1.msra.mxu0 0.0
    %2147 = vmatprep.subr.mxu0 0.0
    %2148 = vmatpush1.msra.mxu0 0.0
    %2149 = vmatprep.subr.mxu0 0.0
    %2150 = vmatpush1.msra.mxu0 0.0
    %2151 = vmatprep.subr.mxu0 0.0
    %2152 = vmatpush1.msra.mxu0 0.0
    %2153 = vmatprep.subr.mxu0 0.0
    %2154 = vmatpush1.msra.mxu0 0.0
    %2155 = vmatprep.subr.mxu0 0.0
    %2156 = vmatpush1.msra.mxu0 0.0
    %2157 = vmatprep.subr.mxu0 0.0
    %2158 = vmatpush1.msra.mxu0 0.0
    %2159 = vmatprep.subr.mxu0 0.0
    %2160 = vmatpush1.msra.mxu0 0.0
    %2161 = vmatprep.subr.mxu0 0.0
    %2162 = vmatpush1.msra.mxu0 0.0
    %2163 = vmatprep.subr.mxu0 0.0
    %2164 = vmatpush1.msra.mxu0 0.0
    %2165 = vmatprep.subr.mxu0 0.0
    %2166 = vmatpush1.msra.mxu0 0.0
    %2167 = vmatprep.subr.mxu0 0.0
    %2168 = vmatpush1.msra.mxu0 0.0
    %2169 = vmatprep.subr.mxu0 0.0
    %2170 = vmatpush1.msra.mxu0 0.0
    %2171 = vmatprep.subr.mxu0 0.0
    %2172 = vmatpush1.msra.mxu0 0.0
    %2173 = vmatprep.subr.mxu0 %v1022
    %2174 = vmatpush1.msra.mxu0 %v1021
    %2175 = vmatprep.subr.mxu0 %v1020
    %2176 = vmatpush1.msra.mxu0 %v1019
    %2177 = vmatprep.subr.mxu0 0.0
    %2178 = vmatpush2.msra.mxu0 0.0
    %2179 = vmatprep.subr.mxu0 0.0
    %2180 = vmatpush2.msra.mxu0 0.0
    %2181 = vmatprep.subr.mxu0 0.0
    %2182 = vmatpush2.msra.mxu0 0.0
    %2183 = vmatprep.subr.mxu0 0.0
    %2184 = vmatpush2.msra.mxu0 0.0
    %2185 = vmatprep.subr.mxu0 0.0
    %2186 = vmatpush2.msra.mxu0 0.0
    %2187 = vmatprep.subr.mxu0 0.0
    %2188 = vmatpush2.msra.mxu0 0.0
    %2189 = vmatprep.subr.mxu0 0.0
    %2190 = vmatpush2.msra.mxu0 0.0
    %2191 = vmatprep.subr.mxu0 0.0
    %2192 = vmatpush2.msra.mxu0 0.0
    %2193 = vmatprep.subr.mxu0 0.0
    %2194 = vmatpush2.msra.mxu0 0.0
    %2195 = vmatprep.subr.mxu0 0.0
    %2196 = vmatpush2.msra.mxu0 0.0
    %2197 = vmatprep.subr.mxu0 0.0
    %2198 = vmatpush2.msra.mxu0 0.0
    %2199 = vmatprep.subr.mxu0 0.0
    %2200 = vmatpush2.msra.mxu0 0.0
    %2201 = vmatprep.subr.mxu0 0.0
    %2202 = vmatpush2.msra.mxu0 0.0
    %2203 = vmatprep.subr.mxu0 0.0
    %2204 = vmatpush2.msra.mxu0 0.0
    %2205 = vmatprep.subr.mxu0 0.0
    %2206 = vmatpush2.msra.mxu0 0.0
    %2207 = vmatprep.subr.mxu0 0.0
    %2208 = vmatpush2.msra.mxu0 0.0
    %2209 = vmatprep.mubr.f32.mxu0 0.0
    %2210 = vmatmul.mubr.f32.gmra.mxu0 %v2143
    %v2211 = vpop.f32.mrf.mxu0
    %v2212 = vadd.f32 %v1191, %v2211
    %v2213 = vpop.f32.mrf.mxu0
    %v2214 = vadd.f32 %v1195, %v2213
    %2215 = vdwg.mxu0
    %2216 = vmatprep.subr.mxu0 0.0
    %2217 = vmatpush1.msra.mxu0 0.0
    %2218 = vmatprep.subr.mxu0 0.0
    %2219 = vmatpush1.msra.mxu0 0.0
    %2220 = vmatprep.subr.mxu0 0.0
    %2221 = vmatpush1.msra.mxu0 0.0
    %2222 = vmatprep.subr.mxu0 0.0
    %2223 = vmatpush1.msra.mxu0 0.0
    %2224 = vmatprep.subr.mxu0 0.0
    %2225 = vmatpush1.msra.mxu0 0.0
    %2226 = vmatprep.subr.mxu0 0.0
    %2227 = vmatpush1.msra.mxu0 0.0
    %2228 = vmatprep.subr.mxu0 0.0
    %2229 = vmatpush1.msra.mxu0 0.0
    %2230 = vmatprep.subr.mxu0 0.0
    %2231 = vmatpush1.msra.mxu0 0.0
    %2232 = vmatprep.subr.mxu0 %v1039
    %2233 = vmatpush1.msra.mxu0 %v1038
    %2234 = vmatprep.subr.mxu0 %v1037
    %2235 = vmatpush1.msra.mxu0 %v1036
    %2236 = vmatprep.subr.mxu0 %v1035
    %2237 = vmatpush1.msra.mxu0 %v1034
    %2238 = vmatprep.subr.mxu0 %v1033
    %2239 = vmatpush1.msra.mxu0 %v1032
    %2240 = vmatprep.subr.mxu0 %v1031
    %2241 = vmatpush1.msra.mxu0 %v1030
    %2242 = vmatprep.subr.mxu0 %v1029
    %2243 = vmatpush1.msra.mxu0 %v1028
    %2244 = vmatprep.subr.mxu0 %v1027
    %2245 = vmatpush1.msra.mxu0 %v1026
    %2246 = vmatprep.subr.mxu0 %v1025
    %2247 = vmatpush1.msra.mxu0 %v1024
    %2248 = vmatprep.subr.mxu0 0.0
    %2249 = vmatpush2.msra.mxu0 0.0
    %2250 = vmatprep.subr.mxu0 0.0
    %2251 = vmatpush2.msra.mxu0 0.0
    %2252 = vmatprep.subr.mxu0 0.0
    %2253 = vmatpush2.msra.mxu0 0.0
    %2254 = vmatprep.subr.mxu0 0.0
    %2255 = vmatpush2.msra.mxu0 0.0
    %2256 = vmatprep.subr.mxu0 0.0
    %2257 = vmatpush2.msra.mxu0 0.0
    %2258 = vmatprep.subr.mxu0 0.0
    %2259 = vmatpush2.msra.mxu0 0.0
    %2260 = vmatprep.subr.mxu0 0.0
    %2261 = vmatpush2.msra.mxu0 0.0
    %2262 = vmatprep.subr.mxu0 0.0
    %2263 = vmatpush2.msra.mxu0 0.0
    %2264 = vmatprep.subr.mxu0 0.0
    %2265 = vmatpush2.msra.mxu0 0.0
    %2266 = vmatprep.subr.mxu0 0.0
    %2267 = vmatpush2.msra.mxu0 0.0
    %2268 = vmatprep.subr.mxu0 0.0
    %2269 = vmatpush2.msra.mxu0 0.0
    %2270 = vmatprep.subr.mxu0 0.0
    %2271 = vmatpush2.msra.mxu0 0.0
    %2272 = vmatprep.subr.mxu0 0.0
    %2273 = vmatpush2.msra.mxu0 0.0
    %2274 = vmatprep.subr.mxu0 0.0
    %2275 = vmatpush2.msra.mxu0 0.0
    %2276 = vmatprep.subr.mxu0 0.0
    %2277 = vmatpush2.msra.mxu0 0.0
    %2278 = vmatprep.subr.mxu0 0.0
    %2279 = vmatpush2.msra.mxu0 0.0
    %2280 = vmatprep.mubr.f32.mxu0 0.0
    %2281 = vmatmul.mubr.f32.gmra.mxu0 %v1852
    %v2282 = vpop.f32.mrf.mxu0
    %v2283 = vadd.f32 0.0, %v2282
    %v2284 = vpop.f32.mrf.mxu0
    %v2285 = vadd.f32 0.0, %v2284
    %2286 = vdwg.mxu0
    %v2287 = vadd.f32 %v2212, %v2283
    %v2288 = vadd.f32 %v2214, %v2285
    %v2289 = vxor.u32 %v2287, 2147483648
    %v2290 = vmul.f32 %v2289, 1.442695
    %v2291 = vpow.pop %v2290
    %v2292 = vadd.f32 %v2291, 1.0
    %v2293 = vrcp.pop %v2292
    %v2294 = vmul.f32 1.0, %v2293
    %v2295 = vtanh.pop %v2288
    %v2296 = vxor.u32 %v2288, 2147483648
    %v2297 = vmul.f32 %v2296, 1.442695
    %v2298 = vpow.pop %v2297
    %v2299 = vadd.f32 %v2298, 1.0
    %v2300 = vrcp.pop %v2299
    %v2301 = vmul.f32 1.0, %v2300
    %v2302 = vmul.f32 %v2294, %v1846
    %v2303 = vmul.f32 %v2294, %v2295
    %2305 = vrot.lane.b32.xlu0 %v2303, 64
    %v2306 = vpop.permute.xlu0 %2305
    %v2308 = vadd.f32 %v2302, %v2306
    %v2309 = vtanh.pop %v2308
    %v2310 = vmul.f32 %v2301, %v2309
    %2312 = vrot.lane.b32.xlu0 %v2310, 64
    %v2313 = vpop.permute.xlu0 %2312
    %v2314 = vsel %vm1272, %v2313, 0
    %2316 = vmatprep.subr.mxu0 0.0
    %2317 = vmatpush1.msra.mxu0 0.0
    %2318 = vmatprep.subr.mxu0 0.0
    %2319 = vmatpush1.msra.mxu0 0.0
    %2320 = vmatprep.subr.mxu0 0.0
    %2321 = vmatpush1.msra.mxu0 0.0
    %2322 = vmatprep.subr.mxu0 0.0
    %2323 = vmatpush1.msra.mxu0 0.0
    %2324 = vmatprep.subr.mxu0 0.0
    %2325 = vmatpush1.msra.mxu0 0.0
    %2326 = vmatprep.subr.mxu0 0.0
    %2327 = vmatpush1.msra.mxu0 0.0
    %2328 = vmatprep.subr.mxu0 0.0
    %2329 = vmatpush1.msra.mxu0 0.0
    %2330 = vmatprep.subr.mxu0 0.0
    %2331 = vmatpush1.msra.mxu0 0.0
    %2332 = vmatprep.subr.mxu0 0.0
    %2333 = vmatpush1.msra.mxu0 %v1047
    %2334 = vmatprep.subr.mxu0 0.0
    %2335 = vmatpush1.msra.mxu0 %v1046
    %2336 = vmatprep.subr.mxu0 0.0
    %2337 = vmatpush1.msra.mxu0 %v1045
    %2338 = vmatprep.subr.mxu0 0.0
    %2339 = vmatpush1.msra.mxu0 %v1044
    %2340 = vmatprep.subr.mxu0 0.0
    %2341 = vmatpush1.msra.mxu0 %v1043
    %2342 = vmatprep.subr.mxu0 0.0
    %2343 = vmatpush1.msra.mxu0 %v1042
    %2344 = vmatprep.subr.mxu0 0.0
    %2345 = vmatpush1.msra.mxu0 %v1041
    %2346 = vmatprep.subr.mxu0 0.0
    %2347 = vmatpush1.msra.mxu0 %v1040
    %2348 = vmatprep.subr.mxu0 0.0
    %2349 = vmatpush2.msra.mxu0 0.0
    %2350 = vmatprep.subr.mxu0 0.0
    %2351 = vmatpush2.msra.mxu0 0.0
    %2352 = vmatprep.subr.mxu0 0.0
    %2353 = vmatpush2.msra.mxu0 0.0
    %2354 = vmatprep.subr.mxu0 0.0
    %2355 = vmatpush2.msra.mxu0 0.0
    %2356 = vmatprep.subr.mxu0 0.0
    %2357 = vmatpush2.msra.mxu0 0.0
    %2358 = vmatprep.subr.mxu0 0.0
    %2359 = vmatpush2.msra.mxu0 0.0
    %2360 = vmatprep.subr.mxu0 0.0
    %2361 = vmatpush2.msra.mxu0 0.0
    %2362 = vmatprep.subr.mxu0 0.0
    %2363 = vmatpush2.msra.mxu0 0.0
    %2364 = vmatprep.subr.mxu0 0.0
    %2365 = vmatpush2.msra.mxu0 0.0
    %2366 = vmatprep.subr.mxu0 0.0
    %2367 = vmatpush2.msra.mxu0 0.0
    %2368 = vmatprep.subr.mxu0 0.0
    %2369 = vmatpush2.msra.mxu0 0.0
    %2370 = vmatprep.subr.mxu0 0.0
    %2371 = vmatpush2.msra.mxu0 0.0
    %2372 = vmatprep.subr.mxu0 0.0
    %2373 = vmatpush2.msra.mxu0 0.0
    %2374 = vmatprep.subr.mxu0 0.0
    %2375 = vmatpush2.msra.mxu0 0.0
    %2376 = vmatprep.subr.mxu0 0.0
    %2377 = vmatpush2.msra.mxu0 0.0
    %2378 = vmatprep.subr.mxu0 0.0
    %2379 = vmatpush2.msra.mxu0 0.0
    %2380 = vmatprep.mubr.f32.mxu0 0.0
    %2381 = vmatmul.mubr.f32.gmra.mxu0 %v2314
    %v2382 = vpop.f32.mrf.mxu0
    %v2383 = vadd.f32 %v1375, %v2382
    %v2384 = vpop.f32.mrf.mxu0
    %2385 = vdwg.mxu0
    %v2386 = vmax.f32 %v2383, 0.0
    %v2388 = vsel %vm1272, %v2386, 0
    %2390 = vmatprep.subr.mxu0 0.0
    %2391 = vmatpush1.msra.mxu0 0.0
    %2392 = vmatprep.subr.mxu0 0.0
    %2393 = vmatpush1.msra.mxu0 0.0
    %2394 = vmatprep.subr.mxu0 0.0
    %2395 = vmatpush1.msra.mxu0 0.0
    %2396 = vmatprep.subr.mxu0 0.0
    %2397 = vmatpush1.msra.mxu0 0.0
    %2398 = vmatprep.subr.mxu0 0.0
    %2399 = vmatpush1.msra.mxu0 0.0
    %2400 = vmatprep.subr.mxu0 0.0
    %2401 = vmatpush1.msra.mxu0 0.0
    %2402 = vmatprep.subr.mxu0 0.0
    %2403 = vmatpush1.msra.mxu0 0.0
    %2404 = vmatprep.subr.mxu0 0.0
    %2405 = vmatpush1.msra.mxu0 0.0
    %2406 = vmatprep.subr.mxu0 0.0
    %2407 = vmatpush1.msra.mxu0 %v1056
    %2408 = vmatprep.subr.mxu0 0.0
    %2409 = vmatpush1.msra.mxu0 %v1055
    %2410 = vmatprep.subr.mxu0 0.0
    %2411 = vmatpush1.msra.mxu0 %v1054
    %2412 = vmatprep.subr.mxu0 0.0
    %2413 = vmatpush1.msra.mxu0 %v1053
    %2414 = vmatprep.subr.mxu0 0.0
    %2415 = vmatpush1.msra.mxu0 %v1052
    %2416 = vmatprep.subr.mxu0 0.0
    %2417 = vmatpush1.msra.mxu0 %v1051
    %2418 = vmatprep.subr.mxu0 0.0
    %2419 = vmatpush1.msra.mxu0 %v1050
    %2420 = vmatprep.subr.mxu0 0.0
    %2421 = vmatpush1.msra.mxu0 %v1049
    %2422 = vmatprep.subr.mxu0 0.0
    %2423 = vmatpush2.msra.mxu0 0.0
    %2424 = vmatprep.subr.mxu0 0.0
    %2425 = vmatpush2.msra.mxu0 0.0
    %2426 = vmatprep.subr.mxu0 0.0
    %2427 = vmatpush2.msra.mxu0 0.0
    %2428 = vmatprep.subr.mxu0 0.0
    %2429 = vmatpush2.msra.mxu0 0.0
    %2430 = vmatprep.subr.mxu0 0.0
    %2431 = vmatpush2.msra.mxu0 0.0
    %2432 = vmatprep.subr.mxu0 0.0
    %2433 = vmatpush2.msra.mxu0 0.0
    %2434 = vmatprep.subr.mxu0 0.0
    %2435 = vmatpush2.msra.mxu0 0.0
    %2436 = vmatprep.subr.mxu0 0.0
    %2437 = vmatpush2.msra.mxu0 0.0
    %2438 = vmatprep.subr.mxu0 0.0
    %2439 = vmatpush2.msra.mxu0 0.0
    %2440 = vmatprep.subr.mxu0 0.0
    %2441 = vmatpush2.msra.mxu0 0.0
    %2442 = vmatprep.subr.mxu0 0.0
    %2443 = vmatpush2.msra.mxu0 0.0
    %2444 = vmatprep.subr.mxu0 0.0
    %2445 = vmatpush2.msra.mxu0 0.0
    %2446 = vmatprep.subr.mxu0 0.0
    %2447 = vmatpush2.msra.mxu0 0.0
    %2448 = vmatprep.subr.mxu0 0.0
    %2449 = vmatpush2.msra.mxu0 0.0
    %2450 = vmatprep.subr.mxu0 0.0
    %2451 = vmatpush2.msra.mxu0 0.0
    %2452 = vmatprep.subr.mxu0 0.0
    %2453 = vmatpush2.msra.mxu0 0.0
    %2454 = vmatprep.mubr.f32.mxu0 0.0
    %2455 = vmatmul.mubr.f32.gmra.mxu0 %v2388
    %v2456 = vpop.f32.mrf.mxu0
    %v2457 = vadd.f32 %v1457, %v2456
    %v2458 = vpop.f32.mrf.mxu0
    %2459 = vdwg.mxu0
    %v2460 = vxor.u32 %v2457, 2147483648
    %v2461 = vmul.f32 %v2460, 1.442695
    %v2462 = vpow.pop %v2461
    %v2463 = vadd.f32 %v2462, 1.0
    %v2464 = vrcp.pop %v2463
    %v2465 = vmul.f32 1.0, %v2464
    %v2466 = vsel %vm1534, %v2465, %v2457
    %v2467 = vtanh.pop %v2457
    %v2468 = vmul.f32 %v2467, 3.1415927
    %v2469 = vsel %vm1542, %v2468, %v2466
    %v2472 = vunpack.c.l.s4 1966171168
    %v2473 = vunpack.c.0.s8 %v2472
    %v2474 = vlaneseq
    %v2475 = vshrl.u32 %v2474, 7
    %v2476 = vsub.s32 %v2473, %v2475
    %v2477 = vrot.slane %v2469, %v2476
    %v2478 = vcombine.high %v2477, %v2477
    %v2480 = vunpack.c.l.s4 1966171168
    %v2481 = vunpack.c.0.s8 %v2480
    %v2482 = vlaneseq
    %v2483 = vshrl.u32 %v2482, 7
    %v2484 = vsub.s32 %v2481, %v2483
    %v2485 = vrot.slane %v2477, %v2484
    %v2487 = vunpack.c.l.s4 1966171168
    %v2488 = vunpack.c.0.s8 %v2487
    %v2489 = vlaneseq
    %v2490 = vshrl.u32 %v2489, 7
    %v2491 = vsub.s32 %v2488, %v2490
    %v2492 = vrot.slane %v2478, %v2491
    %2495 = vst [vmem:[%s23 + $0x2] sm:$0x1] %v2485
    %2496 = vst [vmem:[%s23 + $0xa] sm:$0x1] %v2492
    %v2497 = vld [vmem:[%s1 + $0x3] sm:$0x1]
    %v2498 = vld [vmem:[%s1 + $0xb] sm:$0x1]
    %2500 = vset.pattern.permute.xlu0 0
    %2501 = vperm.xlu0 %2500, %v2497
    %v2502 = vpop.permute.xlu0 %2501
    %2505 = vset.pattern.permute.xlu0 0
    %2506 = vperm.xlu0 %2505, %v2498
    %v2507 = vpop.permute.xlu0 %2506
    %v2509 = vmul.f32 %v2502, %v1073
    %v2510 = vmul.f32 %v2507, %v1073
    %2511 = vset.pattern.permute.xlu0 1
    %2512 = vperm.xlu0 %2511, %v2497
    %v2513 = vpop.permute.xlu0 %2512
    %2515 = vset.pattern.permute.xlu0 1
    %2516 = vperm.xlu0 %2515, %v2498
    %v2517 = vpop.permute.xlu0 %2516
    %v2519 = vmul.f32 %v2513, %v1087
    %v2520 = vmul.f32 %v2517, %v1087
    %v2521 = vadd.f32 %v2509, %v2519
    %v2522 = vadd.f32 %v2510, %v2520
    %v2523 = vadd.f32 %v2521, %v1096
    %v2524 = vadd.f32 %v2522, %v1096
    %v2525 = vmax.f32 %v2523, 0.0
    %v2526 = vmax.f32 %v2524, 0.0
    %v2529 = vrot.slane %v2526, 7
    %v2530 = vsel %vm1111, %v2529, %v2525
    %v2531 = vsel %vm1113, %v2530, 0
    %2533 = vmatprep.subr.mxu0 0.0
    %2534 = vmatpush1.msra.mxu0 0.0
    %2535 = vmatprep.subr.mxu0 0.0
    %2536 = vmatpush1.msra.mxu0 0.0
    %2537 = vmatprep.subr.mxu0 0.0
    %2538 = vmatpush1.msra.mxu0 0.0
    %2539 = vmatprep.subr.mxu0 0.0
    %2540 = vmatpush1.msra.mxu0 0.0
    %2541 = vmatprep.subr.mxu0 0.0
    %2542 = vmatpush1.msra.mxu0 0.0
    %2543 = vmatprep.subr.mxu0 0.0
    %2544 = vmatpush1.msra.mxu0 0.0
    %2545 = vmatprep.subr.mxu0 0.0
    %2546 = vmatpush1.msra.mxu0 0.0
    %2547 = vmatprep.subr.mxu0 0.0
    %2548 = vmatpush1.msra.mxu0 0.0
    %2549 = vmatprep.subr.mxu0 0.0
    %2550 = vmatpush1.msra.mxu0 0.0
    %2551 = vmatprep.subr.mxu0 0.0
    %2552 = vmatpush1.msra.mxu0 0.0
    %2553 = vmatprep.subr.mxu0 0.0
    %2554 = vmatpush1.msra.mxu0 0.0
    %2555 = vmatprep.subr.mxu0 0.0
    %2556 = vmatpush1.msra.mxu0 0.0
    %2557 = vmatprep.subr.mxu0 0.0
    %2558 = vmatpush1.msra.mxu0 0.0
    %2559 = vmatprep.subr.mxu0 0.0
    %2560 = vmatpush1.msra.mxu0 0.0
    %2561 = vmatprep.subr.mxu0 0.0
    %2562 = vmatpush1.msra.mxu0 %v1017
    %2563 = vmatprep.subr.mxu0 0.0
    %2564 = vmatpush1.msra.mxu0 %v1016
    %2565 = vmatprep.subr.mxu0 0.0
    %2566 = vmatpush2.msra.mxu0 0.0
    %2567 = vmatprep.subr.mxu0 0.0
    %2568 = vmatpush2.msra.mxu0 0.0
    %2569 = vmatprep.subr.mxu0 0.0
    %2570 = vmatpush2.msra.mxu0 0.0
    %2571 = vmatprep.subr.mxu0 0.0
    %2572 = vmatpush2.msra.mxu0 0.0
    %2573 = vmatprep.subr.mxu0 0.0
    %2574 = vmatpush2.msra.mxu0 0.0
    %2575 = vmatprep.subr.mxu0 0.0
    %2576 = vmatpush2.msra.mxu0 0.0
    %2577 = vmatprep.subr.mxu0 0.0
    %2578 = vmatpush2.msra.mxu0 0.0
    %2579 = vmatprep.subr.mxu0 0.0
    %2580 = vmatpush2.msra.mxu0 0.0
    %2581 = vmatprep.subr.mxu0 0.0
    %2582 = vmatpush2.msra.mxu0 0.0
    %2583 = vmatprep.subr.mxu0 0.0
    %2584 = vmatpush2.msra.mxu0 0.0
    %2585 = vmatprep.subr.mxu0 0.0
    %2586 = vmatpush2.msra.mxu0 0.0
    %2587 = vmatprep.subr.mxu0 0.0
    %2588 = vmatpush2.msra.mxu0 0.0
    %2589 = vmatprep.subr.mxu0 0.0
    %2590 = vmatpush2.msra.mxu0 0.0
    %2591 = vmatprep.subr.mxu0 0.0
    %2592 = vmatpush2.msra.mxu0 0.0
    %2593 = vmatprep.subr.mxu0 0.0
    %2594 = vmatpush2.msra.mxu0 0.0
    %2595 = vmatprep.subr.mxu0 0.0
    %2596 = vmatpush2.msra.mxu0 0.0
    %2597 = vmatprep.mubr.f32.mxu0 0.0
    %2598 = vmatmul.mubr.f32.gmra.mxu0 %v2531
    %v2599 = vpop.f32.mrf.mxu0
    %v2600 = vadd.f32 %v1106, %v2599
    %v2601 = vpop.f32.mrf.mxu0
    %2602 = vdwg.mxu0
    %v2603 = vmax.f32 %v2600, 0.0
    %v2605 = vsel %vm1113, %v2603, 0
    %2607 = vmatprep.subr.mxu0 0.0
    %2608 = vmatpush1.msra.mxu0 0.0
    %2609 = vmatprep.subr.mxu0 0.0
    %2610 = vmatpush1.msra.mxu0 0.0
    %2611 = vmatprep.subr.mxu0 0.0
    %2612 = vmatpush1.msra.mxu0 0.0
    %2613 = vmatprep.subr.mxu0 0.0
    %2614 = vmatpush1.msra.mxu0 0.0
    %2615 = vmatprep.subr.mxu0 0.0
    %2616 = vmatpush1.msra.mxu0 0.0
    %2617 = vmatprep.subr.mxu0 0.0
    %2618 = vmatpush1.msra.mxu0 0.0
    %2619 = vmatprep.subr.mxu0 0.0
    %2620 = vmatpush1.msra.mxu0 0.0
    %2621 = vmatprep.subr.mxu0 0.0
    %2622 = vmatpush1.msra.mxu0 0.0
    %2623 = vmatprep.subr.mxu0 0.0
    %2624 = vmatpush1.msra.mxu0 0.0
    %2625 = vmatprep.subr.mxu0 0.0
    %2626 = vmatpush1.msra.mxu0 0.0
    %2627 = vmatprep.subr.mxu0 0.0
    %2628 = vmatpush1.msra.mxu0 0.0
    %2629 = vmatprep.subr.mxu0 0.0
    %2630 = vmatpush1.msra.mxu0 0.0
    %2631 = vmatprep.subr.mxu0 0.0
    %2632 = vmatpush1.msra.mxu0 0.0
    %2633 = vmatprep.subr.mxu0 0.0
    %2634 = vmatpush1.msra.mxu0 0.0
    %2635 = vmatprep.subr.mxu0 %v1022
    %2636 = vmatpush1.msra.mxu0 %v1021
    %2637 = vmatprep.subr.mxu0 %v1020
    %2638 = vmatpush1.msra.mxu0 %v1019
    %2639 = vmatprep.subr.mxu0 0.0
    %2640 = vmatpush2.msra.mxu0 0.0
    %2641 = vmatprep.subr.mxu0 0.0
    %2642 = vmatpush2.msra.mxu0 0.0
    %2643 = vmatprep.subr.mxu0 0.0
    %2644 = vmatpush2.msra.mxu0 0.0
    %2645 = vmatprep.subr.mxu0 0.0
    %2646 = vmatpush2.msra.mxu0 0.0
    %2647 = vmatprep.subr.mxu0 0.0
    %2648 = vmatpush2.msra.mxu0 0.0
    %2649 = vmatprep.subr.mxu0 0.0
    %2650 = vmatpush2.msra.mxu0 0.0
    %2651 = vmatprep.subr.mxu0 0.0
    %2652 = vmatpush2.msra.mxu0 0.0
    %2653 = vmatprep.subr.mxu0 0.0
    %2654 = vmatpush2.msra.mxu0 0.0
    %2655 = vmatprep.subr.mxu0 0.0
    %2656 = vmatpush2.msra.mxu0 0.0
    %2657 = vmatprep.subr.mxu0 0.0
    %2658 = vmatpush2.msra.mxu0 0.0
    %2659 = vmatprep.subr.mxu0 0.0
    %2660 = vmatpush2.msra.mxu0 0.0
    %2661 = vmatprep.subr.mxu0 0.0
    %2662 = vmatpush2.msra.mxu0 0.0
    %2663 = vmatprep.subr.mxu0 0.0
    %2664 = vmatpush2.msra.mxu0 0.0
    %2665 = vmatprep.subr.mxu0 0.0
    %2666 = vmatpush2.msra.mxu0 0.0
    %2667 = vmatprep.subr.mxu0 0.0
    %2668 = vmatpush2.msra.mxu0 0.0
    %2669 = vmatprep.subr.mxu0 0.0
    %2670 = vmatpush2.msra.mxu0 0.0
    %2671 = vmatprep.mubr.f32.mxu0 0.0
    %2672 = vmatmul.mubr.f32.gmra.mxu0 %v2605
    %v2673 = vpop.f32.mrf.mxu0
    %v2674 = vadd.f32 %v1191, %v2673
    %v2675 = vpop.f32.mrf.mxu0
    %v2676 = vadd.f32 %v1195, %v2675
    %2677 = vdwg.mxu0
    %2678 = vmatprep.subr.mxu0 0.0
    %2679 = vmatpush1.msra.mxu0 0.0
    %2680 = vmatprep.subr.mxu0 0.0
    %2681 = vmatpush1.msra.mxu0 0.0
    %2682 = vmatprep.subr.mxu0 0.0
    %2683 = vmatpush1.msra.mxu0 0.0
    %2684 = vmatprep.subr.mxu0 0.0
    %2685 = vmatpush1.msra.mxu0 0.0
    %2686 = vmatprep.subr.mxu0 0.0
    %2687 = vmatpush1.msra.mxu0 0.0
    %2688 = vmatprep.subr.mxu0 0.0
    %2689 = vmatpush1.msra.mxu0 0.0
    %2690 = vmatprep.subr.mxu0 0.0
    %2691 = vmatpush1.msra.mxu0 0.0
    %2692 = vmatprep.subr.mxu0 0.0
    %2693 = vmatpush1.msra.mxu0 0.0
    %2694 = vmatprep.subr.mxu0 %v1039
    %2695 = vmatpush1.msra.mxu0 %v1038
    %2696 = vmatprep.subr.mxu0 %v1037
    %2697 = vmatpush1.msra.mxu0 %v1036
    %2698 = vmatprep.subr.mxu0 %v1035
    %2699 = vmatpush1.msra.mxu0 %v1034
    %2700 = vmatprep.subr.mxu0 %v1033
    %2701 = vmatpush1.msra.mxu0 %v1032
    %2702 = vmatprep.subr.mxu0 %v1031
    %2703 = vmatpush1.msra.mxu0 %v1030
    %2704 = vmatprep.subr.mxu0 %v1029
    %2705 = vmatpush1.msra.mxu0 %v1028
    %2706 = vmatprep.subr.mxu0 %v1027
    %2707 = vmatpush1.msra.mxu0 %v1026
    %2708 = vmatprep.subr.mxu0 %v1025
    %2709 = vmatpush1.msra.mxu0 %v1024
    %2710 = vmatprep.subr.mxu0 0.0
    %2711 = vmatpush2.msra.mxu0 0.0
    %2712 = vmatprep.subr.mxu0 0.0
    %2713 = vmatpush2.msra.mxu0 0.0
    %2714 = vmatprep.subr.mxu0 0.0
    %2715 = vmatpush2.msra.mxu0 0.0
    %2716 = vmatprep.subr.mxu0 0.0
    %2717 = vmatpush2.msra.mxu0 0.0
    %2718 = vmatprep.subr.mxu0 0.0
    %2719 = vmatpush2.msra.mxu0 0.0
    %2720 = vmatprep.subr.mxu0 0.0
    %2721 = vmatpush2.msra.mxu0 0.0
    %2722 = vmatprep.subr.mxu0 0.0
    %2723 = vmatpush2.msra.mxu0 0.0
    %2724 = vmatprep.subr.mxu0 0.0
    %2725 = vmatpush2.msra.mxu0 0.0
    %2726 = vmatprep.subr.mxu0 0.0
    %2727 = vmatpush2.msra.mxu0 0.0
    %2728 = vmatprep.subr.mxu0 0.0
    %2729 = vmatpush2.msra.mxu0 0.0
    %2730 = vmatprep.subr.mxu0 0.0
    %2731 = vmatpush2.msra.mxu0 0.0
    %2732 = vmatprep.subr.mxu0 0.0
    %2733 = vmatpush2.msra.mxu0 0.0
    %2734 = vmatprep.subr.mxu0 0.0
    %2735 = vmatpush2.msra.mxu0 0.0
    %2736 = vmatprep.subr.mxu0 0.0
    %2737 = vmatpush2.msra.mxu0 0.0
    %2738 = vmatprep.subr.mxu0 0.0
    %2739 = vmatpush2.msra.mxu0 0.0
    %2740 = vmatprep.subr.mxu0 0.0
    %2741 = vmatpush2.msra.mxu0 0.0
    %2742 = vmatprep.mubr.f32.mxu0 0.0
    %2743 = vmatmul.mubr.f32.gmra.mxu0 %v2314
    %v2744 = vpop.f32.mrf.mxu0
    %v2745 = vadd.f32 0.0, %v2744
    %v2746 = vpop.f32.mrf.mxu0
    %v2747 = vadd.f32 0.0, %v2746
    %2748 = vdwg.mxu0
    %v2749 = vadd.f32 %v2674, %v2745
    %v2750 = vadd.f32 %v2676, %v2747
    %v2751 = vxor.u32 %v2749, 2147483648
    %v2752 = vmul.f32 %v2751, 1.442695
    %v2753 = vpow.pop %v2752
    %v2754 = vadd.f32 %v2753, 1.0
    %v2755 = vrcp.pop %v2754
    %v2756 = vmul.f32 1.0, %v2755
    %v2757 = vtanh.pop %v2750
    %v2758 = vxor.u32 %v2750, 2147483648
    %v2759 = vmul.f32 %v2758, 1.442695
    %v2760 = vpow.pop %v2759
    %v2761 = vadd.f32 %v2760, 1.0
    %v2762 = vrcp.pop %v2761
    %v2763 = vmul.f32 1.0, %v2762
    %v2764 = vmul.f32 %v2756, %v2308
    %v2765 = vmul.f32 %v2756, %v2757
    %2767 = vrot.lane.b32.xlu0 %v2765, 64
    %v2768 = vpop.permute.xlu0 %2767
    %v2770 = vadd.f32 %v2764, %v2768
    %v2771 = vtanh.pop %v2770
    %v2772 = vmul.f32 %v2763, %v2771
    %2774 = vrot.lane.b32.xlu0 %v2772, 64
    %v2775 = vpop.permute.xlu0 %2774
    %v2776 = vsel %vm1272, %v2775, 0
    %2778 = vmatprep.subr.mxu0 0.0
    %2779 = vmatpush1.msra.mxu0 0.0
    %2780 = vmatprep.subr.mxu0 0.0
    %2781 = vmatpush1.msra.mxu0 0.0
    %2782 = vmatprep.subr.mxu0 0.0
    %2783 = vmatpush1.msra.mxu0 0.0
    %2784 = vmatprep.subr.mxu0 0.0
    %2785 = vmatpush1.msra.mxu0 0.0
    %2786 = vmatprep.subr.mxu0 0.0
    %2787 = vmatpush1.msra.mxu0 0.0
    %2788 = vmatprep.subr.mxu0 0.0
    %2789 = vmatpush1.msra.mxu0 0.0
    %2790 = vmatprep.subr.mxu0 0.0
    %2791 = vmatpush1.msra.mxu0 0.0
    %2792 = vmatprep.subr.mxu0 0.0
    %2793 = vmatpush1.msra.mxu0 0.0
    %2794 = vmatprep.subr.mxu0 0.0
    %2795 = vmatpush1.msra.mxu0 %v1047
    %2796 = vmatprep.subr.mxu0 0.0
    %2797 = vmatpush1.msra.mxu0 %v1046
    %2798 = vmatprep.subr.mxu0 0.0
    %2799 = vmatpush1.msra.mxu0 %v1045
    %2800 = vmatprep.subr.mxu0 0.0
    %2801 = vmatpush1.msra.mxu0 %v1044
    %2802 = vmatprep.subr.mxu0 0.0
    %2803 = vmatpush1.msra.mxu0 %v1043
    %2804 = vmatprep.subr.mxu0 0.0
    %2805 = vmatpush1.msra.mxu0 %v1042
    %2806 = vmatprep.subr.mxu0 0.0
    %2807 = vmatpush1.msra.mxu0 %v1041
    %2808 = vmatprep.subr.mxu0 0.0
    %2809 = vmatpush1.msra.mxu0 %v1040
    %2810 = vmatprep.subr.mxu0 0.0
    %2811 = vmatpush2.msra.mxu0 0.0
    %2812 = vmatprep.subr.mxu0 0.0
    %2813 = vmatpush2.msra.mxu0 0.0
    %2814 = vmatprep.subr.mxu0 0.0
    %2815 = vmatpush2.msra.mxu0 0.0
    %2816 = vmatprep.subr.mxu0 0.0
    %2817 = vmatpush2.msra.mxu0 0.0
    %2818 = vmatprep.subr.mxu0 0.0
    %2819 = vmatpush2.msra.mxu0 0.0
    %2820 = vmatprep.subr.mxu0 0.0
    %2821 = vmatpush2.msra.mxu0 0.0
    %2822 = vmatprep.subr.mxu0 0.0
    %2823 = vmatpush2.msra.mxu0 0.0
    %2824 = vmatprep.subr.mxu0 0.0
    %2825 = vmatpush2.msra.mxu0 0.0
    %2826 = vmatprep.subr.mxu0 0.0
    %2827 = vmatpush2.msra.mxu0 0.0
    %2828 = vmatprep.subr.mxu0 0.0
    %2829 = vmatpush2.msra.mxu0 0.0
    %2830 = vmatprep.subr.mxu0 0.0
    %2831 = vmatpush2.msra.mxu0 0.0
    %2832 = vmatprep.subr.mxu0 0.0
    %2833 = vmatpush2.msra.mxu0 0.0
    %2834 = vmatprep.subr.mxu0 0.0
    %2835 = vmatpush2.msra.mxu0 0.0
    %2836 = vmatprep.subr.mxu0 0.0
    %2837 = vmatpush2.msra.mxu0 0.0
    %2838 = vmatprep.subr.mxu0 0.0
    %2839 = vmatpush2.msra.mxu0 0.0
    %2840 = vmatprep.subr.mxu0 0.0
    %2841 = vmatpush2.msra.mxu0 0.0
    %2842 = vmatprep.mubr.f32.mxu0 0.0
    %2843 = vmatmul.mubr.f32.gmra.mxu0 %v2776
    %v2844 = vpop.f32.mrf.mxu0
    %v2845 = vadd.f32 %v1375, %v2844
    %v2846 = vpop.f32.mrf.mxu0
    %2847 = vdwg.mxu0
    %v2848 = vmax.f32 %v2845, 0.0
    %v2850 = vsel %vm1272, %v2848, 0
    %2852 = vmatprep.subr.mxu0 0.0
    %2853 = vmatpush1.msra.mxu0 0.0
    %2854 = vmatprep.subr.mxu0 0.0
    %2855 = vmatpush1.msra.mxu0 0.0
    %2856 = vmatprep.subr.mxu0 0.0
    %2857 = vmatpush1.msra.mxu0 0.0
    %2858 = vmatprep.subr.mxu0 0.0
    %2859 = vmatpush1.msra.mxu0 0.0
    %2860 = vmatprep.subr.mxu0 0.0
    %2861 = vmatpush1.msra.mxu0 0.0
    %2862 = vmatprep.subr.mxu0 0.0
    %2863 = vmatpush1.msra.mxu0 0.0
    %2864 = vmatprep.subr.mxu0 0.0
    %2865 = vmatpush1.msra.mxu0 0.0
    %2866 = vmatprep.subr.mxu0 0.0
    %2867 = vmatpush1.msra.mxu0 0.0
    %2868 = vmatprep.subr.mxu0 0.0
    %2869 = vmatpush1.msra.mxu0 %v1056
    %2870 = vmatprep.subr.mxu0 0.0
    %2871 = vmatpush1.msra.mxu0 %v1055
    %2872 = vmatprep.subr.mxu0 0.0
    %2873 = vmatpush1.msra.mxu0 %v1054
    %2874 = vmatprep.subr.mxu0 0.0
    %2875 = vmatpush1.msra.mxu0 %v1053
    %2876 = vmatprep.subr.mxu0 0.0
    %2877 = vmatpush1.msra.mxu0 %v1052
    %2878 = vmatprep.subr.mxu0 0.0
    %2879 = vmatpush1.msra.mxu0 %v1051
    %2880 = vmatprep.subr.mxu0 0.0
    %2881 = vmatpush1.msra.mxu0 %v1050
    %2882 = vmatprep.subr.mxu0 0.0
    %2883 = vmatpush1.msra.mxu0 %v1049
    %2884 = vmatprep.subr.mxu0 0.0
    %2885 = vmatpush2.msra.mxu0 0.0
    %2886 = vmatprep.subr.mxu0 0.0
    %2887 = vmatpush2.msra.mxu0 0.0
    %2888 = vmatprep.subr.mxu0 0.0
    %2889 = vmatpush2.msra.mxu0 0.0
    %2890 = vmatprep.subr.mxu0 0.0
    %2891 = vmatpush2.msra.mxu0 0.0
    %2892 = vmatprep.subr.mxu0 0.0
    %2893 = vmatpush2.msra.mxu0 0.0
    %2894 = vmatprep.subr.mxu0 0.0
    %2895 = vmatpush2.msra.mxu0 0.0
    %2896 = vmatprep.subr.mxu0 0.0
    %2897 = vmatpush2.msra.mxu0 0.0
    %2898 = vmatprep.subr.mxu0 0.0
    %2899 = vmatpush2.msra.mxu0 0.0
    %2900 = vmatprep.subr.mxu0 0.0
    %2901 = vmatpush2.msra.mxu0 0.0
    %2902 = vmatprep.subr.mxu0 0.0
    %2903 = vmatpush2.msra.mxu0 0.0
    %2904 = vmatprep.subr.mxu0 0.0
    %2905 = vmatpush2.msra.mxu0 0.0
    %2906 = vmatprep.subr.mxu0 0.0
    %2907 = vmatpush2.msra.mxu0 0.0
    %2908 = vmatprep.subr.mxu0 0.0
    %2909 = vmatpush2.msra.mxu0 0.0
    %2910 = vmatprep.subr.mxu0 0.0
    %2911 = vmatpush2.msra.mxu0 0.0
    %2912 = vmatprep.subr.mxu0 0.0
    %2913 = vmatpush2.msra.mxu0 0.0
    %2914 = vmatprep.subr.mxu0 0.0
    %2915 = vmatpush2.msra.mxu0 0.0
    %2916 = vmatprep.mubr.f32.mxu0 0.0
    %2917 = vmatmul.mubr.f32.gmra.mxu0 %v2850
    %v2918 = vpop.f32.mrf.mxu0
    %v2919 = vadd.f32 %v1457, %v2918
    %v2920 = vpop.f32.mrf.mxu0
    %2921 = vdwg.mxu0
    %v2922 = vxor.u32 %v2919, 2147483648
    %v2923 = vmul.f32 %v2922, 1.442695
    %v2924 = vpow.pop %v2923
    %v2925 = vadd.f32 %v2924, 1.0
    %v2926 = vrcp.pop %v2925
    %v2927 = vmul.f32 1.0, %v2926
    %v2928 = vsel %vm1534, %v2927, %v2919
    %v2929 = vtanh.pop %v2919
    %v2930 = vmul.f32 %v2929, 3.1415927
    %v2931 = vsel %vm1542, %v2930, %v2928
    %v2934 = vunpack.c.l.s4 1966171168
    %v2935 = vunpack.c.0.s8 %v2934
    %v2936 = vlaneseq
    %v2937 = vshrl.u32 %v2936, 7
    %v2938 = vsub.s32 %v2935, %v2937
    %v2939 = vrot.slane %v2931, %v2938
    %v2940 = vcombine.high %v2939, %v2939
    %v2942 = vunpack.c.l.s4 1966171168
    %v2943 = vunpack.c.0.s8 %v2942
    %v2944 = vlaneseq
    %v2945 = vshrl.u32 %v2944, 7
    %v2946 = vsub.s32 %v2943, %v2945
    %v2947 = vrot.slane %v2939, %v2946
    %v2949 = vunpack.c.l.s4 1966171168
    %v2950 = vunpack.c.0.s8 %v2949
    %v2951 = vlaneseq
    %v2952 = vshrl.u32 %v2951, 7
    %v2953 = vsub.s32 %v2950, %v2952
    %v2954 = vrot.slane %v2940, %v2953
    %2957 = vst [vmem:[%s23 + $0x3] sm:$0x1] %v2947
    %2958 = vst [vmem:[%s23 + $0xb] sm:$0x1] %v2954
    %v2959 = vld [vmem:[%s1 + $0x4] sm:$0x1]
    %v2960 = vld [vmem:[%s1 + $0xc] sm:$0x1]
    %2962 = vset.pattern.permute.xlu0 0
    %2963 = vperm.xlu0 %2962, %v2959
    %v2964 = vpop.permute.xlu0 %2963
    %2967 = vset.pattern.permute.xlu0 0
    %2968 = vperm.xlu0 %2967, %v2960
    %v2969 = vpop.permute.xlu0 %2968
    %v2971 = vmul.f32 %v2964, %v1073
    %v2972 = vmul.f32 %v2969, %v1073
    %2973 = vset.pattern.permute.xlu0 1
    %2974 = vperm.xlu0 %2973, %v2959
    %v2975 = vpop.permute.xlu0 %2974
    %2977 = vset.pattern.permute.xlu0 1
    %2978 = vperm.xlu0 %2977, %v2960
    %v2979 = vpop.permute.xlu0 %2978
    %v2981 = vmul.f32 %v2975, %v1087
    %v2982 = vmul.f32 %v2979, %v1087
    %v2983 = vadd.f32 %v2971, %v2981
    %v2984 = vadd.f32 %v2972, %v2982
    %v2985 = vadd.f32 %v2983, %v1096
    %v2986 = vadd.f32 %v2984, %v1096
    %v2987 = vmax.f32 %v2985, 0.0
    %v2988 = vmax.f32 %v2986, 0.0
    %v2991 = vrot.slane %v2988, 7
    %v2992 = vsel %vm1111, %v2991, %v2987
    %v2993 = vsel %vm1113, %v2992, 0
    %2995 = vmatprep.subr.mxu0 0.0
    %2996 = vmatpush1.msra.mxu0 0.0
    %2997 = vmatprep.subr.mxu0 0.0
    %2998 = vmatpush1.msra.mxu0 0.0
    %2999 = vmatprep.subr.mxu0 0.0
    %3000 = vmatpush1.msra.mxu0 0.0
    %3001 = vmatprep.subr.mxu0 0.0
    %3002 = vmatpush1.msra.mxu0 0.0
    %3003 = vmatprep.subr.mxu0 0.0
    %3004 = vmatpush1.msra.mxu0 0.0
    %3005 = vmatprep.subr.mxu0 0.0
    %3006 = vmatpush1.msra.mxu0 0.0
    %3007 = vmatprep.subr.mxu0 0.0
    %3008 = vmatpush1.msra.mxu0 0.0
    %3009 = vmatprep.subr.mxu0 0.0
    %3010 = vmatpush1.msra.mxu0 0.0
    %3011 = vmatprep.subr.mxu0 0.0
    %3012 = vmatpush1.msra.mxu0 0.0
    %3013 = vmatprep.subr.mxu0 0.0
    %3014 = vmatpush1.msra.mxu0 0.0
    %3015 = vmatprep.subr.mxu0 0.0
    %3016 = vmatpush1.msra.mxu0 0.0
    %3017 = vmatprep.subr.mxu0 0.0
    %3018 = vmatpush1.msra.mxu0 0.0
    %3019 = vmatprep.subr.mxu0 0.0
    %3020 = vmatpush1.msra.mxu0 0.0
    %3021 = vmatprep.subr.mxu0 0.0
    %3022 = vmatpush1.msra.mxu0 0.0
    %3023 = vmatprep.subr.mxu0 0.0
    %3024 = vmatpush1.msra.mxu0 %v1017
    %3025 = vmatprep.subr.mxu0 0.0
    %3026 = vmatpush1.msra.mxu0 %v1016
    %3027 = vmatprep.subr.mxu0 0.0
    %3028 = vmatpush2.msra.mxu0 0.0
    %3029 = vmatprep.subr.mxu0 0.0
    %3030 = vmatpush2.msra.mxu0 0.0
    %3031 = vmatprep.subr.mxu0 0.0
    %3032 = vmatpush2.msra.mxu0 0.0
    %3033 = vmatprep.subr.mxu0 0.0
    %3034 = vmatpush2.msra.mxu0 0.0
    %3035 = vmatprep.subr.mxu0 0.0
    %3036 = vmatpush2.msra.mxu0 0.0
    %3037 = vmatprep.subr.mxu0 0.0
    %3038 = vmatpush2.msra.mxu0 0.0
    %3039 = vmatprep.subr.mxu0 0.0
    %3040 = vmatpush2.msra.mxu0 0.0
    %3041 = vmatprep.subr.mxu0 0.0
    %3042 = vmatpush2.msra.mxu0 0.0
    %3043 = vmatprep.subr.mxu0 0.0
    %3044 = vmatpush2.msra.mxu0 0.0
    %3045 = vmatprep.subr.mxu0 0.0
    %3046 = vmatpush2.msra.mxu0 0.0
    %3047 = vmatprep.subr.mxu0 0.0
    %3048 = vmatpush2.msra.mxu0 0.0
    %3049 = vmatprep.subr.mxu0 0.0
    %3050 = vmatpush2.msra.mxu0 0.0
    %3051 = vmatprep.subr.mxu0 0.0
    %3052 = vmatpush2.msra.mxu0 0.0
    %3053 = vmatprep.subr.mxu0 0.0
    %3054 = vmatpush2.msra.mxu0 0.0
    %3055 = vmatprep.subr.mxu0 0.0
    %3056 = vmatpush2.msra.mxu0 0.0
    %3057 = vmatprep.subr.mxu0 0.0
    %3058 = vmatpush2.msra.mxu0 0.0
    %3059 = vmatprep.mubr.f32.mxu0 0.0
    %3060 = vmatmul.mubr.f32.gmra.mxu0 %v2993
    %v3061 = vpop.f32.mrf.mxu0
    %v3062 = vadd.f32 %v1106, %v3061
    %v3063 = vpop.f32.mrf.mxu0
    %3064 = vdwg.mxu0
    %v3065 = vmax.f32 %v3062, 0.0
    %v3067 = vsel %vm1113, %v3065, 0
    %3069 = vmatprep.subr.mxu0 0.0
    %3070 = vmatpush1.msra.mxu0 0.0
    %3071 = vmatprep.subr.mxu0 0.0
    %3072 = vmatpush1.msra.mxu0 0.0
    %3073 = vmatprep.subr.mxu0 0.0
    %3074 = vmatpush1.msra.mxu0 0.0
    %3075 = vmatprep.subr.mxu0 0.0
    %3076 = vmatpush1.msra.mxu0 0.0
    %3077 = vmatprep.subr.mxu0 0.0
    %3078 = vmatpush1.msra.mxu0 0.0
    %3079 = vmatprep.subr.mxu0 0.0
    %3080 = vmatpush1.msra.mxu0 0.0
    %3081 = vmatprep.subr.mxu0 0.0
    %3082 = vmatpush1.msra.mxu0 0.0
    %3083 = vmatprep.subr.mxu0 0.0
    %3084 = vmatpush1.msra.mxu0 0.0
    %3085 = vmatprep.subr.mxu0 0.0
    %3086 = vmatpush1.msra.mxu0 0.0
    %3087 = vmatprep.subr.mxu0 0.0
    %3088 = vmatpush1.msra.mxu0 0.0
    %3089 = vmatprep.subr.mxu0 0.0
    %3090 = vmatpush1.msra.mxu0 0.0
    %3091 = vmatprep.subr.mxu0 0.0
    %3092 = vmatpush1.msra.mxu0 0.0
    %3093 = vmatprep.subr.mxu0 0.0
    %3094 = vmatpush1.msra.mxu0 0.0
    %3095 = vmatprep.subr.mxu0 0.0
    %3096 = vmatpush1.msra.mxu0 0.0
    %3097 = vmatprep.subr.mxu0 %v1022
    %3098 = vmatpush1.msra.mxu0 %v1021
    %3099 = vmatprep.subr.mxu0 %v1020
    %3100 = vmatpush1.msra.mxu0 %v1019
    %3101 = vmatprep.subr.mxu0 0.0
    %3102 = vmatpush2.msra.mxu0 0.0
    %3103 = vmatprep.subr.mxu0 0.0
    %3104 = vmatpush2.msra.mxu0 0.0
    %3105 = vmatprep.subr.mxu0 0.0
    %3106 = vmatpush2.msra.mxu0 0.0
    %3107 = vmatprep.subr.mxu0 0.0
    %3108 = vmatpush2.msra.mxu0 0.0
    %3109 = vmatprep.subr.mxu0 0.0
    %3110 = vmatpush2.msra.mxu0 0.0
    %3111 = vmatprep.subr.mxu0 0.0
    %3112 = vmatpush2.msra.mxu0 0.0
    %3113 = vmatprep.subr.mxu0 0.0
    %3114 = vmatpush2.msra.mxu0 0.0
    %3115 = vmatprep.subr.mxu0 0.0
    %3116 = vmatpush2.msra.mxu0 0.0
    %3117 = vmatprep.subr.mxu0 0.0
    %3118 = vmatpush2.msra.mxu0 0.0
    %3119 = vmatprep.subr.mxu0 0.0
    %3120 = vmatpush2.msra.mxu0 0.0
    %3121 = vmatprep.subr.mxu0 0.0
    %3122 = vmatpush2.msra.mxu0 0.0
    %3123 = vmatprep.subr.mxu0 0.0
    %3124 = vmatpush2.msra.mxu0 0.0
    %3125 = vmatprep.subr.mxu0 0.0
    %3126 = vmatpush2.msra.mxu0 0.0
    %3127 = vmatprep.subr.mxu0 0.0
    %3128 = vmatpush2.msra.mxu0 0.0
    %3129 = vmatprep.subr.mxu0 0.0
    %3130 = vmatpush2.msra.mxu0 0.0
    %3131 = vmatprep.subr.mxu0 0.0
    %3132 = vmatpush2.msra.mxu0 0.0
    %3133 = vmatprep.mubr.f32.mxu0 0.0
    %3134 = vmatmul.mubr.f32.gmra.mxu0 %v3067
    %v3135 = vpop.f32.mrf.mxu0
    %v3136 = vadd.f32 %v1191, %v3135
    %v3137 = vpop.f32.mrf.mxu0
    %v3138 = vadd.f32 %v1195, %v3137
    %3139 = vdwg.mxu0
    %3140 = vmatprep.subr.mxu0 0.0
    %3141 = vmatpush1.msra.mxu0 0.0
    %3142 = vmatprep.subr.mxu0 0.0
    %3143 = vmatpush1.msra.mxu0 0.0
    %3144 = vmatprep.subr.mxu0 0.0
    %3145 = vmatpush1.msra.mxu0 0.0
    %3146 = vmatprep.subr.mxu0 0.0
    %3147 = vmatpush1.msra.mxu0 0.0
    %3148 = vmatprep.subr.mxu0 0.0
    %3149 = vmatpush1.msra.mxu0 0.0
    %3150 = vmatprep.subr.mxu0 0.0
    %3151 = vmatpush1.msra.mxu0 0.0
    %3152 = vmatprep.subr.mxu0 0.0
    %3153 = vmatpush1.msra.mxu0 0.0
    %3154 = vmatprep.subr.mxu0 0.0
    %3155 = vmatpush1.msra.mxu0 0.0
    %3156 = vmatprep.subr.mxu0 %v1039
    %3157 = vmatpush1.msra.mxu0 %v1038
    %3158 = vmatprep.subr.mxu0 %v1037
    %3159 = vmatpush1.msra.mxu0 %v1036
    %3160 = vmatprep.subr.mxu0 %v1035
    %3161 = vmatpush1.msra.mxu0 %v1034
    %3162 = vmatprep.subr.mxu0 %v1033
    %3163 = vmatpush1.msra.mxu0 %v1032
    %3164 = vmatprep.subr.mxu0 %v1031
    %3165 = vmatpush1.msra.mxu0 %v1030
    %3166 = vmatprep.subr.mxu0 %v1029
    %3167 = vmatpush1.msra.mxu0 %v1028
    %3168 = vmatprep.subr.mxu0 %v1027
    %3169 = vmatpush1.msra.mxu0 %v1026
    %3170 = vmatprep.subr.mxu0 %v1025
    %3171 = vmatpush1.msra.mxu0 %v1024
    %3172 = vmatprep.subr.mxu0 0.0
    %3173 = vmatpush2.msra.mxu0 0.0
    %3174 = vmatprep.subr.mxu0 0.0
    %3175 = vmatpush2.msra.mxu0 0.0
    %3176 = vmatprep.subr.mxu0 0.0
    %3177 = vmatpush2.msra.mxu0 0.0
    %3178 = vmatprep.subr.mxu0 0.0
    %3179 = vmatpush2.msra.mxu0 0.0
    %3180 = vmatprep.subr.mxu0 0.0
    %3181 = vmatpush2.msra.mxu0 0.0
    %3182 = vmatprep.subr.mxu0 0.0
    %3183 = vmatpush2.msra.mxu0 0.0
    %3184 = vmatprep.subr.mxu0 0.0
    %3185 = vmatpush2.msra.mxu0 0.0
    %3186 = vmatprep.subr.mxu0 0.0
    %3187 = vmatpush2.msra.mxu0 0.0
    %3188 = vmatprep.subr.mxu0 0.0
    %3189 = vmatpush2.msra.mxu0 0.0
    %3190 = vmatprep.subr.mxu0 0.0
    %3191 = vmatpush2.msra.mxu0 0.0
    %3192 = vmatprep.subr.mxu0 0.0
    %3193 = vmatpush2.msra.mxu0 0.0
    %3194 = vmatprep.subr.mxu0 0.0
    %3195 = vmatpush2.msra.mxu0 0.0
    %3196 = vmatprep.subr.mxu0 0.0
    %3197 = vmatpush2.msra.mxu0 0.0
    %3198 = vmatprep.subr.mxu0 0.0
    %3199 = vmatpush2.msra.mxu0 0.0
    %3200 = vmatprep.subr.mxu0 0.0
    %3201 = vmatpush2.msra.mxu0 0.0
    %3202 = vmatprep.subr.mxu0 0.0
    %3203 = vmatpush2.msra.mxu0 0.0
    %3204 = vmatprep.mubr.f32.mxu0 0.0
    %3205 = vmatmul.mubr.f32.gmra.mxu0 %v2776
    %v3206 = vpop.f32.mrf.mxu0
    %v3207 = vadd.f32 0.0, %v3206
    %v3208 = vpop.f32.mrf.mxu0
    %v3209 = vadd.f32 0.0, %v3208
    %3210 = vdwg.mxu0
    %v3211 = vadd.f32 %v3136, %v3207
    %v3212 = vadd.f32 %v3138, %v3209
    %v3213 = vxor.u32 %v3211, 2147483648
    %v3214 = vmul.f32 %v3213, 1.442695
    %v3215 = vpow.pop %v3214
    %v3216 = vadd.f32 %v3215, 1.0
    %v3217 = vrcp.pop %v3216
    %v3218 = vmul.f32 1.0, %v3217
    %v3219 = vtanh.pop %v3212
    %v3220 = vxor.u32 %v3212, 2147483648
    %v3221 = vmul.f32 %v3220, 1.442695
    %v3222 = vpow.pop %v3221
    %v3223 = vadd.f32 %v3222, 1.0
    %v3224 = vrcp.pop %v3223
    %v3225 = vmul.f32 1.0, %v3224
    %v3226 = vmul.f32 %v3218, %v2770
    %v3227 = vmul.f32 %v3218, %v3219
    %3229 = vrot.lane.b32.xlu0 %v3227, 64
    %v3230 = vpop.permute.xlu0 %3229
    %v3232 = vadd.f32 %v3226, %v3230
    %v3233 = vtanh.pop %v3232
    %v3234 = vmul.f32 %v3225, %v3233
    %3236 = vrot.lane.b32.xlu0 %v3234, 64
    %v3237 = vpop.permute.xlu0 %3236
    %v3238 = vsel %vm1272, %v3237, 0
    %3240 = vmatprep.subr.mxu0 0.0
    %3241 = vmatpush1.msra.mxu0 0.0
    %3242 = vmatprep.subr.mxu0 0.0
    %3243 = vmatpush1.msra.mxu0 0.0
    %3244 = vmatprep.subr.mxu0 0.0
    %3245 = vmatpush1.msra.mxu0 0.0
    %3246 = vmatprep.subr.mxu0 0.0
    %3247 = vmatpush1.msra.mxu0 0.0
    %3248 = vmatprep.subr.mxu0 0.0
    %3249 = vmatpush1.msra.mxu0 0.0
    %3250 = vmatprep.subr.mxu0 0.0
    %3251 = vmatpush1.msra.mxu0 0.0
    %3252 = vmatprep.subr.mxu0 0.0
    %3253 = vmatpush1.msra.mxu0 0.0
    %3254 = vmatprep.subr.mxu0 0.0
    %3255 = vmatpush1.msra.mxu0 0.0
    %3256 = vmatprep.subr.mxu0 0.0
    %3257 = vmatpush1.msra.mxu0 %v1047
    %3258 = vmatprep.subr.mxu0 0.0
    %3259 = vmatpush1.msra.mxu0 %v1046
    %3260 = vmatprep.subr.mxu0 0.0
    %3261 = vmatpush1.msra.mxu0 %v1045
    %3262 = vmatprep.subr.mxu0 0.0
    %3263 = vmatpush1.msra.mxu0 %v1044
    %3264 = vmatprep.subr.mxu0 0.0
    %3265 = vmatpush1.msra.mxu0 %v1043
    %3266 = vmatprep.subr.mxu0 0.0
    %3267 = vmatpush1.msra.mxu0 %v1042
    %3268 = vmatprep.subr.mxu0 0.0
    %3269 = vmatpush1.msra.mxu0 %v1041
    %3270 = vmatprep.subr.mxu0 0.0
    %3271 = vmatpush1.msra.mxu0 %v1040
    %3272 = vmatprep.subr.mxu0 0.0
    %3273 = vmatpush2.msra.mxu0 0.0
    %3274 = vmatprep.subr.mxu0 0.0
    %3275 = vmatpush2.msra.mxu0 0.0
    %3276 = vmatprep.subr.mxu0 0.0
    %3277 = vmatpush2.msra.mxu0 0.0
    %3278 = vmatprep.subr.mxu0 0.0
    %3279 = vmatpush2.msra.mxu0 0.0
    %3280 = vmatprep.subr.mxu0 0.0
    %3281 = vmatpush2.msra.mxu0 0.0
    %3282 = vmatprep.subr.mxu0 0.0
    %3283 = vmatpush2.msra.mxu0 0.0
    %3284 = vmatprep.subr.mxu0 0.0
    %3285 = vmatpush2.msra.mxu0 0.0
    %3286 = vmatprep.subr.mxu0 0.0
    %3287 = vmatpush2.msra.mxu0 0.0
    %3288 = vmatprep.subr.mxu0 0.0
    %3289 = vmatpush2.msra.mxu0 0.0
    %3290 = vmatprep.subr.mxu0 0.0
    %3291 = vmatpush2.msra.mxu0 0.0
    %3292 = vmatprep.subr.mxu0 0.0
    %3293 = vmatpush2.msra.mxu0 0.0
    %3294 = vmatprep.subr.mxu0 0.0
    %3295 = vmatpush2.msra.mxu0 0.0
    %3296 = vmatprep.subr.mxu0 0.0
    %3297 = vmatpush2.msra.mxu0 0.0
    %3298 = vmatprep.subr.mxu0 0.0
    %3299 = vmatpush2.msra.mxu0 0.0
    %3300 = vmatprep.subr.mxu0 0.0
    %3301 = vmatpush2.msra.mxu0 0.0
    %3302 = vmatprep.subr.mxu0 0.0
    %3303 = vmatpush2.msra.mxu0 0.0
    %3304 = vmatprep.mubr.f32.mxu0 0.0
    %3305 = vmatmul.mubr.f32.gmra.mxu0 %v3238
    %v3306 = vpop.f32.mrf.mxu0
    %v3307 = vadd.f32 %v1375, %v3306
    %v3308 = vpop.f32.mrf.mxu0
    %3309 = vdwg.mxu0
    %v3310 = vmax.f32 %v3307, 0.0
    %v3312 = vsel %vm1272, %v3310, 0
    %3314 = vmatprep.subr.mxu0 0.0
    %3315 = vmatpush1.msra.mxu0 0.0
    %3316 = vmatprep.subr.mxu0 0.0
    %3317 = vmatpush1.msra.mxu0 0.0
    %3318 = vmatprep.subr.mxu0 0.0
    %3319 = vmatpush1.msra.mxu0 0.0
    %3320 = vmatprep.subr.mxu0 0.0
    %3321 = vmatpush1.msra.mxu0 0.0
    %3322 = vmatprep.subr.mxu0 0.0
    %3323 = vmatpush1.msra.mxu0 0.0
    %3324 = vmatprep.subr.mxu0 0.0
    %3325 = vmatpush1.msra.mxu0 0.0
    %3326 = vmatprep.subr.mxu0 0.0
    %3327 = vmatpush1.msra.mxu0 0.0
    %3328 = vmatprep.subr.mxu0 0.0
    %3329 = vmatpush1.msra.mxu0 0.0
    %3330 = vmatprep.subr.mxu0 0.0
    %3331 = vmatpush1.msra.mxu0 %v1056
    %3332 = vmatprep.subr.mxu0 0.0
    %3333 = vmatpush1.msra.mxu0 %v1055
    %3334 = vmatprep.subr.mxu0 0.0
    %3335 = vmatpush1.msra.mxu0 %v1054
    %3336 = vmatprep.subr.mxu0 0.0
    %3337 = vmatpush1.msra.mxu0 %v1053
    %3338 = vmatprep.subr.mxu0 0.0
    %3339 = vmatpush1.msra.mxu0 %v1052
    %3340 = vmatprep.subr.mxu0 0.0
    %3341 = vmatpush1.msra.mxu0 %v1051
    %3342 = vmatprep.subr.mxu0 0.0
    %3343 = vmatpush1.msra.mxu0 %v1050
    %3344 = vmatprep.subr.mxu0 0.0
    %3345 = vmatpush1.msra.mxu0 %v1049
    %3346 = vmatprep.subr.mxu0 0.0
    %3347 = vmatpush2.msra.mxu0 0.0
    %3348 = vmatprep.subr.mxu0 0.0
    %3349 = vmatpush2.msra.mxu0 0.0
    %3350 = vmatprep.subr.mxu0 0.0
    %3351 = vmatpush2.msra.mxu0 0.0
    %3352 = vmatprep.subr.mxu0 0.0
    %3353 = vmatpush2.msra.mxu0 0.0
    %3354 = vmatprep.subr.mxu0 0.0
    %3355 = vmatpush2.msra.mxu0 0.0
    %3356 = vmatprep.subr.mxu0 0.0
    %3357 = vmatpush2.msra.mxu0 0.0
    %3358 = vmatprep.subr.mxu0 0.0
    %3359 = vmatpush2.msra.mxu0 0.0
    %3360 = vmatprep.subr.mxu0 0.0
    %3361 = vmatpush2.msra.mxu0 0.0
    %3362 = vmatprep.subr.mxu0 0.0
    %3363 = vmatpush2.msra.mxu0 0.0
    %3364 = vmatprep.subr.mxu0 0.0
    %3365 = vmatpush2.msra.mxu0 0.0
    %3366 = vmatprep.subr.mxu0 0.0
    %3367 = vmatpush2.msra.mxu0 0.0
    %3368 = vmatprep.subr.mxu0 0.0
    %3369 = vmatpush2.msra.mxu0 0.0
    %3370 = vmatprep.subr.mxu0 0.0
    %3371 = vmatpush2.msra.mxu0 0.0
    %3372 = vmatprep.subr.mxu0 0.0
    %3373 = vmatpush2.msra.mxu0 0.0
    %3374 = vmatprep.subr.mxu0 0.0
    %3375 = vmatpush2.msra.mxu0 0.0
    %3376 = vmatprep.subr.mxu0 0.0
    %3377 = vmatpush2.msra.mxu0 0.0
    %3378 = vmatprep.mubr.f32.mxu0 0.0
    %3379 = vmatmul.mubr.f32.gmra.mxu0 %v3312
    %v3380 = vpop.f32.mrf.mxu0
    %v3381 = vadd.f32 %v1457, %v3380
    %v3382 = vpop.f32.mrf.mxu0
    %3383 = vdwg.mxu0
    %v3384 = vxor.u32 %v3381, 2147483648
    %v3385 = vmul.f32 %v3384, 1.442695
    %v3386 = vpow.pop %v3385
    %v3387 = vadd.f32 %v3386, 1.0
    %v3388 = vrcp.pop %v3387
    %v3389 = vmul.f32 1.0, %v3388
    %v3390 = vsel %vm1534, %v3389, %v3381
    %v3391 = vtanh.pop %v3381
    %v3392 = vmul.f32 %v3391, 3.1415927
    %v3393 = vsel %vm1542, %v3392, %v3390
    %v3396 = vunpack.c.l.s4 1966171168
    %v3397 = vunpack.c.0.s8 %v3396
    %v3398 = vlaneseq
    %v3399 = vshrl.u32 %v3398, 7
    %v3400 = vsub.s32 %v3397, %v3399
    %v3401 = vrot.slane %v3393, %v3400
    %v3402 = vcombine.high %v3401, %v3401
    %v3404 = vunpack.c.l.s4 1966171168
    %v3405 = vunpack.c.0.s8 %v3404
    %v3406 = vlaneseq
    %v3407 = vshrl.u32 %v3406, 7
    %v3408 = vsub.s32 %v3405, %v3407
    %v3409 = vrot.slane %v3401, %v3408
    %v3411 = vunpack.c.l.s4 1966171168
    %v3412 = vunpack.c.0.s8 %v3411
    %v3413 = vlaneseq
    %v3414 = vshrl.u32 %v3413, 7
    %v3415 = vsub.s32 %v3412, %v3414
    %v3416 = vrot.slane %v3402, %v3415
    %3419 = vst [vmem:[%s23 + $0x4] sm:$0x1] %v3409
    %3420 = vst [vmem:[%s23 + $0xc] sm:$0x1] %v3416
    %v3421 = vld [vmem:[%s1 + $0x5] sm:$0x1]
    %v3422 = vld [vmem:[%s1 + $0xd] sm:$0x1]
    %3424 = vset.pattern.permute.xlu0 0
    %3425 = vperm.xlu0 %3424, %v3421
    %v3426 = vpop.permute.xlu0 %3425
    %3429 = vset.pattern.permute.xlu0 0
    %3430 = vperm.xlu0 %3429, %v3422
    %v3431 = vpop.permute.xlu0 %3430
    %v3433 = vmul.f32 %v3426, %v1073
    %v3434 = vmul.f32 %v3431, %v1073
    %3435 = vset.pattern.permute.xlu0 1
    %3436 = vperm.xlu0 %3435, %v3421
    %v3437 = vpop.permute.xlu0 %3436
    %3439 = vset.pattern.permute.xlu0 1
    %3440 = vperm.xlu0 %3439, %v3422
    %v3441 = vpop.permute.xlu0 %3440
    %v3443 = vmul.f32 %v3437, %v1087
    %v3444 = vmul.f32 %v3441, %v1087
    %v3445 = vadd.f32 %v3433, %v3443
    %v3446 = vadd.f32 %v3434, %v3444
    %v3447 = vadd.f32 %v3445, %v1096
    %v3448 = vadd.f32 %v3446, %v1096
    %v3449 = vmax.f32 %v3447, 0.0
    %v3450 = vmax.f32 %v3448, 0.0
    %v3453 = vrot.slane %v3450, 7
    %v3454 = vsel %vm1111, %v3453, %v3449
    %v3455 = vsel %vm1113, %v3454, 0
    %3457 = vmatprep.subr.mxu0 0.0
    %3458 = vmatpush1.msra.mxu0 0.0
    %3459 = vmatprep.subr.mxu0 0.0
    %3460 = vmatpush1.msra.mxu0 0.0
    %3461 = vmatprep.subr.mxu0 0.0
    %3462 = vmatpush1.msra.mxu0 0.0
    %3463 = vmatprep.subr.mxu0 0.0
    %3464 = vmatpush1.msra.mxu0 0.0
    %3465 = vmatprep.subr.mxu0 0.0
    %3466 = vmatpush1.msra.mxu0 0.0
    %3467 = vmatprep.subr.mxu0 0.0
    %3468 = vmatpush1.msra.mxu0 0.0
    %3469 = vmatprep.subr.mxu0 0.0
    %3470 = vmatpush1.msra.mxu0 0.0
    %3471 = vmatprep.subr.mxu0 0.0
    %3472 = vmatpush1.msra.mxu0 0.0
    %3473 = vmatprep.subr.mxu0 0.0
    %3474 = vmatpush1.msra.mxu0 0.0
    %3475 = vmatprep.subr.mxu0 0.0
    %3476 = vmatpush1.msra.mxu0 0.0
    %3477 = vmatprep.subr.mxu0 0.0
    %3478 = vmatpush1.msra.mxu0 0.0
    %3479 = vmatprep.subr.mxu0 0.0
    %3480 = vmatpush1.msra.mxu0 0.0
    %3481 = vmatprep.subr.mxu0 0.0
    %3482 = vmatpush1.msra.mxu0 0.0
    %3483 = vmatprep.subr.mxu0 0.0
    %3484 = vmatpush1.msra.mxu0 0.0
    %3485 = vmatprep.subr.mxu0 0.0
    %3486 = vmatpush1.msra.mxu0 %v1017
    %3487 = vmatprep.subr.mxu0 0.0
    %3488 = vmatpush1.msra.mxu0 %v1016
    %3489 = vmatprep.subr.mxu0 0.0
    %3490 = vmatpush2.msra.mxu0 0.0
    %3491 = vmatprep.subr.mxu0 0.0
    %3492 = vmatpush2.msra.mxu0 0.0
    %3493 = vmatprep.subr.mxu0 0.0
    %3494 = vmatpush2.msra.mxu0 0.0
    %3495 = vmatprep.subr.mxu0 0.0
    %3496 = vmatpush2.msra.mxu0 0.0
    %3497 = vmatprep.subr.mxu0 0.0
    %3498 = vmatpush2.msra.mxu0 0.0
    %3499 = vmatprep.subr.mxu0 0.0
    %3500 = vmatpush2.msra.mxu0 0.0
    %3501 = vmatprep.subr.mxu0 0.0
    %3502 = vmatpush2.msra.mxu0 0.0
    %3503 = vmatprep.subr.mxu0 0.0
    %3504 = vmatpush2.msra.mxu0 0.0
    %3505 = vmatprep.subr.mxu0 0.0
    %3506 = vmatpush2.msra.mxu0 0.0
    %3507 = vmatprep.subr.mxu0 0.0
    %3508 = vmatpush2.msra.mxu0 0.0
    %3509 = vmatprep.subr.mxu0 0.0
    %3510 = vmatpush2.msra.mxu0 0.0
    %3511 = vmatprep.subr.mxu0 0.0
    %3512 = vmatpush2.msra.mxu0 0.0
    %3513 = vmatprep.subr.mxu0 0.0
    %3514 = vmatpush2.msra.mxu0 0.0
    %3515 = vmatprep.subr.mxu0 0.0
    %3516 = vmatpush2.msra.mxu0 0.0
    %3517 = vmatprep.subr.mxu0 0.0
    %3518 = vmatpush2.msra.mxu0 0.0
    %3519 = vmatprep.subr.mxu0 0.0
    %3520 = vmatpush2.msra.mxu0 0.0
    %3521 = vmatprep.mubr.f32.mxu0 0.0
    %3522 = vmatmul.mubr.f32.gmra.mxu0 %v3455
    %v3523 = vpop.f32.mrf.mxu0
    %v3524 = vadd.f32 %v1106, %v3523
    %v3525 = vpop.f32.mrf.mxu0
    %3526 = vdwg.mxu0
    %v3527 = vmax.f32 %v3524, 0.0
    %v3529 = vsel %vm1113, %v3527, 0
    %3531 = vmatprep.subr.mxu0 0.0
    %3532 = vmatpush1.msra.mxu0 0.0
    %3533 = vmatprep.subr.mxu0 0.0
    %3534 = vmatpush1.msra.mxu0 0.0
    %3535 = vmatprep.subr.mxu0 0.0
    %3536 = vmatpush1.msra.mxu0 0.0
    %3537 = vmatprep.subr.mxu0 0.0
    %3538 = vmatpush1.msra.mxu0 0.0
    %3539 = vmatprep.subr.mxu0 0.0
    %3540 = vmatpush1.msra.mxu0 0.0
    %3541 = vmatprep.subr.mxu0 0.0
    %3542 = vmatpush1.msra.mxu0 0.0
    %3543 = vmatprep.subr.mxu0 0.0
    %3544 = vmatpush1.msra.mxu0 0.0
    %3545 = vmatprep.subr.mxu0 0.0
    %3546 = vmatpush1.msra.mxu0 0.0
    %3547 = vmatprep.subr.mxu0 0.0
    %3548 = vmatpush1.msra.mxu0 0.0
    %3549 = vmatprep.subr.mxu0 0.0
    %3550 = vmatpush1.msra.mxu0 0.0
    %3551 = vmatprep.subr.mxu0 0.0
    %3552 = vmatpush1.msra.mxu0 0.0
    %3553 = vmatprep.subr.mxu0 0.0
    %3554 = vmatpush1.msra.mxu0 0.0
    %3555 = vmatprep.subr.mxu0 0.0
    %3556 = vmatpush1.msra.mxu0 0.0
    %3557 = vmatprep.subr.mxu0 0.0
    %3558 = vmatpush1.msra.mxu0 0.0
    %3559 = vmatprep.subr.mxu0 %v1022
    %3560 = vmatpush1.msra.mxu0 %v1021
    %3561 = vmatprep.subr.mxu0 %v1020
    %3562 = vmatpush1.msra.mxu0 %v1019
    %3563 = vmatprep.subr.mxu0 0.0
    %3564 = vmatpush2.msra.mxu0 0.0
    %3565 = vmatprep.subr.mxu0 0.0
    %3566 = vmatpush2.msra.mxu0 0.0
    %3567 = vmatprep.subr.mxu0 0.0
    %3568 = vmatpush2.msra.mxu0 0.0
    %3569 = vmatprep.subr.mxu0 0.0
    %3570 = vmatpush2.msra.mxu0 0.0
    %3571 = vmatprep.subr.mxu0 0.0
    %3572 = vmatpush2.msra.mxu0 0.0
    %3573 = vmatprep.subr.mxu0 0.0
    %3574 = vmatpush2.msra.mxu0 0.0
    %3575 = vmatprep.subr.mxu0 0.0
    %3576 = vmatpush2.msra.mxu0 0.0
    %3577 = vmatprep.subr.mxu0 0.0
    %3578 = vmatpush2.msra.mxu0 0.0
    %3579 = vmatprep.subr.mxu0 0.0
    %3580 = vmatpush2.msra.mxu0 0.0
    %3581 = vmatprep.subr.mxu0 0.0
    %3582 = vmatpush2.msra.mxu0 0.0
    %3583 = vmatprep.subr.mxu0 0.0
    %3584 = vmatpush2.msra.mxu0 0.0
    %3585 = vmatprep.subr.mxu0 0.0
    %3586 = vmatpush2.msra.mxu0 0.0
    %3587 = vmatprep.subr.mxu0 0.0
    %3588 = vmatpush2.msra.mxu0 0.0
    %3589 = vmatprep.subr.mxu0 0.0
    %3590 = vmatpush2.msra.mxu0 0.0
    %3591 = vmatprep.subr.mxu0 0.0
    %3592 = vmatpush2.msra.mxu0 0.0
    %3593 = vmatprep.subr.mxu0 0.0
    %3594 = vmatpush2.msra.mxu0 0.0
    %3595 = vmatprep.mubr.f32.mxu0 0.0
    %3596 = vmatmul.mubr.f32.gmra.mxu0 %v3529
    %v3597 = vpop.f32.mrf.mxu0
    %v3598 = vadd.f32 %v1191, %v3597
    %v3599 = vpop.f32.mrf.mxu0
    %v3600 = vadd.f32 %v1195, %v3599
    %3601 = vdwg.mxu0
    %3602 = vmatprep.subr.mxu0 0.0
    %3603 = vmatpush1.msra.mxu0 0.0
    %3604 = vmatprep.subr.mxu0 0.0
    %3605 = vmatpush1.msra.mxu0 0.0
    %3606 = vmatprep.subr.mxu0 0.0
    %3607 = vmatpush1.msra.mxu0 0.0
    %3608 = vmatprep.subr.mxu0 0.0
    %3609 = vmatpush1.msra.mxu0 0.0
    %3610 = vmatprep.subr.mxu0 0.0
    %3611 = vmatpush1.msra.mxu0 0.0
    %3612 = vmatprep.subr.mxu0 0.0
    %3613 = vmatpush1.msra.mxu0 0.0
    %3614 = vmatprep.subr.mxu0 0.0
    %3615 = vmatpush1.msra.mxu0 0.0
    %3616 = vmatprep.subr.mxu0 0.0
    %3617 = vmatpush1.msra.mxu0 0.0
    %3618 = vmatprep.subr.mxu0 %v1039
    %3619 = vmatpush1.msra.mxu0 %v1038
    %3620 = vmatprep.subr.mxu0 %v1037
    %3621 = vmatpush1.msra.mxu0 %v1036
    %3622 = vmatprep.subr.mxu0 %v1035
    %3623 = vmatpush1.msra.mxu0 %v1034
    %3624 = vmatprep.subr.mxu0 %v1033
    %3625 = vmatpush1.msra.mxu0 %v1032
    %3626 = vmatprep.subr.mxu0 %v1031
    %3627 = vmatpush1.msra.mxu0 %v1030
    %3628 = vmatprep.subr.mxu0 %v1029
    %3629 = vmatpush1.msra.mxu0 %v1028
    %3630 = vmatprep.subr.mxu0 %v1027
    %3631 = vmatpush1.msra.mxu0 %v1026
    %3632 = vmatprep.subr.mxu0 %v1025
    %3633 = vmatpush1.msra.mxu0 %v1024
    %3634 = vmatprep.subr.mxu0 0.0
    %3635 = vmatpush2.msra.mxu0 0.0
    %3636 = vmatprep.subr.mxu0 0.0
    %3637 = vmatpush2.msra.mxu0 0.0
    %3638 = vmatprep.subr.mxu0 0.0
    %3639 = vmatpush2.msra.mxu0 0.0
    %3640 = vmatprep.subr.mxu0 0.0
    %3641 = vmatpush2.msra.mxu0 0.0
    %3642 = vmatprep.subr.mxu0 0.0
    %3643 = vmatpush2.msra.mxu0 0.0
    %3644 = vmatprep.subr.mxu0 0.0
    %3645 = vmatpush2.msra.mxu0 0.0
    %3646 = vmatprep.subr.mxu0 0.0
    %3647 = vmatpush2.msra.mxu0 0.0
    %3648 = vmatprep.subr.mxu0 0.0
    %3649 = vmatpush2.msra.mxu0 0.0
    %3650 = vmatprep.subr.mxu0 0.0
    %3651 = vmatpush2.msra.mxu0 0.0
    %3652 = vmatprep.subr.mxu0 0.0
    %3653 = vmatpush2.msra.mxu0 0.0
    %3654 = vmatprep.subr.mxu0 0.0
    %3655 = vmatpush2.msra.mxu0 0.0
    %3656 = vmatprep.subr.mxu0 0.0
    %3657 = vmatpush2.msra.mxu0 0.0
    %3658 = vmatprep.subr.mxu0 0.0
    %3659 = vmatpush2.msra.mxu0 0.0
    %3660 = vmatprep.subr.mxu0 0.0
    %3661 = vmatpush2.msra.mxu0 0.0
    %3662 = vmatprep.subr.mxu0 0.0
    %3663 = vmatpush2.msra.mxu0 0.0
    %3664 = vmatprep.subr.mxu0 0.0
    %3665 = vmatpush2.msra.mxu0 0.0
    %3666 = vmatprep.mubr.f32.mxu0 0.0
    %3667 = vmatmul.mubr.f32.gmra.mxu0 %v3238
    %v3668 = vpop.f32.mrf.mxu0
    %v3669 = vadd.f32 0.0, %v3668
    %v3670 = vpop.f32.mrf.mxu0
    %v3671 = vadd.f32 0.0, %v3670
    %3672 = vdwg.mxu0
    %v3673 = vadd.f32 %v3598, %v3669
    %v3674 = vadd.f32 %v3600, %v3671
    %v3675 = vxor.u32 %v3673, 2147483648
    %v3676 = vmul.f32 %v3675, 1.442695
    %v3677 = vpow.pop %v3676
    %v3678 = vadd.f32 %v3677, 1.0
    %v3679 = vrcp.pop %v3678
    %v3680 = vmul.f32 1.0, %v3679
    %v3681 = vtanh.pop %v3674
    %v3682 = vxor.u32 %v3674, 2147483648
    %v3683 = vmul.f32 %v3682, 1.442695
    %v3684 = vpow.pop %v3683
    %v3685 = vadd.f32 %v3684, 1.0
    %v3686 = vrcp.pop %v3685
    %v3687 = vmul.f32 1.0, %v3686
    %v3688 = vmul.f32 %v3680, %v3232
    %v3689 = vmul.f32 %v3680, %v3681
    %3691 = vrot.lane.b32.xlu0 %v3689, 64
    %v3692 = vpop.permute.xlu0 %3691
    %v3694 = vadd.f32 %v3688, %v3692
    %v3695 = vtanh.pop %v3694
    %v3696 = vmul.f32 %v3687, %v3695
    %3698 = vrot.lane.b32.xlu0 %v3696, 64
    %v3699 = vpop.permute.xlu0 %3698
    %v3700 = vsel %vm1272, %v3699, 0
    %3702 = vmatprep.subr.mxu0 0.0
    %3703 = vmatpush1.msra.mxu0 0.0
    %3704 = vmatprep.subr.mxu0 0.0
    %3705 = vmatpush1.msra.mxu0 0.0
    %3706 = vmatprep.subr.mxu0 0.0
    %3707 = vmatpush1.msra.mxu0 0.0
    %3708 = vmatprep.subr.mxu0 0.0
    %3709 = vmatpush1.msra.mxu0 0.0
    %3710 = vmatprep.subr.mxu0 0.0
    %3711 = vmatpush1.msra.mxu0 0.0
    %3712 = vmatprep.subr.mxu0 0.0
    %3713 = vmatpush1.msra.mxu0 0.0
    %3714 = vmatprep.subr.mxu0 0.0
    %3715 = vmatpush1.msra.mxu0 0.0
    %3716 = vmatprep.subr.mxu0 0.0
    %3717 = vmatpush1.msra.mxu0 0.0
    %3718 = vmatprep.subr.mxu0 0.0
    %3719 = vmatpush1.msra.mxu0 %v1047
    %3720 = vmatprep.subr.mxu0 0.0
    %3721 = vmatpush1.msra.mxu0 %v1046
    %3722 = vmatprep.subr.mxu0 0.0
    %3723 = vmatpush1.msra.mxu0 %v1045
    %3724 = vmatprep.subr.mxu0 0.0
    %3725 = vmatpush1.msra.mxu0 %v1044
    %3726 = vmatprep.subr.mxu0 0.0
    %3727 = vmatpush1.msra.mxu0 %v1043
    %3728 = vmatprep.subr.mxu0 0.0
    %3729 = vmatpush1.msra.mxu0 %v1042
    %3730 = vmatprep.subr.mxu0 0.0
    %3731 = vmatpush1.msra.mxu0 %v1041
    %3732 = vmatprep.subr.mxu0 0.0
    %3733 = vmatpush1.msra.mxu0 %v1040
    %3734 = vmatprep.subr.mxu0 0.0
    %3735 = vmatpush2.msra.mxu0 0.0
    %3736 = vmatprep.subr.mxu0 0.0
    %3737 = vmatpush2.msra.mxu0 0.0
    %3738 = vmatprep.subr.mxu0 0.0
    %3739 = vmatpush2.msra.mxu0 0.0
    %3740 = vmatprep.subr.mxu0 0.0
    %3741 = vmatpush2.msra.mxu0 0.0
    %3742 = vmatprep.subr.mxu0 0.0
    %3743 = vmatpush2.msra.mxu0 0.0
    %3744 = vmatprep.subr.mxu0 0.0
    %3745 = vmatpush2.msra.mxu0 0.0
    %3746 = vmatprep.subr.mxu0 0.0
    %3747 = vmatpush2.msra.mxu0 0.0
    %3748 = vmatprep.subr.mxu0 0.0
    %3749 = vmatpush2.msra.mxu0 0.0
    %3750 = vmatprep.subr.mxu0 0.0
    %3751 = vmatpush2.msra.mxu0 0.0
    %3752 = vmatprep.subr.mxu0 0.0
    %3753 = vmatpush2.msra.mxu0 0.0
    %3754 = vmatprep.subr.mxu0 0.0
    %3755 = vmatpush2.msra.mxu0 0.0
    %3756 = vmatprep.subr.mxu0 0.0
    %3757 = vmatpush2.msra.mxu0 0.0
    %3758 = vmatprep.subr.mxu0 0.0
    %3759 = vmatpush2.msra.mxu0 0.0
    %3760 = vmatprep.subr.mxu0 0.0
    %3761 = vmatpush2.msra.mxu0 0.0
    %3762 = vmatprep.subr.mxu0 0.0
    %3763 = vmatpush2.msra.mxu0 0.0
    %3764 = vmatprep.subr.mxu0 0.0
    %3765 = vmatpush2.msra.mxu0 0.0
    %3766 = vmatprep.mubr.f32.mxu0 0.0
    %3767 = vmatmul.mubr.f32.gmra.mxu0 %v3700
    %v3768 = vpop.f32.mrf.mxu0
    %v3769 = vadd.f32 %v1375, %v3768
    %v3770 = vpop.f32.mrf.mxu0
    %3771 = vdwg.mxu0
    %v3772 = vmax.f32 %v3769, 0.0
    %v3774 = vsel %vm1272, %v3772, 0
    %3776 = vmatprep.subr.mxu0 0.0
    %3777 = vmatpush1.msra.mxu0 0.0
    %3778 = vmatprep.subr.mxu0 0.0
    %3779 = vmatpush1.msra.mxu0 0.0
    %3780 = vmatprep.subr.mxu0 0.0
    %3781 = vmatpush1.msra.mxu0 0.0
    %3782 = vmatprep.subr.mxu0 0.0
    %3783 = vmatpush1.msra.mxu0 0.0
    %3784 = vmatprep.subr.mxu0 0.0
    %3785 = vmatpush1.msra.mxu0 0.0
    %3786 = vmatprep.subr.mxu0 0.0
    %3787 = vmatpush1.msra.mxu0 0.0
    %3788 = vmatprep.subr.mxu0 0.0
    %3789 = vmatpush1.msra.mxu0 0.0
    %3790 = vmatprep.subr.mxu0 0.0
    %3791 = vmatpush1.msra.mxu0 0.0
    %3792 = vmatprep.subr.mxu0 0.0
    %3793 = vmatpush1.msra.mxu0 %v1056
    %3794 = vmatprep.subr.mxu0 0.0
    %3795 = vmatpush1.msra.mxu0 %v1055
    %3796 = vmatprep.subr.mxu0 0.0
    %3797 = vmatpush1.msra.mxu0 %v1054
    %3798 = vmatprep.subr.mxu0 0.0
    %3799 = vmatpush1.msra.mxu0 %v1053
    %3800 = vmatprep.subr.mxu0 0.0
    %3801 = vmatpush1.msra.mxu0 %v1052
    %3802 = vmatprep.subr.mxu0 0.0
    %3803 = vmatpush1.msra.mxu0 %v1051
    %3804 = vmatprep.subr.mxu0 0.0
    %3805 = vmatpush1.msra.mxu0 %v1050
    %3806 = vmatprep.subr.mxu0 0.0
    %3807 = vmatpush1.msra.mxu0 %v1049
    %3808 = vmatprep.subr.mxu0 0.0
    %3809 = vmatpush2.msra.mxu0 0.0
    %3810 = vmatprep.subr.mxu0 0.0
    %3811 = vmatpush2.msra.mxu0 0.0
    %3812 = vmatprep.subr.mxu0 0.0
    %3813 = vmatpush2.msra.mxu0 0.0
    %3814 = vmatprep.subr.mxu0 0.0
    %3815 = vmatpush2.msra.mxu0 0.0
    %3816 = vmatprep.subr.mxu0 0.0
    %3817 = vmatpush2.msra.mxu0 0.0
    %3818 = vmatprep.subr.mxu0 0.0
    %3819 = vmatpush2.msra.mxu0 0.0
    %3820 = vmatprep.subr.mxu0 0.0
    %3821 = vmatpush2.msra.mxu0 0.0
    %3822 = vmatprep.subr.mxu0 0.0
    %3823 = vmatpush2.msra.mxu0 0.0
    %3824 = vmatprep.subr.mxu0 0.0
    %3825 = vmatpush2.msra.mxu0 0.0
    %3826 = vmatprep.subr.mxu0 0.0
    %3827 = vmatpush2.msra.mxu0 0.0
    %3828 = vmatprep.subr.mxu0 0.0
    %3829 = vmatpush2.msra.mxu0 0.0
    %3830 = vmatprep.subr.mxu0 0.0
    %3831 = vmatpush2.msra.mxu0 0.0
    %3832 = vmatprep.subr.mxu0 0.0
    %3833 = vmatpush2.msra.mxu0 0.0
    %3834 = vmatprep.subr.mxu0 0.0
    %3835 = vmatpush2.msra.mxu0 0.0
    %3836 = vmatprep.subr.mxu0 0.0
    %3837 = vmatpush2.msra.mxu0 0.0
    %3838 = vmatprep.subr.mxu0 0.0
    %3839 = vmatpush2.msra.mxu0 0.0
    %3840 = vmatprep.mubr.f32.mxu0 0.0
    %3841 = vmatmul.mubr.f32.gmra.mxu0 %v3774
    %v3842 = vpop.f32.mrf.mxu0
    %v3843 = vadd.f32 %v1457, %v3842
    %v3844 = vpop.f32.mrf.mxu0
    %3845 = vdwg.mxu0
    %v3846 = vxor.u32 %v3843, 2147483648
    %v3847 = vmul.f32 %v3846, 1.442695
    %v3848 = vpow.pop %v3847
    %v3849 = vadd.f32 %v3848, 1.0
    %v3850 = vrcp.pop %v3849
    %v3851 = vmul.f32 1.0, %v3850
    %v3852 = vsel %vm1534, %v3851, %v3843
    %v3853 = vtanh.pop %v3843
    %v3854 = vmul.f32 %v3853, 3.1415927
    %v3855 = vsel %vm1542, %v3854, %v3852
    %v3858 = vunpack.c.l.s4 1966171168
    %v3859 = vunpack.c.0.s8 %v3858
    %v3860 = vlaneseq
    %v3861 = vshrl.u32 %v3860, 7
    %v3862 = vsub.s32 %v3859, %v3861
    %v3863 = vrot.slane %v3855, %v3862
    %v3864 = vcombine.high %v3863, %v3863
    %v3866 = vunpack.c.l.s4 1966171168
    %v3867 = vunpack.c.0.s8 %v3866
    %v3868 = vlaneseq
    %v3869 = vshrl.u32 %v3868, 7
    %v3870 = vsub.s32 %v3867, %v3869
    %v3871 = vrot.slane %v3863, %v3870
    %v3873 = vunpack.c.l.s4 1966171168
    %v3874 = vunpack.c.0.s8 %v3873
    %v3875 = vlaneseq
    %v3876 = vshrl.u32 %v3875, 7
    %v3877 = vsub.s32 %v3874, %v3876
    %v3878 = vrot.slane %v3864, %v3877
    %3881 = vst [vmem:[%s23 + $0x5] sm:$0x1] %v3871
    %3882 = vst [vmem:[%s23 + $0xd] sm:$0x1] %v3878
    %v3883 = vld [vmem:[%s1 + $0x6] sm:$0x1]
    %v3884 = vld [vmem:[%s1 + $0xe] sm:$0x1]
    %3886 = vset.pattern.permute.xlu0 0
    %3887 = vperm.xlu0 %3886, %v3883
    %v3888 = vpop.permute.xlu0 %3887
    %3891 = vset.pattern.permute.xlu0 0
    %3892 = vperm.xlu0 %3891, %v3884
    %v3893 = vpop.permute.xlu0 %3892
    %v3895 = vmul.f32 %v3888, %v1073
    %v3896 = vmul.f32 %v3893, %v1073
    %3897 = vset.pattern.permute.xlu0 1
    %3898 = vperm.xlu0 %3897, %v3883
    %v3899 = vpop.permute.xlu0 %3898
    %3901 = vset.pattern.permute.xlu0 1
    %3902 = vperm.xlu0 %3901, %v3884
    %v3903 = vpop.permute.xlu0 %3902
    %v3905 = vmul.f32 %v3899, %v1087
    %v3906 = vmul.f32 %v3903, %v1087
    %v3907 = vadd.f32 %v3895, %v3905
    %v3908 = vadd.f32 %v3896, %v3906
    %v3909 = vadd.f32 %v3907, %v1096
    %v3910 = vadd.f32 %v3908, %v1096
    %v3911 = vmax.f32 %v3909, 0.0
    %v3912 = vmax.f32 %v3910, 0.0
    %v3915 = vrot.slane %v3912, 7
    %v3916 = vsel %vm1111, %v3915, %v3911
    %v3917 = vsel %vm1113, %v3916, 0
    %3919 = vmatprep.subr.mxu0 0.0
    %3920 = vmatpush1.msra.mxu0 0.0
    %3921 = vmatprep.subr.mxu0 0.0
    %3922 = vmatpush1.msra.mxu0 0.0
    %3923 = vmatprep.subr.mxu0 0.0
    %3924 = vmatpush1.msra.mxu0 0.0
    %3925 = vmatprep.subr.mxu0 0.0
    %3926 = vmatpush1.msra.mxu0 0.0
    %3927 = vmatprep.subr.mxu0 0.0
    %3928 = vmatpush1.msra.mxu0 0.0
    %3929 = vmatprep.subr.mxu0 0.0
    %3930 = vmatpush1.msra.mxu0 0.0
    %3931 = vmatprep.subr.mxu0 0.0
    %3932 = vmatpush1.msra.mxu0 0.0
    %3933 = vmatprep.subr.mxu0 0.0
    %3934 = vmatpush1.msra.mxu0 0.0
    %3935 = vmatprep.subr.mxu0 0.0
    %3936 = vmatpush1.msra.mxu0 0.0
    %3937 = vmatprep.subr.mxu0 0.0
    %3938 = vmatpush1.msra.mxu0 0.0
    %3939 = vmatprep.subr.mxu0 0.0
    %3940 = vmatpush1.msra.mxu0 0.0
    %3941 = vmatprep.subr.mxu0 0.0
    %3942 = vmatpush1.msra.mxu0 0.0
    %3943 = vmatprep.subr.mxu0 0.0
    %3944 = vmatpush1.msra.mxu0 0.0
    %3945 = vmatprep.subr.mxu0 0.0
    %3946 = vmatpush1.msra.mxu0 0.0
    %3947 = vmatprep.subr.mxu0 0.0
    %3948 = vmatpush1.msra.mxu0 %v1017
    %3949 = vmatprep.subr.mxu0 0.0
    %3950 = vmatpush1.msra.mxu0 %v1016
    %3951 = vmatprep.subr.mxu0 0.0
    %3952 = vmatpush2.msra.mxu0 0.0
    %3953 = vmatprep.subr.mxu0 0.0
    %3954 = vmatpush2.msra.mxu0 0.0
    %3955 = vmatprep.subr.mxu0 0.0
    %3956 = vmatpush2.msra.mxu0 0.0
    %3957 = vmatprep.subr.mxu0 0.0
    %3958 = vmatpush2.msra.mxu0 0.0
    %3959 = vmatprep.subr.mxu0 0.0
    %3960 = vmatpush2.msra.mxu0 0.0
    %3961 = vmatprep.subr.mxu0 0.0
    %3962 = vmatpush2.msra.mxu0 0.0
    %3963 = vmatprep.subr.mxu0 0.0
    %3964 = vmatpush2.msra.mxu0 0.0
    %3965 = vmatprep.subr.mxu0 0.0
    %3966 = vmatpush2.msra.mxu0 0.0
    %3967 = vmatprep.subr.mxu0 0.0
    %3968 = vmatpush2.msra.mxu0 0.0
    %3969 = vmatprep.subr.mxu0 0.0
    %3970 = vmatpush2.msra.mxu0 0.0
    %3971 = vmatprep.subr.mxu0 0.0
    %3972 = vmatpush2.msra.mxu0 0.0
    %3973 = vmatprep.subr.mxu0 0.0
    %3974 = vmatpush2.msra.mxu0 0.0
    %3975 = vmatprep.subr.mxu0 0.0
    %3976 = vmatpush2.msra.mxu0 0.0
    %3977 = vmatprep.subr.mxu0 0.0
    %3978 = vmatpush2.msra.mxu0 0.0
    %3979 = vmatprep.subr.mxu0 0.0
    %3980 = vmatpush2.msra.mxu0 0.0
    %3981 = vmatprep.subr.mxu0 0.0
    %3982 = vmatpush2.msra.mxu0 0.0
    %3983 = vmatprep.mubr.f32.mxu0 0.0
    %3984 = vmatmul.mubr.f32.gmra.mxu0 %v3917
    %v3985 = vpop.f32.mrf.mxu0
    %v3986 = vadd.f32 %v1106, %v3985
    %v3987 = vpop.f32.mrf.mxu0
    %3988 = vdwg.mxu0
    %v3989 = vmax.f32 %v3986, 0.0
    %v3991 = vsel %vm1113, %v3989, 0
    %3993 = vmatprep.subr.mxu0 0.0
    %3994 = vmatpush1.msra.mxu0 0.0
    %3995 = vmatprep.subr.mxu0 0.0
    %3996 = vmatpush1.msra.mxu0 0.0
    %3997 = vmatprep.subr.mxu0 0.0
    %3998 = vmatpush1.msra.mxu0 0.0
    %3999 = vmatprep.subr.mxu0 0.0
    %4000 = vmatpush1.msra.mxu0 0.0
    %4001 = vmatprep.subr.mxu0 0.0
    %4002 = vmatpush1.msra.mxu0 0.0
    %4003 = vmatprep.subr.mxu0 0.0
    %4004 = vmatpush1.msra.mxu0 0.0
    %4005 = vmatprep.subr.mxu0 0.0
    %4006 = vmatpush1.msra.mxu0 0.0
    %4007 = vmatprep.subr.mxu0 0.0
    %4008 = vmatpush1.msra.mxu0 0.0
    %4009 = vmatprep.subr.mxu0 0.0
    %4010 = vmatpush1.msra.mxu0 0.0
    %4011 = vmatprep.subr.mxu0 0.0
    %4012 = vmatpush1.msra.mxu0 0.0
    %4013 = vmatprep.subr.mxu0 0.0
    %4014 = vmatpush1.msra.mxu0 0.0
    %4015 = vmatprep.subr.mxu0 0.0
    %4016 = vmatpush1.msra.mxu0 0.0
    %4017 = vmatprep.subr.mxu0 0.0
    %4018 = vmatpush1.msra.mxu0 0.0
    %4019 = vmatprep.subr.mxu0 0.0
    %4020 = vmatpush1.msra.mxu0 0.0
    %4021 = vmatprep.subr.mxu0 %v1022
    %4022 = vmatpush1.msra.mxu0 %v1021
    %4023 = vmatprep.subr.mxu0 %v1020
    %4024 = vmatpush1.msra.mxu0 %v1019
    %4025 = vmatprep.subr.mxu0 0.0
    %4026 = vmatpush2.msra.mxu0 0.0
    %4027 = vmatprep.subr.mxu0 0.0
    %4028 = vmatpush2.msra.mxu0 0.0
    %4029 = vmatprep.subr.mxu0 0.0
    %4030 = vmatpush2.msra.mxu0 0.0
    %4031 = vmatprep.subr.mxu0 0.0
    %4032 = vmatpush2.msra.mxu0 0.0
    %4033 = vmatprep.subr.mxu0 0.0
    %4034 = vmatpush2.msra.mxu0 0.0
    %4035 = vmatprep.subr.mxu0 0.0
    %4036 = vmatpush2.msra.mxu0 0.0
    %4037 = vmatprep.subr.mxu0 0.0
    %4038 = vmatpush2.msra.mxu0 0.0
    %4039 = vmatprep.subr.mxu0 0.0
    %4040 = vmatpush2.msra.mxu0 0.0
    %4041 = vmatprep.subr.mxu0 0.0
    %4042 = vmatpush2.msra.mxu0 0.0
    %4043 = vmatprep.subr.mxu0 0.0
    %4044 = vmatpush2.msra.mxu0 0.0
    %4045 = vmatprep.subr.mxu0 0.0
    %4046 = vmatpush2.msra.mxu0 0.0
    %4047 = vmatprep.subr.mxu0 0.0
    %4048 = vmatpush2.msra.mxu0 0.0
    %4049 = vmatprep.subr.mxu0 0.0
    %4050 = vmatpush2.msra.mxu0 0.0
    %4051 = vmatprep.subr.mxu0 0.0
    %4052 = vmatpush2.msra.mxu0 0.0
    %4053 = vmatprep.subr.mxu0 0.0
    %4054 = vmatpush2.msra.mxu0 0.0
    %4055 = vmatprep.subr.mxu0 0.0
    %4056 = vmatpush2.msra.mxu0 0.0
    %4057 = vmatprep.mubr.f32.mxu0 0.0
    %4058 = vmatmul.mubr.f32.gmra.mxu0 %v3991
    %v4059 = vpop.f32.mrf.mxu0
    %v4060 = vadd.f32 %v1191, %v4059
    %v4061 = vpop.f32.mrf.mxu0
    %v4062 = vadd.f32 %v1195, %v4061
    %4063 = vdwg.mxu0
    %4064 = vmatprep.subr.mxu0 0.0
    %4065 = vmatpush1.msra.mxu0 0.0
    %4066 = vmatprep.subr.mxu0 0.0
    %4067 = vmatpush1.msra.mxu0 0.0
    %4068 = vmatprep.subr.mxu0 0.0
    %4069 = vmatpush1.msra.mxu0 0.0
    %4070 = vmatprep.subr.mxu0 0.0
    %4071 = vmatpush1.msra.mxu0 0.0
    %4072 = vmatprep.subr.mxu0 0.0
    %4073 = vmatpush1.msra.mxu0 0.0
    %4074 = vmatprep.subr.mxu0 0.0
    %4075 = vmatpush1.msra.mxu0 0.0
    %4076 = vmatprep.subr.mxu0 0.0
    %4077 = vmatpush1.msra.mxu0 0.0
    %4078 = vmatprep.subr.mxu0 0.0
    %4079 = vmatpush1.msra.mxu0 0.0
    %4080 = vmatprep.subr.mxu0 %v1039
    %4081 = vmatpush1.msra.mxu0 %v1038
    %4082 = vmatprep.subr.mxu0 %v1037
    %4083 = vmatpush1.msra.mxu0 %v1036
    %4084 = vmatprep.subr.mxu0 %v1035
    %4085 = vmatpush1.msra.mxu0 %v1034
    %4086 = vmatprep.subr.mxu0 %v1033
    %4087 = vmatpush1.msra.mxu0 %v1032
    %4088 = vmatprep.subr.mxu0 %v1031
    %4089 = vmatpush1.msra.mxu0 %v1030
    %4090 = vmatprep.subr.mxu0 %v1029
    %4091 = vmatpush1.msra.mxu0 %v1028
    %4092 = vmatprep.subr.mxu0 %v1027
    %4093 = vmatpush1.msra.mxu0 %v1026
    %4094 = vmatprep.subr.mxu0 %v1025
    %4095 = vmatpush1.msra.mxu0 %v1024
    %4096 = vmatprep.subr.mxu0 0.0
    %4097 = vmatpush2.msra.mxu0 0.0
    %4098 = vmatprep.subr.mxu0 0.0
    %4099 = vmatpush2.msra.mxu0 0.0
    %4100 = vmatprep.subr.mxu0 0.0
    %4101 = vmatpush2.msra.mxu0 0.0
    %4102 = vmatprep.subr.mxu0 0.0
    %4103 = vmatpush2.msra.mxu0 0.0
    %4104 = vmatprep.subr.mxu0 0.0
    %4105 = vmatpush2.msra.mxu0 0.0
    %4106 = vmatprep.subr.mxu0 0.0
    %4107 = vmatpush2.msra.mxu0 0.0
    %4108 = vmatprep.subr.mxu0 0.0
    %4109 = vmatpush2.msra.mxu0 0.0
    %4110 = vmatprep.subr.mxu0 0.0
    %4111 = vmatpush2.msra.mxu0 0.0
    %4112 = vmatprep.subr.mxu0 0.0
    %4113 = vmatpush2.msra.mxu0 0.0
    %4114 = vmatprep.subr.mxu0 0.0
    %4115 = vmatpush2.msra.mxu0 0.0
    %4116 = vmatprep.subr.mxu0 0.0
    %4117 = vmatpush2.msra.mxu0 0.0
    %4118 = vmatprep.subr.mxu0 0.0
    %4119 = vmatpush2.msra.mxu0 0.0
    %4120 = vmatprep.subr.mxu0 0.0
    %4121 = vmatpush2.msra.mxu0 0.0
    %4122 = vmatprep.subr.mxu0 0.0
    %4123 = vmatpush2.msra.mxu0 0.0
    %4124 = vmatprep.subr.mxu0 0.0
    %4125 = vmatpush2.msra.mxu0 0.0
    %4126 = vmatprep.subr.mxu0 0.0
    %4127 = vmatpush2.msra.mxu0 0.0
    %4128 = vmatprep.mubr.f32.mxu0 0.0
    %4129 = vmatmul.mubr.f32.gmra.mxu0 %v3700
    %v4130 = vpop.f32.mrf.mxu0
    %v4131 = vadd.f32 0.0, %v4130
    %v4132 = vpop.f32.mrf.mxu0
    %v4133 = vadd.f32 0.0, %v4132
    %4134 = vdwg.mxu0
    %v4135 = vadd.f32 %v4060, %v4131
    %v4136 = vadd.f32 %v4062, %v4133
    %v4137 = vxor.u32 %v4135, 2147483648
    %v4138 = vmul.f32 %v4137, 1.442695
    %v4139 = vpow.pop %v4138
    %v4140 = vadd.f32 %v4139, 1.0
    %v4141 = vrcp.pop %v4140
    %v4142 = vmul.f32 1.0, %v4141
    %v4143 = vtanh.pop %v4136
    %v4144 = vxor.u32 %v4136, 2147483648
    %v4145 = vmul.f32 %v4144, 1.442695
    %v4146 = vpow.pop %v4145
    %v4147 = vadd.f32 %v4146, 1.0
    %v4148 = vrcp.pop %v4147
    %v4149 = vmul.f32 1.0, %v4148
    %v4150 = vmul.f32 %v4142, %v3694
    %v4151 = vmul.f32 %v4142, %v4143
    %4153 = vrot.lane.b32.xlu0 %v4151, 64
    %v4154 = vpop.permute.xlu0 %4153
    %v4156 = vadd.f32 %v4150, %v4154
    %v4157 = vtanh.pop %v4156
    %v4158 = vmul.f32 %v4149, %v4157
    %4160 = vrot.lane.b32.xlu0 %v4158, 64
    %v4161 = vpop.permute.xlu0 %4160
    %v4162 = vsel %vm1272, %v4161, 0
    %4164 = vmatprep.subr.mxu0 0.0
    %4165 = vmatpush1.msra.mxu0 0.0
    %4166 = vmatprep.subr.mxu0 0.0
    %4167 = vmatpush1.msra.mxu0 0.0
    %4168 = vmatprep.subr.mxu0 0.0
    %4169 = vmatpush1.msra.mxu0 0.0
    %4170 = vmatprep.subr.mxu0 0.0
    %4171 = vmatpush1.msra.mxu0 0.0
    %4172 = vmatprep.subr.mxu0 0.0
    %4173 = vmatpush1.msra.mxu0 0.0
    %4174 = vmatprep.subr.mxu0 0.0
    %4175 = vmatpush1.msra.mxu0 0.0
    %4176 = vmatprep.subr.mxu0 0.0
    %4177 = vmatpush1.msra.mxu0 0.0
    %4178 = vmatprep.subr.mxu0 0.0
    %4179 = vmatpush1.msra.mxu0 0.0
    %4180 = vmatprep.subr.mxu0 0.0
    %4181 = vmatpush1.msra.mxu0 %v1047
    %4182 = vmatprep.subr.mxu0 0.0
    %4183 = vmatpush1.msra.mxu0 %v1046
    %4184 = vmatprep.subr.mxu0 0.0
    %4185 = vmatpush1.msra.mxu0 %v1045
    %4186 = vmatprep.subr.mxu0 0.0
    %4187 = vmatpush1.msra.mxu0 %v1044
    %4188 = vmatprep.subr.mxu0 0.0
    %4189 = vmatpush1.msra.mxu0 %v1043
    %4190 = vmatprep.subr.mxu0 0.0
    %4191 = vmatpush1.msra.mxu0 %v1042
    %4192 = vmatprep.subr.mxu0 0.0
    %4193 = vmatpush1.msra.mxu0 %v1041
    %4194 = vmatprep.subr.mxu0 0.0
    %4195 = vmatpush1.msra.mxu0 %v1040
    %4196 = vmatprep.subr.mxu0 0.0
    %4197 = vmatpush2.msra.mxu0 0.0
    %4198 = vmatprep.subr.mxu0 0.0
    %4199 = vmatpush2.msra.mxu0 0.0
    %4200 = vmatprep.subr.mxu0 0.0
    %4201 = vmatpush2.msra.mxu0 0.0
    %4202 = vmatprep.subr.mxu0 0.0
    %4203 = vmatpush2.msra.mxu0 0.0
    %4204 = vmatprep.subr.mxu0 0.0
    %4205 = vmatpush2.msra.mxu0 0.0
    %4206 = vmatprep.subr.mxu0 0.0
    %4207 = vmatpush2.msra.mxu0 0.0
    %4208 = vmatprep.subr.mxu0 0.0
    %4209 = vmatpush2.msra.mxu0 0.0
    %4210 = vmatprep.subr.mxu0 0.0
    %4211 = vmatpush2.msra.mxu0 0.0
    %4212 = vmatprep.subr.mxu0 0.0
    %4213 = vmatpush2.msra.mxu0 0.0
    %4214 = vmatprep.subr.mxu0 0.0
    %4215 = vmatpush2.msra.mxu0 0.0
    %4216 = vmatprep.subr.mxu0 0.0
    %4217 = vmatpush2.msra.mxu0 0.0
    %4218 = vmatprep.subr.mxu0 0.0
    %4219 = vmatpush2.msra.mxu0 0.0
    %4220 = vmatprep.subr.mxu0 0.0
    %4221 = vmatpush2.msra.mxu0 0.0
    %4222 = vmatprep.subr.mxu0 0.0
    %4223 = vmatpush2.msra.mxu0 0.0
    %4224 = vmatprep.subr.mxu0 0.0
    %4225 = vmatpush2.msra.mxu0 0.0
    %4226 = vmatprep.subr.mxu0 0.0
    %4227 = vmatpush2.msra.mxu0 0.0
    %4228 = vmatprep.mubr.f32.mxu0 0.0
    %4229 = vmatmul.mubr.f32.gmra.mxu0 %v4162
    %v4230 = vpop.f32.mrf.mxu0
    %v4231 = vadd.f32 %v1375, %v4230
    %v4232 = vpop.f32.mrf.mxu0
    %4233 = vdwg.mxu0
    %v4234 = vmax.f32 %v4231, 0.0
    %v4236 = vsel %vm1272, %v4234, 0
    %4238 = vmatprep.subr.mxu0 0.0
    %4239 = vmatpush1.msra.mxu0 0.0
    %4240 = vmatprep.subr.mxu0 0.0
    %4241 = vmatpush1.msra.mxu0 0.0
    %4242 = vmatprep.subr.mxu0 0.0
    %4243 = vmatpush1.msra.mxu0 0.0
    %4244 = vmatprep.subr.mxu0 0.0
    %4245 = vmatpush1.msra.mxu0 0.0
    %4246 = vmatprep.subr.mxu0 0.0
    %4247 = vmatpush1.msra.mxu0 0.0
    %4248 = vmatprep.subr.mxu0 0.0
    %4249 = vmatpush1.msra.mxu0 0.0
    %4250 = vmatprep.subr.mxu0 0.0
    %4251 = vmatpush1.msra.mxu0 0.0
    %4252 = vmatprep.subr.mxu0 0.0
    %4253 = vmatpush1.msra.mxu0 0.0
    %4254 = vmatprep.subr.mxu0 0.0
    %4255 = vmatpush1.msra.mxu0 %v1056
    %4256 = vmatprep.subr.mxu0 0.0
    %4257 = vmatpush1.msra.mxu0 %v1055
    %4258 = vmatprep.subr.mxu0 0.0
    %4259 = vmatpush1.msra.mxu0 %v1054
    %4260 = vmatprep.subr.mxu0 0.0
    %4261 = vmatpush1.msra.mxu0 %v1053
    %4262 = vmatprep.subr.mxu0 0.0
    %4263 = vmatpush1.msra.mxu0 %v1052
    %4264 = vmatprep.subr.mxu0 0.0
    %4265 = vmatpush1.msra.mxu0 %v1051
    %4266 = vmatprep.subr.mxu0 0.0
    %4267 = vmatpush1.msra.mxu0 %v1050
    %4268 = vmatprep.subr.mxu0 0.0
    %4269 = vmatpush1.msra.mxu0 %v1049
    %4270 = vmatprep.subr.mxu0 0.0
    %4271 = vmatpush2.msra.mxu0 0.0
    %4272 = vmatprep.subr.mxu0 0.0
    %4273 = vmatpush2.msra.mxu0 0.0
    %4274 = vmatprep.subr.mxu0 0.0
    %4275 = vmatpush2.msra.mxu0 0.0
    %4276 = vmatprep.subr.mxu0 0.0
    %4277 = vmatpush2.msra.mxu0 0.0
    %4278 = vmatprep.subr.mxu0 0.0
    %4279 = vmatpush2.msra.mxu0 0.0
    %4280 = vmatprep.subr.mxu0 0.0
    %4281 = vmatpush2.msra.mxu0 0.0
    %4282 = vmatprep.subr.mxu0 0.0
    %4283 = vmatpush2.msra.mxu0 0.0
    %4284 = vmatprep.subr.mxu0 0.0
    %4285 = vmatpush2.msra.mxu0 0.0
    %4286 = vmatprep.subr.mxu0 0.0
    %4287 = vmatpush2.msra.mxu0 0.0
    %4288 = vmatprep.subr.mxu0 0.0
    %4289 = vmatpush2.msra.mxu0 0.0
    %4290 = vmatprep.subr.mxu0 0.0
    %4291 = vmatpush2.msra.mxu0 0.0
    %4292 = vmatprep.subr.mxu0 0.0
    %4293 = vmatpush2.msra.mxu0 0.0
    %4294 = vmatprep.subr.mxu0 0.0
    %4295 = vmatpush2.msra.mxu0 0.0
    %4296 = vmatprep.subr.mxu0 0.0
    %4297 = vmatpush2.msra.mxu0 0.0
    %4298 = vmatprep.subr.mxu0 0.0
    %4299 = vmatpush2.msra.mxu0 0.0
    %4300 = vmatprep.subr.mxu0 0.0
    %4301 = vmatpush2.msra.mxu0 0.0
    %4302 = vmatprep.mubr.f32.mxu0 0.0
    %4303 = vmatmul.mubr.f32.gmra.mxu0 %v4236
    %v4304 = vpop.f32.mrf.mxu0
    %v4305 = vadd.f32 %v1457, %v4304
    %v4306 = vpop.f32.mrf.mxu0
    %4307 = vdwg.mxu0
    %v4308 = vxor.u32 %v4305, 2147483648
    %v4309 = vmul.f32 %v4308, 1.442695
    %v4310 = vpow.pop %v4309
    %v4311 = vadd.f32 %v4310, 1.0
    %v4312 = vrcp.pop %v4311
    %v4313 = vmul.f32 1.0, %v4312
    %v4314 = vsel %vm1534, %v4313, %v4305
    %v4315 = vtanh.pop %v4305
    %v4316 = vmul.f32 %v4315, 3.1415927
    %v4317 = vsel %vm1542, %v4316, %v4314
    %v4320 = vunpack.c.l.s4 1966171168
    %v4321 = vunpack.c.0.s8 %v4320
    %v4322 = vlaneseq
    %v4323 = vshrl.u32 %v4322, 7
    %v4324 = vsub.s32 %v4321, %v4323
    %v4325 = vrot.slane %v4317, %v4324
    %v4326 = vcombine.high %v4325, %v4325
    %v4328 = vunpack.c.l.s4 1966171168
    %v4329 = vunpack.c.0.s8 %v4328
    %v4330 = vlaneseq
    %v4331 = vshrl.u32 %v4330, 7
    %v4332 = vsub.s32 %v4329, %v4331
    %v4333 = vrot.slane %v4325, %v4332
    %v4335 = vunpack.c.l.s4 1966171168
    %v4336 = vunpack.c.0.s8 %v4335
    %v4337 = vlaneseq
    %v4338 = vshrl.u32 %v4337, 7
    %v4339 = vsub.s32 %v4336, %v4338
    %v4340 = vrot.slane %v4326, %v4339
    %4343 = vst [vmem:[%s23 + $0x6] sm:$0x1] %v4333
    %4344 = vst [vmem:[%s23 + $0xe] sm:$0x1] %v4340
    %v4345 = vld [vmem:[%s1 + $0x7] sm:$0x1]
    %v4346 = vld [vmem:[%s1 + $0xf] sm:$0x1]
    %4348 = vset.pattern.permute.xlu0 0
    %4349 = vperm.xlu0 %4348, %v4345
    %v4350 = vpop.permute.xlu0 %4349
    %4353 = vset.pattern.permute.xlu0 0
    %4354 = vperm.xlu0 %4353, %v4346
    %v4355 = vpop.permute.xlu0 %4354
    %v4357 = vmul.f32 %v4350, %v1073
    %v4358 = vmul.f32 %v4355, %v1073
    %4359 = vset.pattern.permute.xlu0 1
    %4360 = vperm.xlu0 %4359, %v4345
    %v4361 = vpop.permute.xlu0 %4360
    %4363 = vset.pattern.permute.xlu0 1
    %4364 = vperm.xlu0 %4363, %v4346
    %v4365 = vpop.permute.xlu0 %4364
    %v4367 = vmul.f32 %v4361, %v1087
    %v4368 = vmul.f32 %v4365, %v1087
    %v4369 = vadd.f32 %v4357, %v4367
    %v4370 = vadd.f32 %v4358, %v4368
    %v4371 = vadd.f32 %v4369, %v1096
    %v4372 = vadd.f32 %v4370, %v1096
    %v4373 = vmax.f32 %v4371, 0.0
    %v4374 = vmax.f32 %v4372, 0.0
    %v4377 = vrot.slane %v4374, 7
    %v4378 = vsel %vm1111, %v4377, %v4373
    %v4379 = vsel %vm1113, %v4378, 0
    %4381 = vmatprep.subr.mxu0 0.0
    %4382 = vmatpush1.msra.mxu0 0.0
    %4383 = vmatprep.subr.mxu0 0.0
    %4384 = vmatpush1.msra.mxu0 0.0
    %4385 = vmatprep.subr.mxu0 0.0
    %4386 = vmatpush1.msra.mxu0 0.0
    %4387 = vmatprep.subr.mxu0 0.0
    %4388 = vmatpush1.msra.mxu0 0.0
    %4389 = vmatprep.subr.mxu0 0.0
    %4390 = vmatpush1.msra.mxu0 0.0
    %4391 = vmatprep.subr.mxu0 0.0
    %4392 = vmatpush1.msra.mxu0 0.0
    %4393 = vmatprep.subr.mxu0 0.0
    %4394 = vmatpush1.msra.mxu0 0.0
    %4395 = vmatprep.subr.mxu0 0.0
    %4396 = vmatpush1.msra.mxu0 0.0
    %4397 = vmatprep.subr.mxu0 0.0
    %4398 = vmatpush1.msra.mxu0 0.0
    %4399 = vmatprep.subr.mxu0 0.0
    %4400 = vmatpush1.msra.mxu0 0.0
    %4401 = vmatprep.subr.mxu0 0.0
    %4402 = vmatpush1.msra.mxu0 0.0
    %4403 = vmatprep.subr.mxu0 0.0
    %4404 = vmatpush1.msra.mxu0 0.0
    %4405 = vmatprep.subr.mxu0 0.0
    %4406 = vmatpush1.msra.mxu0 0.0
    %4407 = vmatprep.subr.mxu0 0.0
    %4408 = vmatpush1.msra.mxu0 0.0
    %4409 = vmatprep.subr.mxu0 0.0
    %4410 = vmatpush1.msra.mxu0 %v1017
    %4411 = vmatprep.subr.mxu0 0.0
    %4412 = vmatpush1.msra.mxu0 %v1016
    %4413 = vmatprep.subr.mxu0 0.0
    %4414 = vmatpush2.msra.mxu0 0.0
    %4415 = vmatprep.subr.mxu0 0.0
    %4416 = vmatpush2.msra.mxu0 0.0
    %4417 = vmatprep.subr.mxu0 0.0
    %4418 = vmatpush2.msra.mxu0 0.0
    %4419 = vmatprep.subr.mxu0 0.0
    %4420 = vmatpush2.msra.mxu0 0.0
    %4421 = vmatprep.subr.mxu0 0.0
    %4422 = vmatpush2.msra.mxu0 0.0
    %4423 = vmatprep.subr.mxu0 0.0
    %4424 = vmatpush2.msra.mxu0 0.0
    %4425 = vmatprep.subr.mxu0 0.0
    %4426 = vmatpush2.msra.mxu0 0.0
    %4427 = vmatprep.subr.mxu0 0.0
    %4428 = vmatpush2.msra.mxu0 0.0
    %4429 = vmatprep.subr.mxu0 0.0
    %4430 = vmatpush2.msra.mxu0 0.0
    %4431 = vmatprep.subr.mxu0 0.0
    %4432 = vmatpush2.msra.mxu0 0.0
    %4433 = vmatprep.subr.mxu0 0.0
    %4434 = vmatpush2.msra.mxu0 0.0
    %4435 = vmatprep.subr.mxu0 0.0
    %4436 = vmatpush2.msra.mxu0 0.0
    %4437 = vmatprep.subr.mxu0 0.0
    %4438 = vmatpush2.msra.mxu0 0.0
    %4439 = vmatprep.subr.mxu0 0.0
    %4440 = vmatpush2.msra.mxu0 0.0
    %4441 = vmatprep.subr.mxu0 0.0
    %4442 = vmatpush2.msra.mxu0 0.0
    %4443 = vmatprep.subr.mxu0 0.0
    %4444 = vmatpush2.msra.mxu0 0.0
    %4445 = vmatprep.mubr.f32.mxu0 0.0
    %4446 = vmatmul.mubr.f32.gmra.mxu0 %v4379
    %v4447 = vpop.f32.mrf.mxu0
    %v4448 = vadd.f32 %v1106, %v4447
    %v4449 = vpop.f32.mrf.mxu0
    %4450 = vdwg.mxu0
    %v4451 = vmax.f32 %v4448, 0.0
    %v4453 = vsel %vm1113, %v4451, 0
    %4455 = vmatprep.subr.mxu0 0.0
    %4456 = vmatpush1.msra.mxu0 0.0
    %4457 = vmatprep.subr.mxu0 0.0
    %4458 = vmatpush1.msra.mxu0 0.0
    %4459 = vmatprep.subr.mxu0 0.0
    %4460 = vmatpush1.msra.mxu0 0.0
    %4461 = vmatprep.subr.mxu0 0.0
    %4462 = vmatpush1.msra.mxu0 0.0
    %4463 = vmatprep.subr.mxu0 0.0
    %4464 = vmatpush1.msra.mxu0 0.0
    %4465 = vmatprep.subr.mxu0 0.0
    %4466 = vmatpush1.msra.mxu0 0.0
    %4467 = vmatprep.subr.mxu0 0.0
    %4468 = vmatpush1.msra.mxu0 0.0
    %4469 = vmatprep.subr.mxu0 0.0
    %4470 = vmatpush1.msra.mxu0 0.0
    %4471 = vmatprep.subr.mxu0 0.0
    %4472 = vmatpush1.msra.mxu0 0.0
    %4473 = vmatprep.subr.mxu0 0.0
    %4474 = vmatpush1.msra.mxu0 0.0
    %4475 = vmatprep.subr.mxu0 0.0
    %4476 = vmatpush1.msra.mxu0 0.0
    %4477 = vmatprep.subr.mxu0 0.0
    %4478 = vmatpush1.msra.mxu0 0.0
    %4479 = vmatprep.subr.mxu0 0.0
    %4480 = vmatpush1.msra.mxu0 0.0
    %4481 = vmatprep.subr.mxu0 0.0
    %4482 = vmatpush1.msra.mxu0 0.0
    %4483 = vmatprep.subr.mxu0 %v1022
    %4484 = vmatpush1.msra.mxu0 %v1021
    %4485 = vmatprep.subr.mxu0 %v1020
    %4486 = vmatpush1.msra.mxu0 %v1019
    %4487 = vmatprep.subr.mxu0 0.0
    %4488 = vmatpush2.msra.mxu0 0.0
    %4489 = vmatprep.subr.mxu0 0.0
    %4490 = vmatpush2.msra.mxu0 0.0
    %4491 = vmatprep.subr.mxu0 0.0
    %4492 = vmatpush2.msra.mxu0 0.0
    %4493 = vmatprep.subr.mxu0 0.0
    %4494 = vmatpush2.msra.mxu0 0.0
    %4495 = vmatprep.subr.mxu0 0.0
    %4496 = vmatpush2.msra.mxu0 0.0
    %4497 = vmatprep.subr.mxu0 0.0
    %4498 = vmatpush2.msra.mxu0 0.0
    %4499 = vmatprep.subr.mxu0 0.0
    %4500 = vmatpush2.msra.mxu0 0.0
    %4501 = vmatprep.subr.mxu0 0.0
    %4502 = vmatpush2.msra.mxu0 0.0
    %4503 = vmatprep.subr.mxu0 0.0
    %4504 = vmatpush2.msra.mxu0 0.0
    %4505 = vmatprep.subr.mxu0 0.0
    %4506 = vmatpush2.msra.mxu0 0.0
    %4507 = vmatprep.subr.mxu0 0.0
    %4508 = vmatpush2.msra.mxu0 0.0
    %4509 = vmatprep.subr.mxu0 0.0
    %4510 = vmatpush2.msra.mxu0 0.0
    %4511 = vmatprep.subr.mxu0 0.0
    %4512 = vmatpush2.msra.mxu0 0.0
    %4513 = vmatprep.subr.mxu0 0.0
    %4514 = vmatpush2.msra.mxu0 0.0
    %4515 = vmatprep.subr.mxu0 0.0
    %4516 = vmatpush2.msra.mxu0 0.0
    %4517 = vmatprep.subr.mxu0 0.0
    %4518 = vmatpush2.msra.mxu0 0.0
    %4519 = vmatprep.mubr.f32.mxu0 0.0
    %4520 = vmatmul.mubr.f32.gmra.mxu0 %v4453
    %v4521 = vpop.f32.mrf.mxu0
    %v4522 = vadd.f32 %v1191, %v4521
    %v4523 = vpop.f32.mrf.mxu0
    %v4524 = vadd.f32 %v1195, %v4523
    %4525 = vdwg.mxu0
    %4526 = vmatprep.subr.mxu0 0.0
    %4527 = vmatpush1.msra.mxu0 0.0
    %4528 = vmatprep.subr.mxu0 0.0
    %4529 = vmatpush1.msra.mxu0 0.0
    %4530 = vmatprep.subr.mxu0 0.0
    %4531 = vmatpush1.msra.mxu0 0.0
    %4532 = vmatprep.subr.mxu0 0.0
    %4533 = vmatpush1.msra.mxu0 0.0
    %4534 = vmatprep.subr.mxu0 0.0
    %4535 = vmatpush1.msra.mxu0 0.0
    %4536 = vmatprep.subr.mxu0 0.0
    %4537 = vmatpush1.msra.mxu0 0.0
    %4538 = vmatprep.subr.mxu0 0.0
    %4539 = vmatpush1.msra.mxu0 0.0
    %4540 = vmatprep.subr.mxu0 0.0
    %4541 = vmatpush1.msra.mxu0 0.0
    %4542 = vmatprep.subr.mxu0 %v1039
    %4543 = vmatpush1.msra.mxu0 %v1038
    %4544 = vmatprep.subr.mxu0 %v1037
    %4545 = vmatpush1.msra.mxu0 %v1036
    %4546 = vmatprep.subr.mxu0 %v1035
    %4547 = vmatpush1.msra.mxu0 %v1034
    %4548 = vmatprep.subr.mxu0 %v1033
    %4549 = vmatpush1.msra.mxu0 %v1032
    %4550 = vmatprep.subr.mxu0 %v1031
    %4551 = vmatpush1.msra.mxu0 %v1030
    %4552 = vmatprep.subr.mxu0 %v1029
    %4553 = vmatpush1.msra.mxu0 %v1028
    %4554 = vmatprep.subr.mxu0 %v1027
    %4555 = vmatpush1.msra.mxu0 %v1026
    %4556 = vmatprep.subr.mxu0 %v1025
    %4557 = vmatpush1.msra.mxu0 %v1024
    %4558 = vmatprep.subr.mxu0 0.0
    %4559 = vmatpush2.msra.mxu0 0.0
    %4560 = vmatprep.subr.mxu0 0.0
    %4561 = vmatpush2.msra.mxu0 0.0
    %4562 = vmatprep.subr.mxu0 0.0
    %4563 = vmatpush2.msra.mxu0 0.0
    %4564 = vmatprep.subr.mxu0 0.0
    %4565 = vmatpush2.msra.mxu0 0.0
    %4566 = vmatprep.subr.mxu0 0.0
    %4567 = vmatpush2.msra.mxu0 0.0
    %4568 = vmatprep.subr.mxu0 0.0
    %4569 = vmatpush2.msra.mxu0 0.0
    %4570 = vmatprep.subr.mxu0 0.0
    %4571 = vmatpush2.msra.mxu0 0.0
    %4572 = vmatprep.subr.mxu0 0.0
    %4573 = vmatpush2.msra.mxu0 0.0
    %4574 = vmatprep.subr.mxu0 0.0
    %4575 = vmatpush2.msra.mxu0 0.0
    %4576 = vmatprep.subr.mxu0 0.0
    %4577 = vmatpush2.msra.mxu0 0.0
    %4578 = vmatprep.subr.mxu0 0.0
    %4579 = vmatpush2.msra.mxu0 0.0
    %4580 = vmatprep.subr.mxu0 0.0
    %4581 = vmatpush2.msra.mxu0 0.0
    %4582 = vmatprep.subr.mxu0 0.0
    %4583 = vmatpush2.msra.mxu0 0.0
    %4584 = vmatprep.subr.mxu0 0.0
    %4585 = vmatpush2.msra.mxu0 0.0
    %4586 = vmatprep.subr.mxu0 0.0
    %4587 = vmatpush2.msra.mxu0 0.0
    %4588 = vmatprep.subr.mxu0 0.0
    %4589 = vmatpush2.msra.mxu0 0.0
    %4590 = vmatprep.mubr.f32.mxu0 0.0
    %4591 = vmatmul.mubr.f32.gmra.mxu0 %v4162
    %v4592 = vpop.f32.mrf.mxu0
    %v4593 = vadd.f32 0.0, %v4592
    %v4594 = vpop.f32.mrf.mxu0
    %v4595 = vadd.f32 0.0, %v4594
    %4596 = vdwg.mxu0
    %v4597 = vadd.f32 %v4522, %v4593
    %v4598 = vadd.f32 %v4524, %v4595
    %v4599 = vxor.u32 %v4597, 2147483648
    %v4600 = vmul.f32 %v4599, 1.442695
    %v4601 = vpow.pop %v4600
    %v4602 = vadd.f32 %v4601, 1.0
    %v4603 = vrcp.pop %v4602
    %v4604 = vmul.f32 1.0, %v4603
    %v4605 = vtanh.pop %v4598
    %v4606 = vxor.u32 %v4598, 2147483648
    %v4607 = vmul.f32 %v4606, 1.442695
    %v4608 = vpow.pop %v4607
    %v4609 = vadd.f32 %v4608, 1.0
    %v4610 = vrcp.pop %v4609
    %v4611 = vmul.f32 1.0, %v4610
    %v4612 = vmul.f32 %v4604, %v4156
    %v4613 = vmul.f32 %v4604, %v4605
    %4615 = vrot.lane.b32.xlu0 %v4613, 64
    %v4616 = vpop.permute.xlu0 %4615
    %v4618 = vadd.f32 %v4612, %v4616
    %v4619 = vtanh.pop %v4618
    %v4620 = vmul.f32 %v4611, %v4619
    %4622 = vrot.lane.b32.xlu0 %v4620, 64
    %v4623 = vpop.permute.xlu0 %4622
    %v4624 = vsel %vm1272, %v4623, 0
    %4626 = vmatprep.subr.mxu0 0.0
    %4627 = vmatpush1.msra.mxu0 0.0
    %4628 = vmatprep.subr.mxu0 0.0
    %4629 = vmatpush1.msra.mxu0 0.0
    %4630 = vmatprep.subr.mxu0 0.0
    %4631 = vmatpush1.msra.mxu0 0.0
    %4632 = vmatprep.subr.mxu0 0.0
    %4633 = vmatpush1.msra.mxu0 0.0
    %4634 = vmatprep.subr.mxu0 0.0
    %4635 = vmatpush1.msra.mxu0 0.0
    %4636 = vmatprep.subr.mxu0 0.0
    %4637 = vmatpush1.msra.mxu0 0.0
    %4638 = vmatprep.subr.mxu0 0.0
    %4639 = vmatpush1.msra.mxu0 0.0
    %4640 = vmatprep.subr.mxu0 0.0
    %4641 = vmatpush1.msra.mxu0 0.0
    %4642 = vmatprep.subr.mxu0 0.0
    %4643 = vmatpush1.msra.mxu0 %v1047
    %4644 = vmatprep.subr.mxu0 0.0
    %4645 = vmatpush1.msra.mxu0 %v1046
    %4646 = vmatprep.subr.mxu0 0.0
    %4647 = vmatpush1.msra.mxu0 %v1045
    %4648 = vmatprep.subr.mxu0 0.0
    %4649 = vmatpush1.msra.mxu0 %v1044
    %4650 = vmatprep.subr.mxu0 0.0
    %4651 = vmatpush1.msra.mxu0 %v1043
    %4652 = vmatprep.subr.mxu0 0.0
    %4653 = vmatpush1.msra.mxu0 %v1042
    %4654 = vmatprep.subr.mxu0 0.0
    %4655 = vmatpush1.msra.mxu0 %v1041
    %4656 = vmatprep.subr.mxu0 0.0
    %4657 = vmatpush1.msra.mxu0 %v1040
    %4658 = vmatprep.subr.mxu0 0.0
    %4659 = vmatpush2.msra.mxu0 0.0
    %4660 = vmatprep.subr.mxu0 0.0
    %4661 = vmatpush2.msra.mxu0 0.0
    %4662 = vmatprep.subr.mxu0 0.0
    %4663 = vmatpush2.msra.mxu0 0.0
    %4664 = vmatprep.subr.mxu0 0.0
    %4665 = vmatpush2.msra.mxu0 0.0
    %4666 = vmatprep.subr.mxu0 0.0
    %4667 = vmatpush2.msra.mxu0 0.0
    %4668 = vmatprep.subr.mxu0 0.0
    %4669 = vmatpush2.msra.mxu0 0.0
    %4670 = vmatprep.subr.mxu0 0.0
    %4671 = vmatpush2.msra.mxu0 0.0
    %4672 = vmatprep.subr.mxu0 0.0
    %4673 = vmatpush2.msra.mxu0 0.0
    %4674 = vmatprep.subr.mxu0 0.0
    %4675 = vmatpush2.msra.mxu0 0.0
    %4676 = vmatprep.subr.mxu0 0.0
    %4677 = vmatpush2.msra.mxu0 0.0
    %4678 = vmatprep.subr.mxu0 0.0
    %4679 = vmatpush2.msra.mxu0 0.0
    %4680 = vmatprep.subr.mxu0 0.0
    %4681 = vmatpush2.msra.mxu0 0.0
    %4682 = vmatprep.subr.mxu0 0.0
    %4683 = vmatpush2.msra.mxu0 0.0
    %4684 = vmatprep.subr.mxu0 0.0
    %4685 = vmatpush2.msra.mxu0 0.0
    %4686 = vmatprep.subr.mxu0 0.0
    %4687 = vmatpush2.msra.mxu0 0.0
    %4688 = vmatprep.subr.mxu0 0.0
    %4689 = vmatpush2.msra.mxu0 0.0
    %4690 = vmatprep.mubr.f32.mxu0 0.0
    %4691 = vmatmul.mubr.f32.gmra.mxu0 %v4624
    %v4692 = vpop.f32.mrf.mxu0
    %v4693 = vadd.f32 %v1375, %v4692
    %v4694 = vpop.f32.mrf.mxu0
    %4695 = vdwg.mxu0
    %v4696 = vmax.f32 %v4693, 0.0
    %v4698 = vsel %vm1272, %v4696, 0
    %4700 = vmatprep.subr.mxu0 0.0
    %4701 = vmatpush1.msra.mxu0 0.0
    %4702 = vmatprep.subr.mxu0 0.0
    %4703 = vmatpush1.msra.mxu0 0.0
    %4704 = vmatprep.subr.mxu0 0.0
    %4705 = vmatpush1.msra.mxu0 0.0
    %4706 = vmatprep.subr.mxu0 0.0
    %4707 = vmatpush1.msra.mxu0 0.0
    %4708 = vmatprep.subr.mxu0 0.0
    %4709 = vmatpush1.msra.mxu0 0.0
    %4710 = vmatprep.subr.mxu0 0.0
    %4711 = vmatpush1.msra.mxu0 0.0
    %4712 = vmatprep.subr.mxu0 0.0
    %4713 = vmatpush1.msra.mxu0 0.0
    %4714 = vmatprep.subr.mxu0 0.0
    %4715 = vmatpush1.msra.mxu0 0.0
    %4716 = vmatprep.subr.mxu0 0.0
    %4717 = vmatpush1.msra.mxu0 %v1056
    %4718 = vmatprep.subr.mxu0 0.0
    %4719 = vmatpush1.msra.mxu0 %v1055
    %4720 = vmatprep.subr.mxu0 0.0
    %4721 = vmatpush1.msra.mxu0 %v1054
    %4722 = vmatprep.subr.mxu0 0.0
    %4723 = vmatpush1.msra.mxu0 %v1053
    %4724 = vmatprep.subr.mxu0 0.0
    %4725 = vmatpush1.msra.mxu0 %v1052
    %4726 = vmatprep.subr.mxu0 0.0
    %4727 = vmatpush1.msra.mxu0 %v1051
    %4728 = vmatprep.subr.mxu0 0.0
    %4729 = vmatpush1.msra.mxu0 %v1050
    %4730 = vmatprep.subr.mxu0 0.0
    %4731 = vmatpush1.msra.mxu0 %v1049
    %4732 = vmatprep.subr.mxu0 0.0
    %4733 = vmatpush2.msra.mxu0 0.0
    %4734 = vmatprep.subr.mxu0 0.0
    %4735 = vmatpush2.msra.mxu0 0.0
    %4736 = vmatprep.subr.mxu0 0.0
    %4737 = vmatpush2.msra.mxu0 0.0
    %4738 = vmatprep.subr.mxu0 0.0
    %4739 = vmatpush2.msra.mxu0 0.0
    %4740 = vmatprep.subr.mxu0 0.0
    %4741 = vmatpush2.msra.mxu0 0.0
    %4742 = vmatprep.subr.mxu0 0.0
    %4743 = vmatpush2.msra.mxu0 0.0
    %4744 = vmatprep.subr.mxu0 0.0
    %4745 = vmatpush2.msra.mxu0 0.0
    %4746 = vmatprep.subr.mxu0 0.0
    %4747 = vmatpush2.msra.mxu0 0.0
    %4748 = vmatprep.subr.mxu0 0.0
    %4749 = vmatpush2.msra.mxu0 0.0
    %4750 = vmatprep.subr.mxu0 0.0
    %4751 = vmatpush2.msra.mxu0 0.0
    %4752 = vmatprep.subr.mxu0 0.0
    %4753 = vmatpush2.msra.mxu0 0.0
    %4754 = vmatprep.subr.mxu0 0.0
    %4755 = vmatpush2.msra.mxu0 0.0
    %4756 = vmatprep.subr.mxu0 0.0
    %4757 = vmatpush2.msra.mxu0 0.0
    %4758 = vmatprep.subr.mxu0 0.0
    %4759 = vmatpush2.msra.mxu0 0.0
    %4760 = vmatprep.subr.mxu0 0.0
    %4761 = vmatpush2.msra.mxu0 0.0
    %4762 = vmatprep.subr.mxu0 0.0
    %4763 = vmatpush2.msra.mxu0 0.0
    %4764 = vmatprep.mubr.f32.mxu0 0.0
    %4765 = vmatmul.mubr.f32.gmra.mxu0 %v4698
    %v4766 = vpop.f32.mrf.mxu0
    %v4767 = vadd.f32 %v1457, %v4766
    %v4768 = vpop.f32.mrf.mxu0
    %4769 = vdwg.mxu0
    %v4770 = vxor.u32 %v4767, 2147483648
    %v4771 = vmul.f32 %v4770, 1.442695
    %v4772 = vpow.pop %v4771
    %v4773 = vadd.f32 %v4772, 1.0
    %v4774 = vrcp.pop %v4773
    %v4775 = vmul.f32 1.0, %v4774
    %v4776 = vsel %vm1534, %v4775, %v4767
    %v4777 = vtanh.pop %v4767
    %v4778 = vmul.f32 %v4777, 3.1415927
    %v4779 = vsel %vm1542, %v4778, %v4776
    %v4782 = vunpack.c.l.s4 1966171168
    %v4783 = vunpack.c.0.s8 %v4782
    %v4784 = vlaneseq
    %v4785 = vshrl.u32 %v4784, 7
    %v4786 = vsub.s32 %v4783, %v4785
    %v4787 = vrot.slane %v4779, %v4786
    %v4788 = vcombine.high %v4787, %v4787
    %v4790 = vunpack.c.l.s4 1966171168
    %v4791 = vunpack.c.0.s8 %v4790
    %v4792 = vlaneseq
    %v4793 = vshrl.u32 %v4792, 7
    %v4794 = vsub.s32 %v4791, %v4793
    %v4795 = vrot.slane %v4787, %v4794
    %v4797 = vunpack.c.l.s4 1966171168
    %v4798 = vunpack.c.0.s8 %v4797
    %v4799 = vlaneseq
    %v4800 = vshrl.u32 %v4799, 7
    %v4801 = vsub.s32 %v4798, %v4800
    %v4802 = vrot.slane %v4788, %v4801
    %4805 = vst [vmem:[%s23 + $0x7] sm:$0x1] %v4795
    %4806 = vst [vmem:[%s23 + $0xf] sm:$0x1] %v4802
    // Predicated region
    $region130: #{forward.1} parent=1 // pred_check
      _
    $region131: #{forward.1} parent=1 // pred_check_branch
      %4808 = sbr.rel (0) target = $region133
    $region132: #{forward.1} parent=1 // pred_region
      _
    $region133: #{forward.1} parent=1 // pred_fallthru
      _
    // Predicated region
    $region134: #{forward.1} parent=1 // pred_check
      _
    $region135: #{forward.1} parent=1 // pred_check_branch
      %4810 = sbr.rel (0) target = $region137
    $region136: #{forward.1} parent=1 // pred_region
      _
    $region137: #{forward.1} parent=1 // pred_fallthru
      _
    %4811 = vsyncpa [#allocation3], 1
    %4812 = vsyncpa [#allocation5], 1
    %4813 = vsyncpa [#allocation8], 1
    %4814 = vsyncpa [#allocation11], 1
    %4815 = vsyncpa [#allocation14], 1

</llo_original>
